<compile_context>
chip_gen: v6e
topology: v6e:2x2x1
jax: 0.10.0
libtpu: 0.0.40
codegen_flags: <defaults>
</compile_context>

<pallas_src>
import functools
import math

import jax
import jax.numpy as jnp
from jax.experimental import pallas as pl
from jax.experimental.pallas import tpu as pltpu  # noqa: F401  (TPU backend)


# ------------------------------ helpers --------------------------------------

def _layer_norm(x, g, b, eps=1e-5):
    mu = jnp.mean(x, axis=-1, keepdims=True)
    var = jnp.mean((x - mu) ** 2, axis=-1, keepdims=True)
    return (x - mu) * jax.lax.rsqrt(var + eps) * g + b


# ------------------------------ fused kernel ----------------------------------

def fused_forward_kernel(x_ref, bias_ref,
                         w_in_ref, b_in_ref,
                         wqkv_ref, bqkv_ref, wo_ref, bo_ref,
                         w1_ref, b1_ref, w2_ref, b2_ref,
                         g1_ref, be1_ref, g2_ref, be2_ref,
                         w_dec_ref, b_dec_ref,
                         o_ref, *, n_head, batch, seq):
    n_tok = batch * seq

    # ---- input projection: (B*S, Din) @ (Din, D) ----
    x = jnp.dot(x_ref[...], w_in_ref[...],
                preferred_element_type=jnp.float32) + b_in_ref[...]
    d_model = x.shape[-1]
    dh = d_model // n_head
    scale = 1.0 / math.sqrt(dh)

    # additive key-padding bias, loaded once: (B, 1, S), 0 valid / -1e9 padded
    bias = bias_ref[...]

    num_layers = wqkv_ref.shape[0]
    for l in range(num_layers):        # small L -> unrolled; weights stay VMEM-resident
        # ---- fused QKV projection: (B*S, D) @ (D, 3D) ----
        qkv = jnp.dot(x, wqkv_ref[l],
                      preferred_element_type=jnp.float32) + bqkv_ref[l]
        wo = wo_ref[l]

        # ---- multi-head self-attention (heads looped, batch dim batched) ----
        attn = jnp.zeros((n_tok, d_model), jnp.float32)
        for h in range(n_head):
            qh = qkv[:, h * dh:(h + 1) * dh].reshape(batch, seq, dh)
            kh = qkv[:, d_model + h * dh:d_model + (h + 1) * dh].reshape(batch, seq, dh)
            vh = qkv[:, 2 * d_model + h * dh:2 * d_model + (h + 1) * dh].reshape(batch, seq, dh)

            s = jnp.einsum('bqd,bkd->bqk', qh, kh,
                           preferred_element_type=jnp.float32) * scale     # (B,S,S)
            s = s + bias                                  # broadcast over query rows

            m = jnp.max(s, axis=-1, keepdims=True)
            e = jnp.exp(s - m)
            p = e * pl.reciprocal(jnp.sum(e, axis=-1, keepdims=True), approx=True)

            ctx = jnp.einsum('bqk,bkd->bqd', p, vh,
                             preferred_element_type=jnp.float32)           # (B,S,dh)
            # accumulate this head's slice of the output projection (no concat)
            attn = attn + jnp.dot(ctx.reshape(n_tok, dh),
                                  wo[h * dh:(h + 1) * dh, :],
                                  preferred_element_type=jnp.float32)
        attn = attn + bo_ref[l]

        # ---- residual + LayerNorm 1 (post-norm) ----
        x = _layer_norm(x + attn, g1_ref[l], be1_ref[l])

        # ---- feed-forward (ReLU) + residual + LayerNorm 2 ----
        ff = jnp.maximum(
            jnp.dot(x, w1_ref[l], preferred_element_type=jnp.float32) + b1_ref[l], 0.0)
        ff = jnp.dot(ff, w2_ref[l], preferred_element_type=jnp.float32) + b2_ref[l]
        x = _layer_norm(x + ff, g2_ref[l], be2_ref[l])

    # ---- output projection ----
    out = jnp.dot(x, w_dec_ref[...],
                  preferred_element_type=jnp.float32) + b_dec_ref[...]
    o_ref[...] = out.astype(o_ref.dtype)


# ------------------------------ wrapper ---------------------------------------

def transformer_regressor_forward(params, inputs, padding_mask, n_head):
    """inputs: (B, S, input_size) f32; padding_mask: (B, S) bool, True == pad."""
    B, S, din = inputs.shape
    dout = params["w_dec"].shape[1]

    # key-padding / flex block mask folded into one additive key bias
    mask_bias = jnp.where(padding_mask, -1e9, 0.0).astype(jnp.float32).reshape(B, 1, S)
    x_flat = inputs.reshape(B * S, din)

    kern = functools.partial(fused_forward_kernel, n_head=n_head, batch=B, seq=S)
    out_flat = pl.pallas_call(
        kern,
        out_shape=jax.ShapeDtypeStruct((B * S, dout), jnp.float32),
    )(x_flat, mask_bias,
      params["w_in"], params["b_in"],
      params["wqkv"], params["bqkv"], params["wo"], params["bo"],
      params["w1"], params["b1"], params["w2"], params["b2"],
      params["g1"], params["be1"], params["g2"], params["be2"],
      params["w_dec"], params["b_dec"])
    return out_flat.reshape(B, S, dout)


# --------------------------- pure-JAX reference --------------------------------

def _reference_forward(params, inputs, padding_mask, n_head):
    B, S, _ = inputs.shape
    D = params["w_in"].shape[1]
    dh = D // n_head
    bias = jnp.where(padding_mask, -1e9, 0.0)[:, None, None, :]     # (B,1,1,S)
    x = inputs @ params["w_in"] + params["b_in"]
    for l in range(params["wqkv"].shape[0]):
        qkv = x @ params["wqkv"][l] + params["bqkv"][l]
        q, k, v = qkv[..., :D], qkv[..., D:2 * D], qkv[..., 2 * D:]
        q = q.reshape(B, S, n_head, dh).transpose(0, 2, 1, 3)
        k = k.reshape(B, S, n_head, dh).transpose(0, 2, 1, 3)
        v = v.reshape(B, S, n_head, dh).transpose(0, 2, 1, 3)
        s = jnp.einsum('bhqd,bhkd->bhqk', q, k) / math.sqrt(dh) + bias
        p = jax.nn.softmax(s, axis=-1)
        ctx = jnp.einsum('bhqk,bhkd->bhqd', p, v).transpose(0, 2, 1, 3).reshape(B, S, D)
        attn = ctx @ params["wo"][l] + params["bo"][l]
        x = _layer_norm(x + attn, params["g1"][l], params["be1"][l])
        ff = jnp.maximum(x @ params["w1"][l] + params["b1"][l], 0.0)
        ff = ff @ params["w2"][l] + params["b2"][l]
        x = _layer_norm(x + ff, params["g2"][l], params["be2"][l])
    return x @ params["w_dec"] + params["b_dec"]


# --------------------------- parameter init ------------------------------------

def init_params(key, num_layers, d_model, input_size, output_size, dim_ff):
    def nrm(k, shape, scale=0.1):
        return (scale * jax.random.normal(k, shape)).astype(jnp.float32)

    L = num_layers
    keys = jax.random.split(key, 6)
    return {
        "w_in": nrm(keys[0], (input_size, d_model)),
        "b_in": jnp.zeros((1, d_model), jnp.float32),
        "w_dec": nrm(keys[1], (d_model, output_size)),
        "b_dec": jnp.zeros((1, output_size), jnp.float32),
        # stacked per-layer weights (layer loop runs inside the fused kernel)
        "wqkv": nrm(keys[2], (L, d_model, 3 * d_model)),
        "bqkv": jnp.zeros((L, 1, 3 * d_model), jnp.float32),
        "wo": nrm(keys[3], (L, d_model, d_model)),
        "bo": jnp.zeros((L, 1, d_model), jnp.float32),
        "w1": nrm(keys[4], (L, d_model, dim_ff)),
        "b1": jnp.zeros((L, 1, dim_ff), jnp.float32),
        "w2": nrm(keys[5], (L, dim_ff, d_model)),
        "b2": jnp.zeros((L, 1, d_model), jnp.float32),
        "g1": jnp.ones((L, 1, d_model), jnp.float32),
        "be1": jnp.zeros((L, 1, d_model), jnp.float32),
        "g2": jnp.ones((L, 1, d_model), jnp.float32),
        "be2": jnp.zeros((L, 1, d_model), jnp.float32),
    }


# --------------------------------- main -----------------------------------------

if __name__ == "__main__":
    NUM_LAYERS = 2
    D_MODEL = 32
    N_HEAD = 4
    INPUT_SIZE = 3        # 3D hit coordinates
    OUTPUT_SIZE = 20      # 20 possible tracks
    DIM_FF = 64
    B, S = 2, 16

    key = jax.random.PRNGKey(0)
    k_par, k_in = jax.random.split(key)
    params = init_params(k_par, NUM_LAYERS, D_MODEL, INPUT_SIZE, OUTPUT_SIZE, DIM_FF)

    inputs = jax.random.normal(k_in, (B, S, INPUT_SIZE), dtype=jnp.float32)
    # batch 0: no padding; batch 1: last 4 hits are padding
    padding_mask = jnp.zeros((B, S), dtype=bool).at[1, S - 4:].set(True)

    fwd = jax.jit(functools.partial(transformer_regressor_forward, n_head=N_HEAD))
    out = fwd(params, inputs, padding_mask)
    jax.block_until_ready(out)

    assert out.shape == (B, S, OUTPUT_SIZE) and out.dtype == jnp.float32
    assert bool(jnp.all(jnp.isfinite(out)))

    ref = _reference_forward(params, inputs, padding_mask, N_HEAD)
    assert bool(jnp.allclose(out, ref, rtol=3e-2, atol=3e-2)), "mismatch vs JAX reference"

    print("KERNEL_OK")
</pallas_src>

<mosaic_0001>
module attributes {stable_mosaic.version = 11 : i64} {
  func.func @fused_forward_kernel(%arg0: memref<32x3xf32, #tpu.memory_space<vmem>>, %arg1: memref<2x1x16xf32, #tpu.memory_space<vmem>>, %arg2: memref<3x32xf32, #tpu.memory_space<vmem>>, %arg3: memref<1x32xf32, #tpu.memory_space<vmem>>, %arg4: memref<2x32x96xf32, #tpu.memory_space<vmem>>, %arg5: memref<2x1x96xf32, #tpu.memory_space<vmem>>, %arg6: memref<2x32x32xf32, #tpu.memory_space<vmem>>, %arg7: memref<2x1x32xf32, #tpu.memory_space<vmem>>, %arg8: memref<2x32x64xf32, #tpu.memory_space<vmem>>, %arg9: memref<2x1x64xf32, #tpu.memory_space<vmem>>, %arg10: memref<2x64x32xf32, #tpu.memory_space<vmem>>, %arg11: memref<2x1x32xf32, #tpu.memory_space<vmem>>, %arg12: memref<2x1x32xf32, #tpu.memory_space<vmem>>, %arg13: memref<2x1x32xf32, #tpu.memory_space<vmem>>, %arg14: memref<2x1x32xf32, #tpu.memory_space<vmem>>, %arg15: memref<2x1x32xf32, #tpu.memory_space<vmem>>, %arg16: memref<32x20xf32, #tpu.memory_space<vmem>>, %arg17: memref<1x20xf32, #tpu.memory_space<vmem>>, %arg18: memref<32x20xf32, #tpu.memory_space<vmem>>) attributes {dimension_semantics = [], scalar_prefetch = 0 : i64, scratch_operands = 0 : i64, tpu.core_type = #tpu.core_type<tc>} {
    %c0 = arith.constant 0 : index
    %c0_0 = arith.constant 0 : index
    %0 = vector.load %arg0[%c0, %c0_0] : memref<32x3xf32, #tpu.memory_space<vmem>>, vector<32x3xf32>
    %c0_1 = arith.constant 0 : index
    %c0_2 = arith.constant 0 : index
    %1 = vector.load %arg2[%c0_1, %c0_2] : memref<3x32xf32, #tpu.memory_space<vmem>>, vector<3x32xf32>
    %cst = arith.constant dense<0.000000e+00> : vector<32x32xf32>
    %2 = tpu.matmul %0, %1, %cst {dimension_numbers = #tpu.dot_dimension_numbers<[1], [0], [0], [1], [0, 0, 1, 1], [], []>} : vector<32x3xf32>, vector<3x32xf32>, vector<32x32xf32> -> vector<32x32xf32>
    %c0_3 = arith.constant 0 : index
    %c0_4 = arith.constant 0 : index
    %3 = vector.load %arg3[%c0_3, %c0_4] : memref<1x32xf32, #tpu.memory_space<vmem>>, vector<1x32xf32>
    %4 = vector.broadcast %3 : vector<1x32xf32> to vector<32x32xf32>
    %5 = arith.addf %2, %4 : vector<32x32xf32>
    %c0_5 = arith.constant 0 : index
    %c0_6 = arith.constant 0 : index
    %c0_7 = arith.constant 0 : index
    %6 = vector.load %arg1[%c0_5, %c0_6, %c0_7] : memref<2x1x16xf32, #tpu.memory_space<vmem>>, vector<2x1x16xf32>
    %c0_8 = arith.constant 0 : index
    %c0_9 = arith.constant 0 : index
    %c0_10 = arith.constant 0 : index
    %7 = vector.load %arg4[%c0_8, %c0_9, %c0_10] : memref<2x32x96xf32, #tpu.memory_space<vmem>>, vector<1x32x96xf32>
    %8 = vector.shape_cast %7 : vector<1x32x96xf32> to vector<32x96xf32>
    %cst_11 = arith.constant dense<0.000000e+00> : vector<32x96xf32>
    %9 = tpu.matmul %5, %8, %cst_11 {dimension_numbers = #tpu.dot_dimension_numbers<[1], [0], [0], [1], [0, 0, 1, 1], [], []>} : vector<32x32xf32>, vector<32x96xf32>, vector<32x96xf32> -> vector<32x96xf32>
    %c0_12 = arith.constant 0 : index
    %c0_13 = arith.constant 0 : index
    %c0_14 = arith.constant 0 : index
    %10 = vector.load %arg5[%c0_12, %c0_13, %c0_14] : memref<2x1x96xf32, #tpu.memory_space<vmem>>, vector<1x1x96xf32>
    %11 = vector.shape_cast %10 : vector<1x1x96xf32> to vector<1x96xf32>
    %12 = vector.broadcast %11 : vector<1x96xf32> to vector<32x96xf32>
    %13 = arith.addf %9, %12 : vector<32x96xf32>
    %c0_15 = arith.constant 0 : index
    %c0_16 = arith.constant 0 : index
    %c0_17 = arith.constant 0 : index
    %14 = vector.load %arg6[%c0_15, %c0_16, %c0_17] : memref<2x32x32xf32, #tpu.memory_space<vmem>>, vector<1x32x32xf32>
    %15 = vector.shape_cast %14 : vector<1x32x32xf32> to vector<32x32xf32>
    %cst_18 = arith.constant 0.000000e+00 : f32
    %16 = vector.broadcast %cst_18 : f32 to vector<32x32xf32>
    %17 = vector.extract_strided_slice %13 {offsets = [0, 0], sizes = [32, 8], strides = [1, 1]} : vector<32x96xf32> to vector<32x8xf32>
    %18 = vector.shape_cast %17 : vector<32x8xf32> to vector<2x16x8xf32>
    %19 = vector.extract_strided_slice %13 {offsets = [0, 32], sizes = [32, 8], strides = [1, 1]} : vector<32x96xf32> to vector<32x8xf32>
    %20 = vector.shape_cast %19 : vector<32x8xf32> to vector<2x16x8xf32>
    %21 = vector.extract_strided_slice %13 {offsets = [0, 64], sizes = [32, 8], strides = [1, 1]} : vector<32x96xf32> to vector<32x8xf32>
    %22 = vector.shape_cast %21 : vector<32x8xf32> to vector<2x16x8xf32>
    "tpu.trace_start"() <{level = 10 : i32, message = "bqd,bkd->bqk"}> : () -> ()
    %cst_19 = arith.constant dense<0.000000e+00> : vector<2x16x16xf32>
    %23 = tpu.matmul %18, %20, %cst_19 {dimension_numbers = #tpu.dot_dimension_numbers<[2], [2], [1], [1], [0, 0, 0, 1, 1, 1], [0], [0]>} : vector<2x16x8xf32>, vector<2x16x8xf32>, vector<2x16x16xf32> -> vector<2x16x16xf32>
    "tpu.trace_stop"() : () -> ()
    %cst_20 = arith.constant 0.353553385 : f32
    %24 = vector.broadcast %cst_20 : f32 to vector<2x16x16xf32>
    %25 = arith.mulf %23, %24 : vector<2x16x16xf32>
    %26 = vector.broadcast %6 : vector<2x1x16xf32> to vector<2x16x16xf32>
    %27 = arith.addf %25, %26 : vector<2x16x16xf32>
    %cst_21 = arith.constant dense<0xFF800000> : vector<2x16xf32>
    %28 = vector.multi_reduction <maximumf>, %27, %cst_21 [2] : vector<2x16x16xf32> to vector<2x16xf32>
    %29 = vector.shape_cast %28 : vector<2x16xf32> to vector<2x16x1xf32>
    %30 = vector.broadcast %29 : vector<2x16x1xf32> to vector<2x16x16xf32>
    %31 = arith.subf %27, %30 : vector<2x16x16xf32>
    %32 = math.exp %31 : vector<2x16x16xf32>
    %cst_22 = arith.constant dense<0.000000e+00> : vector<2x16xf32>
    %33 = vector.multi_reduction <add>, %32, %cst_22 [2] : vector<2x16x16xf32> to vector<2x16xf32>
    %34 = vector.shape_cast %33 : vector<2x16xf32> to vector<2x16x1xf32>
    %35 = tpu.reciprocal %34 {approx = true} : vector<2x16x1xf32> -> vector<2x16x1xf32>
    %36 = vector.broadcast %35 : vector<2x16x1xf32> to vector<2x16x16xf32>
    %37 = arith.mulf %32, %36 : vector<2x16x16xf32>
    "tpu.trace_start"() <{level = 10 : i32, message = "bqk,bkd->bqd"}> : () -> ()
    %cst_23 = arith.constant dense<0.000000e+00> : vector<2x16x8xf32>
    %38 = tpu.matmul %37, %22, %cst_23 {dimension_numbers = #tpu.dot_dimension_numbers<[2], [1], [1], [2], [0, 0, 0, 1, 1, 2], [0], [0]>} : vector<2x16x16xf32>, vector<2x16x8xf32>, vector<2x16x8xf32> -> vector<2x16x8xf32>
    "tpu.trace_stop"() : () -> ()
    %39 = vector.shape_cast %38 : vector<2x16x8xf32> to vector<32x8xf32>
    %40 = vector.extract_strided_slice %15 {offsets = [0, 0], sizes = [8, 32], strides = [1, 1]} : vector<32x32xf32> to vector<8x32xf32>
    %cst_24 = arith.constant dense<0.000000e+00> : vector<32x32xf32>
    %41 = tpu.matmul %39, %40, %cst_24 {dimension_numbers = #tpu.dot_dimension_numbers<[1], [0], [0], [1], [0, 0, 1, 1], [], []>} : vector<32x8xf32>, vector<8x32xf32>, vector<32x32xf32> -> vector<32x32xf32>
    %42 = arith.addf %16, %41 : vector<32x32xf32>
    %43 = vector.extract_strided_slice %13 {offsets = [0, 8], sizes = [32, 8], strides = [1, 1]} : vector<32x96xf32> to vector<32x8xf32>
    %44 = vector.shape_cast %43 : vector<32x8xf32> to vector<2x16x8xf32>
    %45 = vector.extract_strided_slice %13 {offsets = [0, 40], sizes = [32, 8], strides = [1, 1]} : vector<32x96xf32> to vector<32x8xf32>
    %46 = vector.shape_cast %45 : vector<32x8xf32> to vector<2x16x8xf32>
    %47 = vector.extract_strided_slice %13 {offsets = [0, 72], sizes = [32, 8], strides = [1, 1]} : vector<32x96xf32> to vector<32x8xf32>
    %48 = vector.shape_cast %47 : vector<32x8xf32> to vector<2x16x8xf32>
    "tpu.trace_start"() <{level = 10 : i32, message = "bqd,bkd->bqk"}> : () -> ()
    %cst_25 = arith.constant dense<0.000000e+00> : vector<2x16x16xf32>
    %49 = tpu.matmul %44, %46, %cst_25 {dimension_numbers = #tpu.dot_dimension_numbers<[2], [2], [1], [1], [0, 0, 0, 1, 1, 1], [0], [0]>} : vector<2x16x8xf32>, vector<2x16x8xf32>, vector<2x16x16xf32> -> vector<2x16x16xf32>
    "tpu.trace_stop"() : () -> ()
    %cst_26 = arith.constant 0.353553385 : f32
    %50 = vector.broadcast %cst_26 : f32 to vector<2x16x16xf32>
    %51 = arith.mulf %49, %50 : vector<2x16x16xf32>
    %52 = vector.broadcast %6 : vector<2x1x16xf32> to vector<2x16x16xf32>
    %53 = arith.addf %51, %52 : vector<2x16x16xf32>
    %cst_27 = arith.constant dense<0xFF800000> : vector<2x16xf32>
    %54 = vector.multi_reduction <maximumf>, %53, %cst_27 [2] : vector<2x16x16xf32> to vector<2x16xf32>
    %55 = vector.shape_cast %54 : vector<2x16xf32> to vector<2x16x1xf32>
    %56 = vector.broadcast %55 : vector<2x16x1xf32> to vector<2x16x16xf32>
    %57 = arith.subf %53, %56 : vector<2x16x16xf32>
    %58 = math.exp %57 : vector<2x16x16xf32>
    %cst_28 = arith.constant dense<0.000000e+00> : vector<2x16xf32>
    %59 = vector.multi_reduction <add>, %58, %cst_28 [2] : vector<2x16x16xf32> to vector<2x16xf32>
    %60 = vector.shape_cast %59 : vector<2x16xf32> to vector<2x16x1xf32>
    %61 = tpu.reciprocal %60 {approx = true} : vector<2x16x1xf32> -> vector<2x16x1xf32>
    %62 = vector.broadcast %61 : vector<2x16x1xf32> to vector<2x16x16xf32>
    %63 = arith.mulf %58, %62 : vector<2x16x16xf32>
    "tpu.trace_start"() <{level = 10 : i32, message = "bqk,bkd->bqd"}> : () -> ()
    %cst_29 = arith.constant dense<0.000000e+00> : vector<2x16x8xf32>
    %64 = tpu.matmul %63, %48, %cst_29 {dimension_numbers = #tpu.dot_dimension_numbers<[2], [1], [1], [2], [0, 0, 0, 1, 1, 2], [0], [0]>} : vector<2x16x16xf32>, vector<2x16x8xf32>, vector<2x16x8xf32> -> vector<2x16x8xf32>
    "tpu.trace_stop"() : () -> ()
    %65 = vector.shape_cast %64 : vector<2x16x8xf32> to vector<32x8xf32>
    %66 = vector.extract_strided_slice %15 {offsets = [8, 0], sizes = [8, 32], strides = [1, 1]} : vector<32x32xf32> to vector<8x32xf32>
    %cst_30 = arith.constant dense<0.000000e+00> : vector<32x32xf32>
    %67 = tpu.matmul %65, %66, %cst_30 {dimension_numbers = #tpu.dot_dimension_numbers<[1], [0], [0], [1], [0, 0, 1, 1], [], []>} : vector<32x8xf32>, vector<8x32xf32>, vector<32x32xf32> -> vector<32x32xf32>
    %68 = arith.addf %42, %67 : vector<32x32xf32>
    %69 = vector.extract_strided_slice %13 {offsets = [0, 16], sizes = [32, 8], strides = [1, 1]} : vector<32x96xf32> to vector<32x8xf32>
    %70 = vector.shape_cast %69 : vector<32x8xf32> to vector<2x16x8xf32>
    %71 = vector.extract_strided_slice %13 {offsets = [0, 48], sizes = [32, 8], strides = [1, 1]} : vector<32x96xf32> to vector<32x8xf32>
    %72 = vector.shape_cast %71 : vector<32x8xf32> to vector<2x16x8xf32>
    %73 = vector.extract_strided_slice %13 {offsets = [0, 80], sizes = [32, 8], strides = [1, 1]} : vector<32x96xf32> to vector<32x8xf32>
    %74 = vector.shape_cast %73 : vector<32x8xf32> to vector<2x16x8xf32>
    "tpu.trace_start"() <{level = 10 : i32, message = "bqd,bkd->bqk"}> : () -> ()
    %cst_31 = arith.constant dense<0.000000e+00> : vector<2x16x16xf32>
    %75 = tpu.matmul %70, %72, %cst_31 {dimension_numbers = #tpu.dot_dimension_numbers<[2], [2], [1], [1], [0, 0, 0, 1, 1, 1], [0], [0]>} : vector<2x16x8xf32>, vector<2x16x8xf32>, vector<2x16x16xf32> -> vector<2x16x16xf32>
    "tpu.trace_stop"() : () -> ()
    %cst_32 = arith.constant 0.353553385 : f32
    %76 = vector.broadcast %cst_32 : f32 to vector<2x16x16xf32>
    %77 = arith.mulf %75, %76 : vector<2x16x16xf32>
    %78 = vector.broadcast %6 : vector<2x1x16xf32> to vector<2x16x16xf32>
    %79 = arith.addf %77, %78 : vector<2x16x16xf32>
    %cst_33 = arith.constant dense<0xFF800000> : vector<2x16xf32>
    %80 = vector.multi_reduction <maximumf>, %79, %cst_33 [2] : vector<2x16x16xf32> to vector<2x16xf32>
    %81 = vector.shape_cast %80 : vector<2x16xf32> to vector<2x16x1xf32>
    %82 = vector.broadcast %81 : vector<2x16x1xf32> to vector<2x16x16xf32>
    %83 = arith.subf %79, %82 : vector<2x16x16xf32>
    %84 = math.exp %83 : vector<2x16x16xf32>
    %cst_34 = arith.constant dense<0.000000e+00> : vector<2x16xf32>
    %85 = vector.multi_reduction <add>, %84, %cst_34 [2] : vector<2x16x16xf32> to vector<2x16xf32>
    %86 = vector.shape_cast %85 : vector<2x16xf32> to vector<2x16x1xf32>
    %87 = tpu.reciprocal %86 {approx = true} : vector<2x16x1xf32> -> vector<2x16x1xf32>
    %88 = vector.broadcast %87 : vector<2x16x1xf32> to vector<2x16x16xf32>
    %89 = arith.mulf %84, %88 : vector<2x16x16xf32>
    "tpu.trace_start"() <{level = 10 : i32, message = "bqk,bkd->bqd"}> : () -> ()
    %cst_35 = arith.constant dense<0.000000e+00> : vector<2x16x8xf32>
    %90 = tpu.matmul %89, %74, %cst_35 {dimension_numbers = #tpu.dot_dimension_numbers<[2], [1], [1], [2], [0, 0, 0, 1, 1, 2], [0], [0]>} : vector<2x16x16xf32>, vector<2x16x8xf32>, vector<2x16x8xf32> -> vector<2x16x8xf32>
    "tpu.trace_stop"() : () -> ()
    %91 = vector.shape_cast %90 : vector<2x16x8xf32> to vector<32x8xf32>
    %92 = vector.extract_strided_slice %15 {offsets = [16, 0], sizes = [8, 32], strides = [1, 1]} : vector<32x32xf32> to vector<8x32xf32>
    %cst_36 = arith.constant dense<0.000000e+00> : vector<32x32xf32>
    %93 = tpu.matmul %91, %92, %cst_36 {dimension_numbers = #tpu.dot_dimension_numbers<[1], [0], [0], [1], [0, 0, 1, 1], [], []>} : vector<32x8xf32>, vector<8x32xf32>, vector<32x32xf32> -> vector<32x32xf32>
    %94 = arith.addf %68, %93 : vector<32x32xf32>
    %95 = vector.extract_strided_slice %13 {offsets = [0, 24], sizes = [32, 8], strides = [1, 1]} : vector<32x96xf32> to vector<32x8xf32>
    %96 = vector.shape_cast %95 : vector<32x8xf32> to vector<2x16x8xf32>
    %97 = vector.extract_strided_slice %13 {offsets = [0, 56], sizes = [32, 8], strides = [1, 1]} : vector<32x96xf32> to vector<32x8xf32>
    %98 = vector.shape_cast %97 : vector<32x8xf32> to vector<2x16x8xf32>
    %99 = vector.extract_strided_slice %13 {offsets = [0, 88], sizes = [32, 8], strides = [1, 1]} : vector<32x96xf32> to vector<32x8xf32>
    %100 = vector.shape_cast %99 : vector<32x8xf32> to vector<2x16x8xf32>
    "tpu.trace_start"() <{level = 10 : i32, message = "bqd,bkd->bqk"}> : () -> ()
    %cst_37 = arith.constant dense<0.000000e+00> : vector<2x16x16xf32>
    %101 = tpu.matmul %96, %98, %cst_37 {dimension_numbers = #tpu.dot_dimension_numbers<[2], [2], [1], [1], [0, 0, 0, 1, 1, 1], [0], [0]>} : vector<2x16x8xf32>, vector<2x16x8xf32>, vector<2x16x16xf32> -> vector<2x16x16xf32>
    "tpu.trace_stop"() : () -> ()
    %cst_38 = arith.constant 0.353553385 : f32
    %102 = vector.broadcast %cst_38 : f32 to vector<2x16x16xf32>
    %103 = arith.mulf %101, %102 : vector<2x16x16xf32>
    %104 = vector.broadcast %6 : vector<2x1x16xf32> to vector<2x16x16xf32>
    %105 = arith.addf %103, %104 : vector<2x16x16xf32>
    %cst_39 = arith.constant dense<0xFF800000> : vector<2x16xf32>
    %106 = vector.multi_reduction <maximumf>, %105, %cst_39 [2] : vector<2x16x16xf32> to vector<2x16xf32>
    %107 = vector.shape_cast %106 : vector<2x16xf32> to vector<2x16x1xf32>
    %108 = vector.broadcast %107 : vector<2x16x1xf32> to vector<2x16x16xf32>
    %109 = arith.subf %105, %108 : vector<2x16x16xf32>
    %110 = math.exp %109 : vector<2x16x16xf32>
    %cst_40 = arith.constant dense<0.000000e+00> : vector<2x16xf32>
    %111 = vector.multi_reduction <add>, %110, %cst_40 [2] : vector<2x16x16xf32> to vector<2x16xf32>
    %112 = vector.shape_cast %111 : vector<2x16xf32> to vector<2x16x1xf32>
    %113 = tpu.reciprocal %112 {approx = true} : vector<2x16x1xf32> -> vector<2x16x1xf32>
    %114 = vector.broadcast %113 : vector<2x16x1xf32> to vector<2x16x16xf32>
    %115 = arith.mulf %110, %114 : vector<2x16x16xf32>
    "tpu.trace_start"() <{level = 10 : i32, message = "bqk,bkd->bqd"}> : () -> ()
    %cst_41 = arith.constant dense<0.000000e+00> : vector<2x16x8xf32>
    %116 = tpu.matmul %115, %100, %cst_41 {dimension_numbers = #tpu.dot_dimension_numbers<[2], [1], [1], [2], [0, 0, 0, 1, 1, 2], [0], [0]>} : vector<2x16x16xf32>, vector<2x16x8xf32>, vector<2x16x8xf32> -> vector<2x16x8xf32>
    "tpu.trace_stop"() : () -> ()
    %117 = vector.shape_cast %116 : vector<2x16x8xf32> to vector<32x8xf32>
    %118 = vector.extract_strided_slice %15 {offsets = [24, 0], sizes = [8, 32], strides = [1, 1]} : vector<32x32xf32> to vector<8x32xf32>
    %cst_42 = arith.constant dense<0.000000e+00> : vector<32x32xf32>
    %119 = tpu.matmul %117, %118, %cst_42 {dimension_numbers = #tpu.dot_dimension_numbers<[1], [0], [0], [1], [0, 0, 1, 1], [], []>} : vector<32x8xf32>, vector<8x32xf32>, vector<32x32xf32> -> vector<32x32xf32>
    %120 = arith.addf %94, %119 : vector<32x32xf32>
    %c0_43 = arith.constant 0 : index
    %c0_44 = arith.constant 0 : index
    %c0_45 = arith.constant 0 : index
    %121 = vector.load %arg7[%c0_43, %c0_44, %c0_45] : memref<2x1x32xf32, #tpu.memory_space<vmem>>, vector<1x1x32xf32>
    %122 = vector.shape_cast %121 : vector<1x1x32xf32> to vector<1x32xf32>
    %123 = vector.broadcast %122 : vector<1x32xf32> to vector<32x32xf32>
    %124 = arith.addf %120, %123 : vector<32x32xf32>
    %125 = arith.addf %5, %124 : vector<32x32xf32>
    %c0_46 = arith.constant 0 : index
    %c0_47 = arith.constant 0 : index
    %c0_48 = arith.constant 0 : index
    %126 = vector.load %arg12[%c0_46, %c0_47, %c0_48] : memref<2x1x32xf32, #tpu.memory_space<vmem>>, vector<1x1x32xf32>
    %127 = vector.shape_cast %126 : vector<1x1x32xf32> to vector<1x32xf32>
    %c0_49 = arith.constant 0 : index
    %c0_50 = arith.constant 0 : index
    %c0_51 = arith.constant 0 : index
    %128 = vector.load %arg13[%c0_49, %c0_50, %c0_51] : memref<2x1x32xf32, #tpu.memory_space<vmem>>, vector<1x1x32xf32>
    %129 = vector.shape_cast %128 : vector<1x1x32xf32> to vector<1x32xf32>
    %cst_52 = arith.constant dense<0.000000e+00> : vector<32xf32>
    %130 = vector.multi_reduction <add>, %125, %cst_52 [1] : vector<32x32xf32> to vector<32xf32>
    %131 = vector.shape_cast %130 : vector<32xf32> to vector<32x1xf32>
    %cst_53 = arith.constant 3.200000e+01 : f32
    %132 = vector.broadcast %cst_53 : f32 to vector<32x1xf32>
    %133 = arith.divf %131, %132 : vector<32x1xf32>
    %134 = vector.broadcast %133 : vector<32x1xf32> to vector<32x32xf32>
    %135 = arith.subf %125, %134 : vector<32x32xf32>
    %136 = arith.mulf %135, %135 : vector<32x32xf32>
    %cst_54 = arith.constant dense<0.000000e+00> : vector<32xf32>
    %137 = vector.multi_reduction <add>, %136, %cst_54 [1] : vector<32x32xf32> to vector<32xf32>
    %138 = vector.shape_cast %137 : vector<32xf32> to vector<32x1xf32>
    %cst_55 = arith.constant 3.200000e+01 : f32
    %139 = vector.broadcast %cst_55 : f32 to vector<32x1xf32>
    %140 = arith.divf %138, %139 : vector<32x1xf32>
    %141 = vector.broadcast %133 : vector<32x1xf32> to vector<32x32xf32>
    %142 = arith.subf %125, %141 : vector<32x32xf32>
    %cst_56 = arith.constant 9.99999974E-6 : f32
    %143 = vector.broadcast %cst_56 : f32 to vector<32x1xf32>
    %144 = arith.addf %140, %143 : vector<32x1xf32>
    %145 = math.rsqrt %144 : vector<32x1xf32>
    %146 = vector.broadcast %145 : vector<32x1xf32> to vector<32x32xf32>
    %147 = arith.mulf %142, %146 : vector<32x32xf32>
    %148 = vector.broadcast %127 : vector<1x32xf32> to vector<32x32xf32>
    %149 = arith.mulf %147, %148 : vector<32x32xf32>
    %150 = vector.broadcast %129 : vector<1x32xf32> to vector<32x32xf32>
    %151 = arith.addf %149, %150 : vector<32x32xf32>
    %c0_57 = arith.constant 0 : index
    %c0_58 = arith.constant 0 : index
    %c0_59 = arith.constant 0 : index
    %152 = vector.load %arg8[%c0_57, %c0_58, %c0_59] : memref<2x32x64xf32, #tpu.memory_space<vmem>>, vector<1x32x64xf32>
    %153 = vector.shape_cast %152 : vector<1x32x64xf32> to vector<32x64xf32>
    %cst_60 = arith.constant dense<0.000000e+00> : vector<32x64xf32>
    %154 = tpu.matmul %151, %153, %cst_60 {dimension_numbers = #tpu.dot_dimension_numbers<[1], [0], [0], [1], [0, 0, 1, 1], [], []>} : vector<32x32xf32>, vector<32x64xf32>, vector<32x64xf32> -> vector<32x64xf32>
    %c0_61 = arith.constant 0 : index
    %c0_62 = arith.constant 0 : index
    %c0_63 = arith.constant 0 : index
    %155 = vector.load %arg9[%c0_61, %c0_62, %c0_63] : memref<2x1x64xf32, #tpu.memory_space<vmem>>, vector<1x1x64xf32>
    %156 = vector.shape_cast %155 : vector<1x1x64xf32> to vector<1x64xf32>
    %157 = vector.broadcast %156 : vector<1x64xf32> to vector<32x64xf32>
    %158 = arith.addf %154, %157 : vector<32x64xf32>
    %cst_64 = arith.constant 0.000000e+00 : f32
    %159 = vector.broadcast %cst_64 : f32 to vector<32x64xf32>
    %160 = arith.maximumf %158, %159 : vector<32x64xf32>
    %c0_65 = arith.constant 0 : index
    %c0_66 = arith.constant 0 : index
    %c0_67 = arith.constant 0 : index
    %161 = vector.load %arg10[%c0_65, %c0_66, %c0_67] : memref<2x64x32xf32, #tpu.memory_space<vmem>>, vector<1x64x32xf32>
    %162 = vector.shape_cast %161 : vector<1x64x32xf32> to vector<64x32xf32>
    %cst_68 = arith.constant dense<0.000000e+00> : vector<32x32xf32>
    %163 = tpu.matmul %160, %162, %cst_68 {dimension_numbers = #tpu.dot_dimension_numbers<[1], [0], [0], [1], [0, 0, 1, 1], [], []>} : vector<32x64xf32>, vector<64x32xf32>, vector<32x32xf32> -> vector<32x32xf32>
    %c0_69 = arith.constant 0 : index
    %c0_70 = arith.constant 0 : index
    %c0_71 = arith.constant 0 : index
    %164 = vector.load %arg11[%c0_69, %c0_70, %c0_71] : memref<2x1x32xf32, #tpu.memory_space<vmem>>, vector<1x1x32xf32>
    %165 = vector.shape_cast %164 : vector<1x1x32xf32> to vector<1x32xf32>
    %166 = vector.broadcast %165 : vector<1x32xf32> to vector<32x32xf32>
    %167 = arith.addf %163, %166 : vector<32x32xf32>
    %168 = arith.addf %151, %167 : vector<32x32xf32>
    %c0_72 = arith.constant 0 : index
    %c0_73 = arith.constant 0 : index
    %c0_74 = arith.constant 0 : index
    %169 = vector.load %arg14[%c0_72, %c0_73, %c0_74] : memref<2x1x32xf32, #tpu.memory_space<vmem>>, vector<1x1x32xf32>
    %170 = vector.shape_cast %169 : vector<1x1x32xf32> to vector<1x32xf32>
    %c0_75 = arith.constant 0 : index
    %c0_76 = arith.constant 0 : index
    %c0_77 = arith.constant 0 : index
    %171 = vector.load %arg15[%c0_75, %c0_76, %c0_77] : memref<2x1x32xf32, #tpu.memory_space<vmem>>, vector<1x1x32xf32>
    %172 = vector.shape_cast %171 : vector<1x1x32xf32> to vector<1x32xf32>
    %cst_78 = arith.constant dense<0.000000e+00> : vector<32xf32>
    %173 = vector.multi_reduction <add>, %168, %cst_78 [1] : vector<32x32xf32> to vector<32xf32>
    %174 = vector.shape_cast %173 : vector<32xf32> to vector<32x1xf32>
    %cst_79 = arith.constant 3.200000e+01 : f32
    %175 = vector.broadcast %cst_79 : f32 to vector<32x1xf32>
    %176 = arith.divf %174, %175 : vector<32x1xf32>
    %177 = vector.broadcast %176 : vector<32x1xf32> to vector<32x32xf32>
    %178 = arith.subf %168, %177 : vector<32x32xf32>
    %179 = arith.mulf %178, %178 : vector<32x32xf32>
    %cst_80 = arith.constant dense<0.000000e+00> : vector<32xf32>
    %180 = vector.multi_reduction <add>, %179, %cst_80 [1] : vector<32x32xf32> to vector<32xf32>
    %181 = vector.shape_cast %180 : vector<32xf32> to vector<32x1xf32>
    %cst_81 = arith.constant 3.200000e+01 : f32
    %182 = vector.broadcast %cst_81 : f32 to vector<32x1xf32>
    %183 = arith.divf %181, %182 : vector<32x1xf32>
    %184 = vector.broadcast %176 : vector<32x1xf32> to vector<32x32xf32>
    %185 = arith.subf %168, %184 : vector<32x32xf32>
    %cst_82 = arith.constant 9.99999974E-6 : f32
    %186 = vector.broadcast %cst_82 : f32 to vector<32x1xf32>
    %187 = arith.addf %183, %186 : vector<32x1xf32>
    %188 = math.rsqrt %187 : vector<32x1xf32>
    %189 = vector.broadcast %188 : vector<32x1xf32> to vector<32x32xf32>
    %190 = arith.mulf %185, %189 : vector<32x32xf32>
    %191 = vector.broadcast %170 : vector<1x32xf32> to vector<32x32xf32>
    %192 = arith.mulf %190, %191 : vector<32x32xf32>
    %193 = vector.broadcast %172 : vector<1x32xf32> to vector<32x32xf32>
    %194 = arith.addf %192, %193 : vector<32x32xf32>
    %c1 = arith.constant 1 : index
    %c0_83 = arith.constant 0 : index
    %c0_84 = arith.constant 0 : index
    %195 = vector.load %arg4[%c1, %c0_83, %c0_84] : memref<2x32x96xf32, #tpu.memory_space<vmem>>, vector<1x32x96xf32>
    %196 = vector.shape_cast %195 : vector<1x32x96xf32> to vector<32x96xf32>
    %cst_85 = arith.constant dense<0.000000e+00> : vector<32x96xf32>
    %197 = tpu.matmul %194, %196, %cst_85 {dimension_numbers = #tpu.dot_dimension_numbers<[1], [0], [0], [1], [0, 0, 1, 1], [], []>} : vector<32x32xf32>, vector<32x96xf32>, vector<32x96xf32> -> vector<32x96xf32>
    %c1_86 = arith.constant 1 : index
    %c0_87 = arith.constant 0 : index
    %c0_88 = arith.constant 0 : index
    %198 = vector.load %arg5[%c1_86, %c0_87, %c0_88] : memref<2x1x96xf32, #tpu.memory_space<vmem>>, vector<1x1x96xf32>
    %199 = vector.shape_cast %198 : vector<1x1x96xf32> to vector<1x96xf32>
    %200 = vector.broadcast %199 : vector<1x96xf32> to vector<32x96xf32>
    %201 = arith.addf %197, %200 : vector<32x96xf32>
    %c1_89 = arith.constant 1 : index
    %c0_90 = arith.constant 0 : index
    %c0_91 = arith.constant 0 : index
    %202 = vector.load %arg6[%c1_89, %c0_90, %c0_91] : memref<2x32x32xf32, #tpu.memory_space<vmem>>, vector<1x32x32xf32>
    %203 = vector.shape_cast %202 : vector<1x32x32xf32> to vector<32x32xf32>
    %cst_92 = arith.constant 0.000000e+00 : f32
    %204 = vector.broadcast %cst_92 : f32 to vector<32x32xf32>
    %205 = vector.extract_strided_slice %201 {offsets = [0, 0], sizes = [32, 8], strides = [1, 1]} : vector<32x96xf32> to vector<32x8xf32>
    %206 = vector.shape_cast %205 : vector<32x8xf32> to vector<2x16x8xf32>
    %207 = vector.extract_strided_slice %201 {offsets = [0, 32], sizes = [32, 8], strides = [1, 1]} : vector<32x96xf32> to vector<32x8xf32>
    %208 = vector.shape_cast %207 : vector<32x8xf32> to vector<2x16x8xf32>
    %209 = vector.extract_strided_slice %201 {offsets = [0, 64], sizes = [32, 8], strides = [1, 1]} : vector<32x96xf32> to vector<32x8xf32>
    %210 = vector.shape_cast %209 : vector<32x8xf32> to vector<2x16x8xf32>
    "tpu.trace_start"() <{level = 10 : i32, message = "bqd,bkd->bqk"}> : () -> ()
    %cst_93 = arith.constant dense<0.000000e+00> : vector<2x16x16xf32>
    %211 = tpu.matmul %206, %208, %cst_93 {dimension_numbers = #tpu.dot_dimension_numbers<[2], [2], [1], [1], [0, 0, 0, 1, 1, 1], [0], [0]>} : vector<2x16x8xf32>, vector<2x16x8xf32>, vector<2x16x16xf32> -> vector<2x16x16xf32>
    "tpu.trace_stop"() : () -> ()
    %cst_94 = arith.constant 0.353553385 : f32
    %212 = vector.broadcast %cst_94 : f32 to vector<2x16x16xf32>
    %213 = arith.mulf %211, %212 : vector<2x16x16xf32>
    %214 = vector.broadcast %6 : vector<2x1x16xf32> to vector<2x16x16xf32>
    %215 = arith.addf %213, %214 : vector<2x16x16xf32>
    %cst_95 = arith.constant dense<0xFF800000> : vector<2x16xf32>
    %216 = vector.multi_reduction <maximumf>, %215, %cst_95 [2] : vector<2x16x16xf32> to vector<2x16xf32>
    %217 = vector.shape_cast %216 : vector<2x16xf32> to vector<2x16x1xf32>
    %218 = vector.broadcast %217 : vector<2x16x1xf32> to vector<2x16x16xf32>
    %219 = arith.subf %215, %218 : vector<2x16x16xf32>
    %220 = math.exp %219 : vector<2x16x16xf32>
    %cst_96 = arith.constant dense<0.000000e+00> : vector<2x16xf32>
    %221 = vector.multi_reduction <add>, %220, %cst_96 [2] : vector<2x16x16xf32> to vector<2x16xf32>
    %222 = vector.shape_cast %221 : vector<2x16xf32> to vector<2x16x1xf32>
    %223 = tpu.reciprocal %222 {approx = true} : vector<2x16x1xf32> -> vector<2x16x1xf32>
    %224 = vector.broadcast %223 : vector<2x16x1xf32> to vector<2x16x16xf32>
    %225 = arith.mulf %220, %224 : vector<2x16x16xf32>
    "tpu.trace_start"() <{level = 10 : i32, message = "bqk,bkd->bqd"}> : () -> ()
    %cst_97 = arith.constant dense<0.000000e+00> : vector<2x16x8xf32>
    %226 = tpu.matmul %225, %210, %cst_97 {dimension_numbers = #tpu.dot_dimension_numbers<[2], [1], [1], [2], [0, 0, 0, 1, 1, 2], [0], [0]>} : vector<2x16x16xf32>, vector<2x16x8xf32>, vector<2x16x8xf32> -> vector<2x16x8xf32>
    "tpu.trace_stop"() : () -> ()
    %227 = vector.shape_cast %226 : vector<2x16x8xf32> to vector<32x8xf32>
    %228 = vector.extract_strided_slice %203 {offsets = [0, 0], sizes = [8, 32], strides = [1, 1]} : vector<32x32xf32> to vector<8x32xf32>
    %cst_98 = arith.constant dense<0.000000e+00> : vector<32x32xf32>
    %229 = tpu.matmul %227, %228, %cst_98 {dimension_numbers = #tpu.dot_dimension_numbers<[1], [0], [0], [1], [0, 0, 1, 1], [], []>} : vector<32x8xf32>, vector<8x32xf32>, vector<32x32xf32> -> vector<32x32xf32>
    %230 = arith.addf %204, %229 : vector<32x32xf32>
    %231 = vector.extract_strided_slice %201 {offsets = [0, 8], sizes = [32, 8], strides = [1, 1]} : vector<32x96xf32> to vector<32x8xf32>
    %232 = vector.shape_cast %231 : vector<32x8xf32> to vector<2x16x8xf32>
    %233 = vector.extract_strided_slice %201 {offsets = [0, 40], sizes = [32, 8], strides = [1, 1]} : vector<32x96xf32> to vector<32x8xf32>
    %234 = vector.shape_cast %233 : vector<32x8xf32> to vector<2x16x8xf32>
    %235 = vector.extract_strided_slice %201 {offsets = [0, 72], sizes = [32, 8], strides = [1, 1]} : vector<32x96xf32> to vector<32x8xf32>
    %236 = vector.shape_cast %235 : vector<32x8xf32> to vector<2x16x8xf32>
    "tpu.trace_start"() <{level = 10 : i32, message = "bqd,bkd->bqk"}> : () -> ()
    %cst_99 = arith.constant dense<0.000000e+00> : vector<2x16x16xf32>
    %237 = tpu.matmul %232, %234, %cst_99 {dimension_numbers = #tpu.dot_dimension_numbers<[2], [2], [1], [1], [0, 0, 0, 1, 1, 1], [0], [0]>} : vector<2x16x8xf32>, vector<2x16x8xf32>, vector<2x16x16xf32> -> vector<2x16x16xf32>
    "tpu.trace_stop"() : () -> ()
    %cst_100 = arith.constant 0.353553385 : f32
    %238 = vector.broadcast %cst_100 : f32 to vector<2x16x16xf32>
    %239 = arith.mulf %237, %238 : vector<2x16x16xf32>
    %240 = vector.broadcast %6 : vector<2x1x16xf32> to vector<2x16x16xf32>
    %241 = arith.addf %239, %240 : vector<2x16x16xf32>
    %cst_101 = arith.constant dense<0xFF800000> : vector<2x16xf32>
    %242 = vector.multi_reduction <maximumf>, %241, %cst_101 [2] : vector<2x16x16xf32> to vector<2x16xf32>
    %243 = vector.shape_cast %242 : vector<2x16xf32> to vector<2x16x1xf32>
    %244 = vector.broadcast %243 : vector<2x16x1xf32> to vector<2x16x16xf32>
    %245 = arith.subf %241, %244 : vector<2x16x16xf32>
    %246 = math.exp %245 : vector<2x16x16xf32>
    %cst_102 = arith.constant dense<0.000000e+00> : vector<2x16xf32>
    %247 = vector.multi_reduction <add>, %246, %cst_102 [2] : vector<2x16x16xf32> to vector<2x16xf32>
    %248 = vector.shape_cast %247 : vector<2x16xf32> to vector<2x16x1xf32>
    %249 = tpu.reciprocal %248 {approx = true} : vector<2x16x1xf32> -> vector<2x16x1xf32>
    %250 = vector.broadcast %249 : vector<2x16x1xf32> to vector<2x16x16xf32>
    %251 = arith.mulf %246, %250 : vector<2x16x16xf32>
    "tpu.trace_start"() <{level = 10 : i32, message = "bqk,bkd->bqd"}> : () -> ()
    %cst_103 = arith.constant dense<0.000000e+00> : vector<2x16x8xf32>
    %252 = tpu.matmul %251, %236, %cst_103 {dimension_numbers = #tpu.dot_dimension_numbers<[2], [1], [1], [2], [0, 0, 0, 1, 1, 2], [0], [0]>} : vector<2x16x16xf32>, vector<2x16x8xf32>, vector<2x16x8xf32> -> vector<2x16x8xf32>
    "tpu.trace_stop"() : () -> ()
    %253 = vector.shape_cast %252 : vector<2x16x8xf32> to vector<32x8xf32>
    %254 = vector.extract_strided_slice %203 {offsets = [8, 0], sizes = [8, 32], strides = [1, 1]} : vector<32x32xf32> to vector<8x32xf32>
    %cst_104 = arith.constant dense<0.000000e+00> : vector<32x32xf32>
    %255 = tpu.matmul %253, %254, %cst_104 {dimension_numbers = #tpu.dot_dimension_numbers<[1], [0], [0], [1], [0, 0, 1, 1], [], []>} : vector<32x8xf32>, vector<8x32xf32>, vector<32x32xf32> -> vector<32x32xf32>
    %256 = arith.addf %230, %255 : vector<32x32xf32>
    %257 = vector.extract_strided_slice %201 {offsets = [0, 16], sizes = [32, 8], strides = [1, 1]} : vector<32x96xf32> to vector<32x8xf32>
    %258 = vector.shape_cast %257 : vector<32x8xf32> to vector<2x16x8xf32>
    %259 = vector.extract_strided_slice %201 {offsets = [0, 48], sizes = [32, 8], strides = [1, 1]} : vector<32x96xf32> to vector<32x8xf32>
    %260 = vector.shape_cast %259 : vector<32x8xf32> to vector<2x16x8xf32>
    %261 = vector.extract_strided_slice %201 {offsets = [0, 80], sizes = [32, 8], strides = [1, 1]} : vector<32x96xf32> to vector<32x8xf32>
    %262 = vector.shape_cast %261 : vector<32x8xf32> to vector<2x16x8xf32>
    "tpu.trace_start"() <{level = 10 : i32, message = "bqd,bkd->bqk"}> : () -> ()
    %cst_105 = arith.constant dense<0.000000e+00> : vector<2x16x16xf32>
    %263 = tpu.matmul %258, %260, %cst_105 {dimension_numbers = #tpu.dot_dimension_numbers<[2], [2], [1], [1], [0, 0, 0, 1, 1, 1], [0], [0]>} : vector<2x16x8xf32>, vector<2x16x8xf32>, vector<2x16x16xf32> -> vector<2x16x16xf32>
    "tpu.trace_stop"() : () -> ()
    %cst_106 = arith.constant 0.353553385 : f32
    %264 = vector.broadcast %cst_106 : f32 to vector<2x16x16xf32>
    %265 = arith.mulf %263, %264 : vector<2x16x16xf32>
    %266 = vector.broadcast %6 : vector<2x1x16xf32> to vector<2x16x16xf32>
    %267 = arith.addf %265, %266 : vector<2x16x16xf32>
    %cst_107 = arith.constant dense<0xFF800000> : vector<2x16xf32>
    %268 = vector.multi_reduction <maximumf>, %267, %cst_107 [2] : vector<2x16x16xf32> to vector<2x16xf32>
    %269 = vector.shape_cast %268 : vector<2x16xf32> to vector<2x16x1xf32>
    %270 = vector.broadcast %269 : vector<2x16x1xf32> to vector<2x16x16xf32>
    %271 = arith.subf %267, %270 : vector<2x16x16xf32>
    %272 = math.exp %271 : vector<2x16x16xf32>
    %cst_108 = arith.constant dense<0.000000e+00> : vector<2x16xf32>
    %273 = vector.multi_reduction <add>, %272, %cst_108 [2] : vector<2x16x16xf32> to vector<2x16xf32>
    %274 = vector.shape_cast %273 : vector<2x16xf32> to vector<2x16x1xf32>
    %275 = tpu.reciprocal %274 {approx = true} : vector<2x16x1xf32> -> vector<2x16x1xf32>
    %276 = vector.broadcast %275 : vector<2x16x1xf32> to vector<2x16x16xf32>
    %277 = arith.mulf %272, %276 : vector<2x16x16xf32>
    "tpu.trace_start"() <{level = 10 : i32, message = "bqk,bkd->bqd"}> : () -> ()
    %cst_109 = arith.constant dense<0.000000e+00> : vector<2x16x8xf32>
    %278 = tpu.matmul %277, %262, %cst_109 {dimension_numbers = #tpu.dot_dimension_numbers<[2], [1], [1], [2], [0, 0, 0, 1, 1, 2], [0], [0]>} : vector<2x16x16xf32>, vector<2x16x8xf32>, vector<2x16x8xf32> -> vector<2x16x8xf32>
    "tpu.trace_stop"() : () -> ()
    %279 = vector.shape_cast %278 : vector<2x16x8xf32> to vector<32x8xf32>
    %280 = vector.extract_strided_slice %203 {offsets = [16, 0], sizes = [8, 32], strides = [1, 1]} : vector<32x32xf32> to vector<8x32xf32>
    %cst_110 = arith.constant dense<0.000000e+00> : vector<32x32xf32>
    %281 = tpu.matmul %279, %280, %cst_110 {dimension_numbers = #tpu.dot_dimension_numbers<[1], [0], [0], [1], [0, 0, 1, 1], [], []>} : vector<32x8xf32>, vector<8x32xf32>, vector<32x32xf32> -> vector<32x32xf32>
    %282 = arith.addf %256, %281 : vector<32x32xf32>
    %283 = vector.extract_strided_slice %201 {offsets = [0, 24], sizes = [32, 8], strides = [1, 1]} : vector<32x96xf32> to vector<32x8xf32>
    %284 = vector.shape_cast %283 : vector<32x8xf32> to vector<2x16x8xf32>
    %285 = vector.extract_strided_slice %201 {offsets = [0, 56], sizes = [32, 8], strides = [1, 1]} : vector<32x96xf32> to vector<32x8xf32>
    %286 = vector.shape_cast %285 : vector<32x8xf32> to vector<2x16x8xf32>
    %287 = vector.extract_strided_slice %201 {offsets = [0, 88], sizes = [32, 8], strides = [1, 1]} : vector<32x96xf32> to vector<32x8xf32>
    %288 = vector.shape_cast %287 : vector<32x8xf32> to vector<2x16x8xf32>
    "tpu.trace_start"() <{level = 10 : i32, message = "bqd,bkd->bqk"}> : () -> ()
    %cst_111 = arith.constant dense<0.000000e+00> : vector<2x16x16xf32>
    %289 = tpu.matmul %284, %286, %cst_111 {dimension_numbers = #tpu.dot_dimension_numbers<[2], [2], [1], [1], [0, 0, 0, 1, 1, 1], [0], [0]>} : vector<2x16x8xf32>, vector<2x16x8xf32>, vector<2x16x16xf32> -> vector<2x16x16xf32>
    "tpu.trace_stop"() : () -> ()
    %cst_112 = arith.constant 0.353553385 : f32
    %290 = vector.broadcast %cst_112 : f32 to vector<2x16x16xf32>
    %291 = arith.mulf %289, %290 : vector<2x16x16xf32>
    %292 = vector.broadcast %6 : vector<2x1x16xf32> to vector<2x16x16xf32>
    %293 = arith.addf %291, %292 : vector<2x16x16xf32>
    %cst_113 = arith.constant dense<0xFF800000> : vector<2x16xf32>
    %294 = vector.multi_reduction <maximumf>, %293, %cst_113 [2] : vector<2x16x16xf32> to vector<2x16xf32>
    %295 = vector.shape_cast %294 : vector<2x16xf32> to vector<2x16x1xf32>
    %296 = vector.broadcast %295 : vector<2x16x1xf32> to vector<2x16x16xf32>
    %297 = arith.subf %293, %296 : vector<2x16x16xf32>
    %298 = math.exp %297 : vector<2x16x16xf32>
    %cst_114 = arith.constant dense<0.000000e+00> : vector<2x16xf32>
    %299 = vector.multi_reduction <add>, %298, %cst_114 [2] : vector<2x16x16xf32> to vector<2x16xf32>
    %300 = vector.shape_cast %299 : vector<2x16xf32> to vector<2x16x1xf32>
    %301 = tpu.reciprocal %300 {approx = true} : vector<2x16x1xf32> -> vector<2x16x1xf32>
    %302 = vector.broadcast %301 : vector<2x16x1xf32> to vector<2x16x16xf32>
    %303 = arith.mulf %298, %302 : vector<2x16x16xf32>
    "tpu.trace_start"() <{level = 10 : i32, message = "bqk,bkd->bqd"}> : () -> ()
    %cst_115 = arith.constant dense<0.000000e+00> : vector<2x16x8xf32>
    %304 = tpu.matmul %303, %288, %cst_115 {dimension_numbers = #tpu.dot_dimension_numbers<[2], [1], [1], [2], [0, 0, 0, 1, 1, 2], [0], [0]>} : vector<2x16x16xf32>, vector<2x16x8xf32>, vector<2x16x8xf32> -> vector<2x16x8xf32>
    "tpu.trace_stop"() : () -> ()
    %305 = vector.shape_cast %304 : vector<2x16x8xf32> to vector<32x8xf32>
    %306 = vector.extract_strided_slice %203 {offsets = [24, 0], sizes = [8, 32], strides = [1, 1]} : vector<32x32xf32> to vector<8x32xf32>
    %cst_116 = arith.constant dense<0.000000e+00> : vector<32x32xf32>
    %307 = tpu.matmul %305, %306, %cst_116 {dimension_numbers = #tpu.dot_dimension_numbers<[1], [0], [0], [1], [0, 0, 1, 1], [], []>} : vector<32x8xf32>, vector<8x32xf32>, vector<32x32xf32> -> vector<32x32xf32>
    %308 = arith.addf %282, %307 : vector<32x32xf32>
    %c1_117 = arith.constant 1 : index
    %c0_118 = arith.constant 0 : index
    %c0_119 = arith.constant 0 : index
    %309 = vector.load %arg7[%c1_117, %c0_118, %c0_119] : memref<2x1x32xf32, #tpu.memory_space<vmem>>, vector<1x1x32xf32>
    %310 = vector.shape_cast %309 : vector<1x1x32xf32> to vector<1x32xf32>
    %311 = vector.broadcast %310 : vector<1x32xf32> to vector<32x32xf32>
    %312 = arith.addf %308, %311 : vector<32x32xf32>
    %313 = arith.addf %194, %312 : vector<32x32xf32>
    %c1_120 = arith.constant 1 : index
    %c0_121 = arith.constant 0 : index
    %c0_122 = arith.constant 0 : index
    %314 = vector.load %arg12[%c1_120, %c0_121, %c0_122] : memref<2x1x32xf32, #tpu.memory_space<vmem>>, vector<1x1x32xf32>
    %315 = vector.shape_cast %314 : vector<1x1x32xf32> to vector<1x32xf32>
    %c1_123 = arith.constant 1 : index
    %c0_124 = arith.constant 0 : index
    %c0_125 = arith.constant 0 : index
    %316 = vector.load %arg13[%c1_123, %c0_124, %c0_125] : memref<2x1x32xf32, #tpu.memory_space<vmem>>, vector<1x1x32xf32>
    %317 = vector.shape_cast %316 : vector<1x1x32xf32> to vector<1x32xf32>
    %cst_126 = arith.constant dense<0.000000e+00> : vector<32xf32>
    %318 = vector.multi_reduction <add>, %313, %cst_126 [1] : vector<32x32xf32> to vector<32xf32>
    %319 = vector.shape_cast %318 : vector<32xf32> to vector<32x1xf32>
    %cst_127 = arith.constant 3.200000e+01 : f32
    %320 = vector.broadcast %cst_127 : f32 to vector<32x1xf32>
    %321 = arith.divf %319, %320 : vector<32x1xf32>
    %322 = vector.broadcast %321 : vector<32x1xf32> to vector<32x32xf32>
    %323 = arith.subf %313, %322 : vector<32x32xf32>
    %324 = arith.mulf %323, %323 : vector<32x32xf32>
    %cst_128 = arith.constant dense<0.000000e+00> : vector<32xf32>
    %325 = vector.multi_reduction <add>, %324, %cst_128 [1] : vector<32x32xf32> to vector<32xf32>
    %326 = vector.shape_cast %325 : vector<32xf32> to vector<32x1xf32>
    %cst_129 = arith.constant 3.200000e+01 : f32
    %327 = vector.broadcast %cst_129 : f32 to vector<32x1xf32>
    %328 = arith.divf %326, %327 : vector<32x1xf32>
    %329 = vector.broadcast %321 : vector<32x1xf32> to vector<32x32xf32>
    %330 = arith.subf %313, %329 : vector<32x32xf32>
    %cst_130 = arith.constant 9.99999974E-6 : f32
    %331 = vector.broadcast %cst_130 : f32 to vector<32x1xf32>
    %332 = arith.addf %328, %331 : vector<32x1xf32>
    %333 = math.rsqrt %332 : vector<32x1xf32>
    %334 = vector.broadcast %333 : vector<32x1xf32> to vector<32x32xf32>
    %335 = arith.mulf %330, %334 : vector<32x32xf32>
    %336 = vector.broadcast %315 : vector<1x32xf32> to vector<32x32xf32>
    %337 = arith.mulf %335, %336 : vector<32x32xf32>
    %338 = vector.broadcast %317 : vector<1x32xf32> to vector<32x32xf32>
    %339 = arith.addf %337, %338 : vector<32x32xf32>
    %c1_131 = arith.constant 1 : index
    %c0_132 = arith.constant 0 : index
    %c0_133 = arith.constant 0 : index
    %340 = vector.load %arg8[%c1_131, %c0_132, %c0_133] : memref<2x32x64xf32, #tpu.memory_space<vmem>>, vector<1x32x64xf32>
    %341 = vector.shape_cast %340 : vector<1x32x64xf32> to vector<32x64xf32>
    %cst_134 = arith.constant dense<0.000000e+00> : vector<32x64xf32>
    %342 = tpu.matmul %339, %341, %cst_134 {dimension_numbers = #tpu.dot_dimension_numbers<[1], [0], [0], [1], [0, 0, 1, 1], [], []>} : vector<32x32xf32>, vector<32x64xf32>, vector<32x64xf32> -> vector<32x64xf32>
    %c1_135 = arith.constant 1 : index
    %c0_136 = arith.constant 0 : index
    %c0_137 = arith.constant 0 : index
    %343 = vector.load %arg9[%c1_135, %c0_136, %c0_137] : memref<2x1x64xf32, #tpu.memory_space<vmem>>, vector<1x1x64xf32>
    %344 = vector.shape_cast %343 : vector<1x1x64xf32> to vector<1x64xf32>
    %345 = vector.broadcast %344 : vector<1x64xf32> to vector<32x64xf32>
    %346 = arith.addf %342, %345 : vector<32x64xf32>
    %cst_138 = arith.constant 0.000000e+00 : f32
    %347 = vector.broadcast %cst_138 : f32 to vector<32x64xf32>
    %348 = arith.maximumf %346, %347 : vector<32x64xf32>
    %c1_139 = arith.constant 1 : index
    %c0_140 = arith.constant 0 : index
    %c0_141 = arith.constant 0 : index
    %349 = vector.load %arg10[%c1_139, %c0_140, %c0_141] : memref<2x64x32xf32, #tpu.memory_space<vmem>>, vector<1x64x32xf32>
    %350 = vector.shape_cast %349 : vector<1x64x32xf32> to vector<64x32xf32>
    %cst_142 = arith.constant dense<0.000000e+00> : vector<32x32xf32>
    %351 = tpu.matmul %348, %350, %cst_142 {dimension_numbers = #tpu.dot_dimension_numbers<[1], [0], [0], [1], [0, 0, 1, 1], [], []>} : vector<32x64xf32>, vector<64x32xf32>, vector<32x32xf32> -> vector<32x32xf32>
    %c1_143 = arith.constant 1 : index
    %c0_144 = arith.constant 0 : index
    %c0_145 = arith.constant 0 : index
    %352 = vector.load %arg11[%c1_143, %c0_144, %c0_145] : memref<2x1x32xf32, #tpu.memory_space<vmem>>, vector<1x1x32xf32>
    %353 = vector.shape_cast %352 : vector<1x1x32xf32> to vector<1x32xf32>
    %354 = vector.broadcast %353 : vector<1x32xf32> to vector<32x32xf32>
    %355 = arith.addf %351, %354 : vector<32x32xf32>
    %356 = arith.addf %339, %355 : vector<32x32xf32>
    %c1_146 = arith.constant 1 : index
    %c0_147 = arith.constant 0 : index
    %c0_148 = arith.constant 0 : index
    %357 = vector.load %arg14[%c1_146, %c0_147, %c0_148] : memref<2x1x32xf32, #tpu.memory_space<vmem>>, vector<1x1x32xf32>
    %358 = vector.shape_cast %357 : vector<1x1x32xf32> to vector<1x32xf32>
    %c1_149 = arith.constant 1 : index
    %c0_150 = arith.constant 0 : index
    %c0_151 = arith.constant 0 : index
    %359 = vector.load %arg15[%c1_149, %c0_150, %c0_151] : memref<2x1x32xf32, #tpu.memory_space<vmem>>, vector<1x1x32xf32>
    %360 = vector.shape_cast %359 : vector<1x1x32xf32> to vector<1x32xf32>
    %cst_152 = arith.constant dense<0.000000e+00> : vector<32xf32>
    %361 = vector.multi_reduction <add>, %356, %cst_152 [1] : vector<32x32xf32> to vector<32xf32>
    %362 = vector.shape_cast %361 : vector<32xf32> to vector<32x1xf32>
    %cst_153 = arith.constant 3.200000e+01 : f32
    %363 = vector.broadcast %cst_153 : f32 to vector<32x1xf32>
    %364 = arith.divf %362, %363 : vector<32x1xf32>
    %365 = vector.broadcast %364 : vector<32x1xf32> to vector<32x32xf32>
    %366 = arith.subf %356, %365 : vector<32x32xf32>
    %367 = arith.mulf %366, %366 : vector<32x32xf32>
    %cst_154 = arith.constant dense<0.000000e+00> : vector<32xf32>
    %368 = vector.multi_reduction <add>, %367, %cst_154 [1] : vector<32x32xf32> to vector<32xf32>
    %369 = vector.shape_cast %368 : vector<32xf32> to vector<32x1xf32>
    %cst_155 = arith.constant 3.200000e+01 : f32
    %370 = vector.broadcast %cst_155 : f32 to vector<32x1xf32>
    %371 = arith.divf %369, %370 : vector<32x1xf32>
    %372 = vector.broadcast %364 : vector<32x1xf32> to vector<32x32xf32>
    %373 = arith.subf %356, %372 : vector<32x32xf32>
    %cst_156 = arith.constant 9.99999974E-6 : f32
    %374 = vector.broadcast %cst_156 : f32 to vector<32x1xf32>
    %375 = arith.addf %371, %374 : vector<32x1xf32>
    %376 = math.rsqrt %375 : vector<32x1xf32>
    %377 = vector.broadcast %376 : vector<32x1xf32> to vector<32x32xf32>
    %378 = arith.mulf %373, %377 : vector<32x32xf32>
    %379 = vector.broadcast %358 : vector<1x32xf32> to vector<32x32xf32>
    %380 = arith.mulf %378, %379 : vector<32x32xf32>
    %381 = vector.broadcast %360 : vector<1x32xf32> to vector<32x32xf32>
    %382 = arith.addf %380, %381 : vector<32x32xf32>
    %c0_157 = arith.constant 0 : index
    %c0_158 = arith.constant 0 : index
    %383 = vector.load %arg16[%c0_157, %c0_158] : memref<32x20xf32, #tpu.memory_space<vmem>>, vector<32x20xf32>
    %cst_159 = arith.constant dense<0.000000e+00> : vector<32x20xf32>
    %384 = tpu.matmul %382, %383, %cst_159 {dimension_numbers = #tpu.dot_dimension_numbers<[1], [0], [0], [1], [0, 0, 1, 1], [], []>} : vector<32x32xf32>, vector<32x20xf32>, vector<32x20xf32> -> vector<32x20xf32>
    %c0_160 = arith.constant 0 : index
    %c0_161 = arith.constant 0 : index
    %385 = vector.load %arg17[%c0_160, %c0_161] : memref<1x20xf32, #tpu.memory_space<vmem>>, vector<1x20xf32>
    %386 = vector.broadcast %385 : vector<1x20xf32> to vector<32x20xf32>
    %387 = arith.addf %384, %386 : vector<32x20xf32>
    %c0_162 = arith.constant 0 : index
    %c0_163 = arith.constant 0 : index
    %388 = vector.load %arg18[%c0_162, %c0_163] : memref<32x20xf32, #tpu.memory_space<vmem>>, vector<32x20xf32>
    tpu.vector_store %arg18[%c0_162, %c0_163], %387 {strides = array<i32>} : memref<32x20xf32, #tpu.memory_space<vmem>>, vector<32x20xf32>,
    return
  }
}

</mosaic_0001>

<llo_original>
// kernel: transformer_regressor_forward.1
$region0: #{transformer_regressor_forward.1}
  #allocation0 [shape = 'u32[]', space=smem, size = 0x4, offset = 0x4, fixed_abs, tag = 'smem constant byte address 0x4 - core index']
  #allocation1 [shape = 'u32[144,128]{1,0:T(1,128)}', space=vmem, size = 0x12000, scoped, tag = 'internal scratch']
  %s0 = inlined_call_operand.vmem [shape: f32[32,3], index: 0, kind: input, shape index: {}]
  %s1 = inlined_call_operand.vmem [shape: f32[2,1,16], index: 1, kind: input, shape index: {}]
  %s2 = inlined_call_operand.vmem [shape: f32[3,32], index: 2, kind: input, shape index: {}]
  %s3 = inlined_call_operand.vmem [shape: f32[1,32], index: 3, kind: input, shape index: {}]
  %s4 = inlined_call_operand.vmem [shape: f32[2,32,96], index: 4, kind: input, shape index: {}]
  %s5 = inlined_call_operand.vmem [shape: f32[2,1,96], index: 5, kind: input, shape index: {}]
  %s6 = inlined_call_operand.vmem [shape: f32[2,32,32], index: 6, kind: input, shape index: {}]
  %s7 = inlined_call_operand.vmem [shape: f32[2,1,32], index: 7, kind: input, shape index: {}]
  %s8 = inlined_call_operand.vmem [shape: f32[2,32,64], index: 8, kind: input, shape index: {}]
  %s9 = inlined_call_operand.vmem [shape: f32[2,1,64], index: 9, kind: input, shape index: {}]
  %s10 = inlined_call_operand.vmem [shape: f32[2,64,32], index: 10, kind: input, shape index: {}]
  %s11 = inlined_call_operand.vmem [shape: f32[2,1,32], index: 11, kind: input, shape index: {}]
  %s12 = inlined_call_operand.vmem [shape: f32[2,1,32], index: 12, kind: input, shape index: {}]
  %s13 = inlined_call_operand.vmem [shape: f32[2,1,32], index: 13, kind: input, shape index: {}]
  %s14 = inlined_call_operand.vmem [shape: f32[2,1,32], index: 14, kind: input, shape index: {}]
  %s15 = inlined_call_operand.vmem [shape: f32[2,1,32], index: 15, kind: input, shape index: {}]
  %s16 = inlined_call_operand.vmem [shape: f32[32,20], index: 16, kind: input, shape index: {}]
  %s17 = inlined_call_operand.vmem [shape: f32[1,20], index: 17, kind: input, shape index: {}]
  %s18 = inlined_call_operand.hbm [shape: f32[32,20], index: 18, kind: output, shape index: {}]
  %s19 = sld [smem:[#allocation0]]
  $region82: #{transformer_regressor_forward.1} parent=0
    _
  %s21 = ssub.s32 1, %s19
  %s22 = scalar_select 0, %s21, %s19
  $region1: #{transformer_regressor_forward.1} parent=0
    #allocation2 [shape = 'u8[16384]{0}', space=vmem, size = 0x4000, scoped, tag = 'output window, operand 0, single buffered']
    #allocation3 [shape = 's32[1]{0}', space=sflag, size = 0x4, scoped, tag = 'scoped memory for transformer_regressor_forward.1']
    %23 = vsyncpa [#allocation3], 0
    // Predicated region
    $region2: #{transformer_regressor_forward.1} parent=1 // pred_check
      _
    $region3: #{transformer_regressor_forward.1} parent=1 // pred_check_branch
      %25 = sbr.rel (0) target = $region5
    $region4: #{transformer_regressor_forward.1} parent=1 // pred_region
      _
    $region5: #{transformer_regressor_forward.1} parent=1 // pred_fallthru
      _
    // Predicated region
    $region6: #{transformer_regressor_forward.1} parent=1 // pred_check
      _
    $region7: #{transformer_regressor_forward.1} parent=1 // pred_check_branch
      %27 = sbr.rel (0) target = $region9
    $region8: #{transformer_regressor_forward.1} parent=1 // pred_region
      _
    $region9: #{transformer_regressor_forward.1} parent=1 // pred_fallthru
      _
    // Predicated region
    $region10: #{transformer_regressor_forward.1} parent=1 // pred_check
      _
    $region11: #{transformer_regressor_forward.1} parent=1 // pred_check_branch
      %29 = sbr.rel (0) target = $region13
    $region12: #{transformer_regressor_forward.1} parent=1 // pred_region
      _
    $region13: #{transformer_regressor_forward.1} parent=1 // pred_fallthru
      _
    // Predicated region
    $region14: #{transformer_regressor_forward.1} parent=1 // pred_check
      _
    $region15: #{transformer_regressor_forward.1} parent=1 // pred_check_branch
      %31 = sbr.rel (0) target = $region17
    $region16: #{transformer_regressor_forward.1} parent=1 // pred_region
      _
    $region17: #{transformer_regressor_forward.1} parent=1 // pred_fallthru
      _
    // Predicated region
    $region18: #{transformer_regressor_forward.1} parent=1 // pred_check
      _
    $region19: #{transformer_regressor_forward.1} parent=1 // pred_check_branch
      %33 = sbr.rel (0) target = $region21
    $region20: #{transformer_regressor_forward.1} parent=1 // pred_region
      _
    $region21: #{transformer_regressor_forward.1} parent=1 // pred_fallthru
      _
    // Predicated region
    $region22: #{transformer_regressor_forward.1} parent=1 // pred_check
      _
    $region23: #{transformer_regressor_forward.1} parent=1 // pred_check_branch
      %35 = sbr.rel (0) target = $region25
    $region24: #{transformer_regressor_forward.1} parent=1 // pred_region
      _
    $region25: #{transformer_regressor_forward.1} parent=1 // pred_fallthru
      _
    // Predicated region
    $region26: #{transformer_regressor_forward.1} parent=1 // pred_check
      _
    $region27: #{transformer_regressor_forward.1} parent=1 // pred_check_branch
      %37 = sbr.rel (0) target = $region29
    $region28: #{transformer_regressor_forward.1} parent=1 // pred_region
      _
    $region29: #{transformer_regressor_forward.1} parent=1 // pred_fallthru
      _
    // Predicated region
    $region30: #{transformer_regressor_forward.1} parent=1 // pred_check
      _
    $region31: #{transformer_regressor_forward.1} parent=1 // pred_check_branch
      %39 = sbr.rel (0) target = $region33
    $region32: #{transformer_regressor_forward.1} parent=1 // pred_region
      _
    $region33: #{transformer_regressor_forward.1} parent=1 // pred_fallthru
      _
    // Predicated region
    $region34: #{transformer_regressor_forward.1} parent=1 // pred_check
      _
    $region35: #{transformer_regressor_forward.1} parent=1 // pred_check_branch
      %41 = sbr.rel (0) target = $region37
    $region36: #{transformer_regressor_forward.1} parent=1 // pred_region
      _
    $region37: #{transformer_regressor_forward.1} parent=1 // pred_fallthru
      _
    // Predicated region
    $region38: #{transformer_regressor_forward.1} parent=1 // pred_check
      _
    $region39: #{transformer_regressor_forward.1} parent=1 // pred_check_branch
      %43 = sbr.rel (0) target = $region41
    $region40: #{transformer_regressor_forward.1} parent=1 // pred_region
      _
    $region41: #{transformer_regressor_forward.1} parent=1 // pred_fallthru
      _
    // Predicated region
    $region42: #{transformer_regressor_forward.1} parent=1 // pred_check
      _
    $region43: #{transformer_regressor_forward.1} parent=1 // pred_check_branch
      %45 = sbr.rel (0) target = $region45
    $region44: #{transformer_regressor_forward.1} parent=1 // pred_region
      _
    $region45: #{transformer_regressor_forward.1} parent=1 // pred_fallthru
      _
    // Predicated region
    $region46: #{transformer_regressor_forward.1} parent=1 // pred_check
      _
    $region47: #{transformer_regressor_forward.1} parent=1 // pred_check_branch
      %47 = sbr.rel (0) target = $region49
    $region48: #{transformer_regressor_forward.1} parent=1 // pred_region
      _
    $region49: #{transformer_regressor_forward.1} parent=1 // pred_fallthru
      _
    // Predicated region
    $region50: #{transformer_regressor_forward.1} parent=1 // pred_check
      _
    $region51: #{transformer_regressor_forward.1} parent=1 // pred_check_branch
      %49 = sbr.rel (0) target = $region53
    $region52: #{transformer_regressor_forward.1} parent=1 // pred_region
      _
    $region53: #{transformer_regressor_forward.1} parent=1 // pred_fallthru
      _
    // Predicated region
    $region54: #{transformer_regressor_forward.1} parent=1 // pred_check
      _
    $region55: #{transformer_regressor_forward.1} parent=1 // pred_check_branch
      %51 = sbr.rel (0) target = $region57
    $region56: #{transformer_regressor_forward.1} parent=1 // pred_region
      _
    $region57: #{transformer_regressor_forward.1} parent=1 // pred_fallthru
      _
    // Predicated region
    $region58: #{transformer_regressor_forward.1} parent=1 // pred_check
      _
    $region59: #{transformer_regressor_forward.1} parent=1 // pred_check_branch
      %53 = sbr.rel (0) target = $region61
    $region60: #{transformer_regressor_forward.1} parent=1 // pred_region
      _
    $region61: #{transformer_regressor_forward.1} parent=1 // pred_fallthru
      _
    // Predicated region
    $region62: #{transformer_regressor_forward.1} parent=1 // pred_check
      _
    $region63: #{transformer_regressor_forward.1} parent=1 // pred_check_branch
      %55 = sbr.rel (0) target = $region65
    $region64: #{transformer_regressor_forward.1} parent=1 // pred_region
      _
    $region65: #{transformer_regressor_forward.1} parent=1 // pred_fallthru
      _
    // Predicated region
    $region66: #{transformer_regressor_forward.1} parent=1 // pred_check
      _
    $region67: #{transformer_regressor_forward.1} parent=1 // pred_check_branch
      %57 = sbr.rel (0) target = $region69
    $region68: #{transformer_regressor_forward.1} parent=1 // pred_region
      _
    $region69: #{transformer_regressor_forward.1} parent=1 // pred_fallthru
      _
    // Predicated region
    $region70: #{transformer_regressor_forward.1} parent=1 // pred_check
      _
    $region71: #{transformer_regressor_forward.1} parent=1 // pred_check_branch
      %59 = sbr.rel (0) target = $region73
    $region72: #{transformer_regressor_forward.1} parent=1 // pred_region
      _
    $region73: #{transformer_regressor_forward.1} parent=1 // pred_fallthru
      _
    %v60 = vld [vmem:[%s0] sm:$0xff]
    %v61 = vld [vmem:[%s0 + $0x8] sm:$0xff]
    %v62 = vld [vmem:[%s0 + $0x10] sm:$0xff]
    %v63 = vld [vmem:[%s0 + $0x18] sm:$0xff]
    %v64 = vld [vmem:[%s2] sm:$0x7]
    %v65 = vld [vmem:[%s3] sm:$0x1]
    %v67 = vlaneseq
    %v68 = vshrl.u32 %v67, 7
    %v69 = vsub.s32 0, %v68
    %v70 = vrot.slane %v65, %v69
    %vm72 = vcmask 23552
    %v74 = vsel %vm72, %v60, 0
    %v77 = vsel %vm72, %v61, 0
    %v80 = vsel %vm72, %v62, 0
    %v83 = vsel %vm72, %v63, 0
    %vm85 = vcmask 1042432
    %v87 = vsel %vm85, %v64, 0
    %89 = vmatprep.subr.mxu0 0.0
    %90 = vmatpush1.msra.mxu0 0.0
    %91 = vmatprep.subr.mxu0 0.0
    %92 = vmatpush1.msra.mxu0 0.0
    %93 = vmatprep.subr.mxu0 0.0
    %94 = vmatpush1.msra.mxu0 0.0
    %95 = vmatprep.subr.mxu0 0.0
    %96 = vmatpush1.msra.mxu0 0.0
    %97 = vmatprep.subr.mxu0 0.0
    %98 = vmatpush1.msra.mxu0 0.0
    %99 = vmatprep.subr.mxu0 0.0
    %100 = vmatpush1.msra.mxu0 0.0
    %101 = vmatprep.subr.mxu0 0.0
    %102 = vmatpush1.msra.mxu0 0.0
    %103 = vmatprep.subr.mxu0 0.0
    %104 = vmatpush1.msra.mxu0 0.0
    %105 = vmatprep.subr.mxu0 0.0
    %106 = vmatpush1.msra.mxu0 0.0
    %107 = vmatprep.subr.mxu0 0.0
    %108 = vmatpush1.msra.mxu0 0.0
    %109 = vmatprep.subr.mxu0 0.0
    %110 = vmatpush1.msra.mxu0 0.0
    %111 = vmatprep.subr.mxu0 0.0
    %112 = vmatpush1.msra.mxu0 0.0
    %113 = vmatprep.subr.mxu0 0.0
    %114 = vmatpush1.msra.mxu0 0.0
    %115 = vmatprep.subr.mxu0 0.0
    %116 = vmatpush1.msra.mxu0 0.0
    %117 = vmatprep.subr.mxu0 0.0
    %118 = vmatpush1.msra.mxu0 0.0
    %119 = vmatprep.subr.mxu0 0.0
    %120 = vmatpush1.msra.mxu0 %v87
    %121 = vmatprep.subr.mxu0 0.0
    %122 = vmatpush2.msra.mxu0 0.0
    %123 = vmatprep.subr.mxu0 0.0
    %124 = vmatpush2.msra.mxu0 0.0
    %125 = vmatprep.subr.mxu0 0.0
    %126 = vmatpush2.msra.mxu0 0.0
    %127 = vmatprep.subr.mxu0 0.0
    %128 = vmatpush2.msra.mxu0 0.0
    %129 = vmatprep.subr.mxu0 0.0
    %130 = vmatpush2.msra.mxu0 0.0
    %131 = vmatprep.subr.mxu0 0.0
    %132 = vmatpush2.msra.mxu0 0.0
    %133 = vmatprep.subr.mxu0 0.0
    %134 = vmatpush2.msra.mxu0 0.0
    %135 = vmatprep.subr.mxu0 0.0
    %136 = vmatpush2.msra.mxu0 0.0
    %137 = vmatprep.subr.mxu0 0.0
    %138 = vmatpush2.msra.mxu0 0.0
    %139 = vmatprep.subr.mxu0 0.0
    %140 = vmatpush2.msra.mxu0 0.0
    %141 = vmatprep.subr.mxu0 0.0
    %142 = vmatpush2.msra.mxu0 0.0
    %143 = vmatprep.subr.mxu0 0.0
    %144 = vmatpush2.msra.mxu0 0.0
    %145 = vmatprep.subr.mxu0 0.0
    %146 = vmatpush2.msra.mxu0 0.0
    %147 = vmatprep.subr.mxu0 0.0
    %148 = vmatpush2.msra.mxu0 0.0
    %149 = vmatprep.subr.mxu0 0.0
    %150 = vmatpush2.msra.mxu0 0.0
    %151 = vmatprep.subr.mxu0 0.0
    %152 = vmatpush2.msra.mxu0 0.0
    %153 = vmatprep.mubr.f32.mxu0 0.0
    %154 = vmatmul.mubr.f32.gmra.mxu0 %v74
    %v155 = vpop.f32.mrf.mxu0
    %v156 = vadd.f32 %v70, %v155
    %v157 = vpop.f32.mrf.mxu0
    %158 = vmatprep.mubr.f32.mxu0 0.0
    %159 = vmatmul.mubr.f32.gmra.mxu0 %v77
    %v160 = vpop.f32.mrf.mxu0
    %v161 = vadd.f32 %v70, %v160
    %v162 = vpop.f32.mrf.mxu0
    %163 = vmatprep.mubr.f32.mxu0 0.0
    %164 = vmatmul.mubr.f32.gmra.mxu0 %v80
    %v165 = vpop.f32.mrf.mxu0
    %v166 = vadd.f32 %v70, %v165
    %v167 = vpop.f32.mrf.mxu0
    %168 = vmatprep.mubr.f32.mxu0 0.0
    %169 = vmatmul.mubr.f32.gmra.mxu0 %v83
    %v170 = vpop.f32.mrf.mxu0
    %v171 = vadd.f32 %v70, %v170
    %v172 = vpop.f32.mrf.mxu0
    %173 = vdwg.mxu0
    %v174 = vld [vmem:[%s1] sm:$0x1]
    %v175 = vld [vmem:[%s1 + $0x1] sm:$0x1]
    %v176 = vld [vmem:[%s4] sm:$0xff]
    %v177 = vld [vmem:[%s4 + $0x8] sm:$0xff]
    %v178 = vld [vmem:[%s4 + $0x10] sm:$0xff]
    %v179 = vld [vmem:[%s4 + $0x18] sm:$0xff]
    %v180 = vld [vmem:[%s5] sm:$0x1]
    %v182 = vlaneseq
    %v183 = vshrl.u32 %v182, 7
    %v184 = vsub.s32 0, %v183
    %v185 = vrot.slane %v180, %v184
    %vm187 = vcmask 261120
    %v189 = vsel %vm187, %v156, 0
    %v192 = vsel %vm187, %v161, 0
    %v195 = vsel %vm187, %v166, 0
    %v198 = vsel %vm187, %v171, 0
    %200 = vmatprep.subr.mxu0 0.0
    %201 = vmatpush1.msra.mxu0 0.0
    %202 = vmatprep.subr.mxu0 0.0
    %203 = vmatpush1.msra.mxu0 0.0
    %204 = vmatprep.subr.mxu0 0.0
    %205 = vmatpush1.msra.mxu0 0.0
    %206 = vmatprep.subr.mxu0 0.0
    %207 = vmatpush1.msra.mxu0 0.0
    %208 = vmatprep.subr.mxu0 0.0
    %209 = vmatpush1.msra.mxu0 0.0
    %210 = vmatprep.subr.mxu0 0.0
    %211 = vmatpush1.msra.mxu0 0.0
    %212 = vmatprep.subr.mxu0 0.0
    %213 = vmatpush1.msra.mxu0 0.0
    %214 = vmatprep.subr.mxu0 0.0
    %215 = vmatpush1.msra.mxu0 0.0
    %216 = vmatprep.subr.mxu0 0.0
    %217 = vmatpush1.msra.mxu0 0.0
    %218 = vmatprep.subr.mxu0 0.0
    %219 = vmatpush1.msra.mxu0 0.0
    %220 = vmatprep.subr.mxu0 0.0
    %221 = vmatpush1.msra.mxu0 0.0
    %222 = vmatprep.subr.mxu0 0.0
    %223 = vmatpush1.msra.mxu0 0.0
    %224 = vmatprep.subr.mxu0 0.0
    %225 = vmatpush1.msra.mxu0 %v179
    %226 = vmatprep.subr.mxu0 0.0
    %227 = vmatpush1.msra.mxu0 %v178
    %228 = vmatprep.subr.mxu0 0.0
    %229 = vmatpush1.msra.mxu0 %v177
    %230 = vmatprep.subr.mxu0 0.0
    %231 = vmatpush1.msra.mxu0 %v176
    %232 = vmatprep.subr.mxu0 0.0
    %233 = vmatpush2.msra.mxu0 0.0
    %234 = vmatprep.subr.mxu0 0.0
    %235 = vmatpush2.msra.mxu0 0.0
    %236 = vmatprep.subr.mxu0 0.0
    %237 = vmatpush2.msra.mxu0 0.0
    %238 = vmatprep.subr.mxu0 0.0
    %239 = vmatpush2.msra.mxu0 0.0
    %240 = vmatprep.subr.mxu0 0.0
    %241 = vmatpush2.msra.mxu0 0.0
    %242 = vmatprep.subr.mxu0 0.0
    %243 = vmatpush2.msra.mxu0 0.0
    %244 = vmatprep.subr.mxu0 0.0
    %245 = vmatpush2.msra.mxu0 0.0
    %246 = vmatprep.subr.mxu0 0.0
    %247 = vmatpush2.msra.mxu0 0.0
    %248 = vmatprep.subr.mxu0 0.0
    %249 = vmatpush2.msra.mxu0 0.0
    %250 = vmatprep.subr.mxu0 0.0
    %251 = vmatpush2.msra.mxu0 0.0
    %252 = vmatprep.subr.mxu0 0.0
    %253 = vmatpush2.msra.mxu0 0.0
    %254 = vmatprep.subr.mxu0 0.0
    %255 = vmatpush2.msra.mxu0 0.0
    %256 = vmatprep.subr.mxu0 0.0
    %257 = vmatpush2.msra.mxu0 0.0
    %258 = vmatprep.subr.mxu0 0.0
    %259 = vmatpush2.msra.mxu0 0.0
    %260 = vmatprep.subr.mxu0 0.0
    %261 = vmatpush2.msra.mxu0 0.0
    %262 = vmatprep.subr.mxu0 0.0
    %263 = vmatpush2.msra.mxu0 0.0
    %264 = vmatprep.mubr.f32.mxu0 0.0
    %265 = vmatmul.mubr.f32.gmra.mxu0 %v189
    %v266 = vpop.f32.mrf.mxu0
    %v267 = vadd.f32 %v185, %v266
    %v268 = vpop.f32.mrf.mxu0
    %269 = vmatprep.mubr.f32.mxu0 0.0
    %270 = vmatmul.mubr.f32.gmra.mxu0 %v192
    %v271 = vpop.f32.mrf.mxu0
    %v272 = vadd.f32 %v185, %v271
    %v273 = vpop.f32.mrf.mxu0
    %274 = vmatprep.mubr.f32.mxu0 0.0
    %275 = vmatmul.mubr.f32.gmra.mxu0 %v195
    %v276 = vpop.f32.mrf.mxu0
    %v277 = vadd.f32 %v185, %v276
    %v278 = vpop.f32.mrf.mxu0
    %279 = vmatprep.mubr.f32.mxu0 0.0
    %280 = vmatmul.mubr.f32.gmra.mxu0 %v198
    %v281 = vpop.f32.mrf.mxu0
    %v282 = vadd.f32 %v185, %v281
    %v283 = vpop.f32.mrf.mxu0
    %284 = vdwg.mxu0
    %v285 = vld [vmem:[%s6] sm:$0xff]
    %v286 = vld [vmem:[%s6 + $0x8] sm:$0xff]
    %v287 = vld [vmem:[%s6 + $0x10] sm:$0xff]
    %v288 = vld [vmem:[%s6 + $0x18] sm:$0xff]
    %291 = vrot.lane.b32.xlu0 %v267, 96
    %v292 = vpop.permute.xlu0 %291
    %293 = vrot.lane.b32.xlu0 %v272, 96
    %v294 = vpop.permute.xlu0 %293
    %vm295 = vcmask 64512
    %v296 = vsel %vm295, %v267, 0
    %v298 = vsel %vm295, %v272, 0
    %v300 = vsel %vm295, %v292, 0
    %v302 = vsel %vm295, %v294, 0
    %304 = vmatprep.subr.mxu0 0.0
    %305 = vmatpush1.xpose.msra.mxu0 0.0
    %306 = vmatprep.subr.mxu0 0.0
    %307 = vmatpush1.xpose.msra.mxu0 0.0
    %308 = vmatprep.subr.mxu0 0.0
    %309 = vmatpush1.xpose.msra.mxu0 0.0
    %310 = vmatprep.subr.mxu0 0.0
    %311 = vmatpush1.xpose.msra.mxu0 0.0
    %312 = vmatprep.subr.mxu0 0.0
    %313 = vmatpush1.xpose.msra.mxu0 0.0
    %314 = vmatprep.subr.mxu0 0.0
    %315 = vmatpush1.xpose.msra.mxu0 0.0
    %316 = vmatprep.subr.mxu0 0.0
    %317 = vmatpush1.xpose.msra.mxu0 0.0
    %318 = vmatprep.subr.mxu0 0.0
    %319 = vmatpush1.xpose.msra.mxu0 0.0
    %320 = vmatprep.subr.mxu0 0.0
    %321 = vmatpush1.xpose.msra.mxu0 0.0
    %322 = vmatprep.subr.mxu0 0.0
    %323 = vmatpush1.xpose.msra.mxu0 0.0
    %324 = vmatprep.subr.mxu0 0.0
    %325 = vmatpush1.xpose.msra.mxu0 0.0
    %326 = vmatprep.subr.mxu0 0.0
    %327 = vmatpush1.xpose.msra.mxu0 0.0
    %328 = vmatprep.subr.mxu0 0.0
    %329 = vmatpush1.xpose.msra.mxu0 0.0
    %330 = vmatprep.subr.mxu0 0.0
    %331 = vmatpush1.xpose.msra.mxu0 0.0
    %332 = vmatprep.subr.mxu0 0.0
    %333 = vmatpush1.xpose.msra.mxu0 %v302
    %334 = vmatprep.subr.mxu0 0.0
    %335 = vmatpush1.xpose.msra.mxu0 %v300
    %336 = vmatprep.subr.mxu0 0.0
    %337 = vmatpush2.xpose.msra.mxu0 0.0
    %338 = vmatprep.subr.mxu0 0.0
    %339 = vmatpush2.xpose.msra.mxu0 0.0
    %340 = vmatprep.subr.mxu0 0.0
    %341 = vmatpush2.xpose.msra.mxu0 0.0
    %342 = vmatprep.subr.mxu0 0.0
    %343 = vmatpush2.xpose.msra.mxu0 0.0
    %344 = vmatprep.subr.mxu0 0.0
    %345 = vmatpush2.xpose.msra.mxu0 0.0
    %346 = vmatprep.subr.mxu0 0.0
    %347 = vmatpush2.xpose.msra.mxu0 0.0
    %348 = vmatprep.subr.mxu0 0.0
    %349 = vmatpush2.xpose.msra.mxu0 0.0
    %350 = vmatprep.subr.mxu0 0.0
    %351 = vmatpush2.xpose.msra.mxu0 0.0
    %352 = vmatprep.subr.mxu0 0.0
    %353 = vmatpush2.xpose.msra.mxu0 0.0
    %354 = vmatprep.subr.mxu0 0.0
    %355 = vmatpush2.xpose.msra.mxu0 0.0
    %356 = vmatprep.subr.mxu0 0.0
    %357 = vmatpush2.xpose.msra.mxu0 0.0
    %358 = vmatprep.subr.mxu0 0.0
    %359 = vmatpush2.xpose.msra.mxu0 0.0
    %360 = vmatprep.subr.mxu0 0.0
    %361 = vmatpush2.xpose.msra.mxu0 0.0
    %362 = vmatprep.subr.mxu0 0.0
    %363 = vmatpush2.xpose.msra.mxu0 0.0
    %364 = vmatprep.subr.mxu0 0.0
    %365 = vmatpush2.xpose.msra.mxu0 0.0
    %366 = vmatprep.subr.mxu0 0.0
    %367 = vmatpush2.xpose.msra.mxu0 0.0
    %368 = vmatprep.mubr.f32.mxu0 0.0
    %369 = vmatmul.mubr.f32.gmra.mxu0 %v296
    %v370 = vpop.f32.mrf.mxu0
    %v371 = vadd.f32 0.0, %v370
    %v372 = vpop.f32.mrf.mxu0
    %373 = vmatprep.mubr.f32.mxu0 0.0
    %374 = vmatmul.mubr.f32.gmra.mxu0 %v298
    %v375 = vpop.f32.mrf.mxu0
    %v376 = vadd.f32 0.0, %v375
    %v377 = vpop.f32.mrf.mxu0
    %378 = vdwg.mxu0
    %381 = vrot.lane.b32.xlu0 %v277, 96
    %v382 = vpop.permute.xlu0 %381
    %383 = vrot.lane.b32.xlu0 %v282, 96
    %v384 = vpop.permute.xlu0 %383
    %v385 = vsel %vm295, %v277, 0
    %v387 = vsel %vm295, %v282, 0
    %v389 = vsel %vm295, %v382, 0
    %v391 = vsel %vm295, %v384, 0
    %393 = vmatprep.subr.mxu0 0.0
    %394 = vmatpush1.xpose.msra.mxu0 0.0
    %395 = vmatprep.subr.mxu0 0.0
    %396 = vmatpush1.xpose.msra.mxu0 0.0
    %397 = vmatprep.subr.mxu0 0.0
    %398 = vmatpush1.xpose.msra.mxu0 0.0
    %399 = vmatprep.subr.mxu0 0.0
    %400 = vmatpush1.xpose.msra.mxu0 0.0
    %401 = vmatprep.subr.mxu0 0.0
    %402 = vmatpush1.xpose.msra.mxu0 0.0
    %403 = vmatprep.subr.mxu0 0.0
    %404 = vmatpush1.xpose.msra.mxu0 0.0
    %405 = vmatprep.subr.mxu0 0.0
    %406 = vmatpush1.xpose.msra.mxu0 0.0
    %407 = vmatprep.subr.mxu0 0.0
    %408 = vmatpush1.xpose.msra.mxu0 0.0
    %409 = vmatprep.subr.mxu0 0.0
    %410 = vmatpush1.xpose.msra.mxu0 0.0
    %411 = vmatprep.subr.mxu0 0.0
    %412 = vmatpush1.xpose.msra.mxu0 0.0
    %413 = vmatprep.subr.mxu0 0.0
    %414 = vmatpush1.xpose.msra.mxu0 0.0
    %415 = vmatprep.subr.mxu0 0.0
    %416 = vmatpush1.xpose.msra.mxu0 0.0
    %417 = vmatprep.subr.mxu0 0.0
    %418 = vmatpush1.xpose.msra.mxu0 0.0
    %419 = vmatprep.subr.mxu0 0.0
    %420 = vmatpush1.xpose.msra.mxu0 0.0
    %421 = vmatprep.subr.mxu0 0.0
    %422 = vmatpush1.xpose.msra.mxu0 %v391
    %423 = vmatprep.subr.mxu0 0.0
    %424 = vmatpush1.xpose.msra.mxu0 %v389
    %425 = vmatprep.subr.mxu0 0.0
    %426 = vmatpush2.xpose.msra.mxu0 0.0
    %427 = vmatprep.subr.mxu0 0.0
    %428 = vmatpush2.xpose.msra.mxu0 0.0
    %429 = vmatprep.subr.mxu0 0.0
    %430 = vmatpush2.xpose.msra.mxu0 0.0
    %431 = vmatprep.subr.mxu0 0.0
    %432 = vmatpush2.xpose.msra.mxu0 0.0
    %433 = vmatprep.subr.mxu0 0.0
    %434 = vmatpush2.xpose.msra.mxu0 0.0
    %435 = vmatprep.subr.mxu0 0.0
    %436 = vmatpush2.xpose.msra.mxu0 0.0
    %437 = vmatprep.subr.mxu0 0.0
    %438 = vmatpush2.xpose.msra.mxu0 0.0
    %439 = vmatprep.subr.mxu0 0.0
    %440 = vmatpush2.xpose.msra.mxu0 0.0
    %441 = vmatprep.subr.mxu0 0.0
    %442 = vmatpush2.xpose.msra.mxu0 0.0
    %443 = vmatprep.subr.mxu0 0.0
    %444 = vmatpush2.xpose.msra.mxu0 0.0
    %445 = vmatprep.subr.mxu0 0.0
    %446 = vmatpush2.xpose.msra.mxu0 0.0
    %447 = vmatprep.subr.mxu0 0.0
    %448 = vmatpush2.xpose.msra.mxu0 0.0
    %449 = vmatprep.subr.mxu0 0.0
    %450 = vmatpush2.xpose.msra.mxu0 0.0
    %451 = vmatprep.subr.mxu0 0.0
    %452 = vmatpush2.xpose.msra.mxu0 0.0
    %453 = vmatprep.subr.mxu0 0.0
    %454 = vmatpush2.xpose.msra.mxu0 0.0
    %455 = vmatprep.subr.mxu0 0.0
    %456 = vmatpush2.xpose.msra.mxu0 0.0
    %457 = vmatprep.mubr.f32.mxu0 0.0
    %458 = vmatmul.mubr.f32.gmra.mxu0 %v385
    %v459 = vpop.f32.mrf.mxu0
    %v460 = vadd.f32 0.0, %v459
    %v461 = vpop.f32.mrf.mxu0
    %462 = vmatprep.mubr.f32.mxu0 0.0
    %463 = vmatmul.mubr.f32.gmra.mxu0 %v387
    %v464 = vpop.f32.mrf.mxu0
    %v465 = vadd.f32 0.0, %v464
    %v466 = vpop.f32.mrf.mxu0
    %467 = vdwg.mxu0
    %v468 = vmul.f32 %v371, 0.35355338
    %v469 = vmul.f32 %v376, 0.35355338
    %v470 = vmul.f32 %v460, 0.35355338
    %v471 = vmul.f32 %v465, 0.35355338
    %v474 = vlaneseq
    %v475 = vshrl.u32 %v474, 7
    %v476 = vsub.s32 0, %v475
    %v477 = vrot.slane %v174, %v476
    %v478 = vlaneseq
    %v479 = vshrl.u32 %v478, 7
    %v480 = vsub.s32 0, %v479
    %v481 = vrot.slane %v175, %v480
    %v484 = vadd.f32 %v468, %v477
    %v485 = vadd.f32 %v469, %v477
    %v486 = vadd.f32 %v470, %v481
    %v487 = vadd.f32 %v471, %v481
    %vm488 = vcmask 130048
    %v489 = vsel %vm488, %v484, -inf
    %490 = vmax.xlane.f32.xlu0 %v489
    %v491 = vpop.xlane.xlu0 %490
    %v492 = vsel %vm488, %v485, -inf
    %493 = vmax.xlane.f32.xlu0 %v492
    %v494 = vpop.xlane.xlu0 %493
    %v495 = vsel %vm488, %v486, -inf
    %496 = vmax.xlane.f32.xlu0 %v495
    %v497 = vpop.xlane.xlu0 %496
    %v498 = vsel %vm488, %v487, -inf
    %499 = vmax.xlane.f32.xlu0 %v498
    %v500 = vpop.xlane.xlu0 %499
    %v501 = vsub.f32 %v484, %v491
    %v502 = vsub.f32 %v485, %v494
    %v503 = vsub.f32 %v486, %v497
    %v504 = vsub.f32 %v487, %v500
    %v505 = vmul.f32 %v501, 1.442695
    %v506 = vpow.pop %v505
    %v507 = vmul.f32 %v502, 1.442695
    %v508 = vpow.pop %v507
    %v509 = vmul.f32 %v503, 1.442695
    %v510 = vpow.pop %v509
    %v511 = vmul.f32 %v504, 1.442695
    %v512 = vpow.pop %v511
    %v513 = vsel %vm488, %v506, 0.0
    %514 = vadd.xlane.f32.xlu0 %v513
    %v515 = vpop.xlane.xlu0 %514
    %v516 = vsel %vm488, %v508, 0.0
    %517 = vadd.xlane.f32.xlu0 %v516
    %v518 = vpop.xlane.xlu0 %517
    %v519 = vsel %vm488, %v510, 0.0
    %520 = vadd.xlane.f32.xlu0 %v519
    %v521 = vpop.xlane.xlu0 %520
    %v522 = vsel %vm488, %v512, 0.0
    %523 = vadd.xlane.f32.xlu0 %v522
    %v524 = vpop.xlane.xlu0 %523
    %v525 = vrcp.pop %v515
    %v526 = vrcp.pop %v518
    %v527 = vrcp.pop %v521
    %v528 = vrcp.pop %v524
    %v529 = vmul.f32 %v506, %v525
    %v530 = vmul.f32 %v508, %v526
    %v531 = vmul.f32 %v510, %v527
    %v532 = vmul.f32 %v512, %v528
    %533 = vrot.lane.b32.xlu0 %v267, 64
    %v534 = vpop.permute.xlu0 %533
    %535 = vrot.lane.b32.xlu0 %v272, 64
    %v536 = vpop.permute.xlu0 %535
    %v540 = vsel %vm488, %v529, 0
    %v543 = vsel %vm488, %v530, 0
    %545 = vmatprep.subr.mxu0 0.0
    %546 = vmatpush1.msra.mxu0 0.0
    %547 = vmatprep.subr.mxu0 0.0
    %548 = vmatpush1.msra.mxu0 0.0
    %549 = vmatprep.subr.mxu0 0.0
    %550 = vmatpush1.msra.mxu0 0.0
    %551 = vmatprep.subr.mxu0 0.0
    %552 = vmatpush1.msra.mxu0 0.0
    %553 = vmatprep.subr.mxu0 0.0
    %554 = vmatpush1.msra.mxu0 0.0
    %555 = vmatprep.subr.mxu0 0.0
    %556 = vmatpush1.msra.mxu0 0.0
    %557 = vmatprep.subr.mxu0 0.0
    %558 = vmatpush1.msra.mxu0 0.0
    %559 = vmatprep.subr.mxu0 0.0
    %560 = vmatpush1.msra.mxu0 0.0
    %561 = vmatprep.subr.mxu0 0.0
    %562 = vmatpush1.msra.mxu0 0.0
    %563 = vmatprep.subr.mxu0 0.0
    %564 = vmatpush1.msra.mxu0 0.0
    %565 = vmatprep.subr.mxu0 0.0
    %566 = vmatpush1.msra.mxu0 0.0
    %567 = vmatprep.subr.mxu0 0.0
    %568 = vmatpush1.msra.mxu0 0.0
    %569 = vmatprep.subr.mxu0 0.0
    %570 = vmatpush1.msra.mxu0 0.0
    %571 = vmatprep.subr.mxu0 0.0
    %572 = vmatpush1.msra.mxu0 0.0
    %573 = vmatprep.subr.mxu0 0.0
    %574 = vmatpush1.msra.mxu0 %v536
    %575 = vmatprep.subr.mxu0 0.0
    %576 = vmatpush1.msra.mxu0 %v534
    %577 = vmatprep.subr.mxu0 0.0
    %578 = vmatpush2.msra.mxu0 0.0
    %579 = vmatprep.subr.mxu0 0.0
    %580 = vmatpush2.msra.mxu0 0.0
    %581 = vmatprep.subr.mxu0 0.0
    %582 = vmatpush2.msra.mxu0 0.0
    %583 = vmatprep.subr.mxu0 0.0
    %584 = vmatpush2.msra.mxu0 0.0
    %585 = vmatprep.subr.mxu0 0.0
    %586 = vmatpush2.msra.mxu0 0.0
    %587 = vmatprep.subr.mxu0 0.0
    %588 = vmatpush2.msra.mxu0 0.0
    %589 = vmatprep.subr.mxu0 0.0
    %590 = vmatpush2.msra.mxu0 0.0
    %591 = vmatprep.subr.mxu0 0.0
    %592 = vmatpush2.msra.mxu0 0.0
    %593 = vmatprep.subr.mxu0 0.0
    %594 = vmatpush2.msra.mxu0 0.0
    %595 = vmatprep.subr.mxu0 0.0
    %596 = vmatpush2.msra.mxu0 0.0
    %597 = vmatprep.subr.mxu0 0.0
    %598 = vmatpush2.msra.mxu0 0.0
    %599 = vmatprep.subr.mxu0 0.0
    %600 = vmatpush2.msra.mxu0 0.0
    %601 = vmatprep.subr.mxu0 0.0
    %602 = vmatpush2.msra.mxu0 0.0
    %603 = vmatprep.subr.mxu0 0.0
    %604 = vmatpush2.msra.mxu0 0.0
    %605 = vmatprep.subr.mxu0 0.0
    %606 = vmatpush2.msra.mxu0 0.0
    %607 = vmatprep.subr.mxu0 0.0
    %608 = vmatpush2.msra.mxu0 0.0
    %609 = vmatprep.mubr.f32.mxu0 0.0
    %610 = vmatmul.mubr.f32.gmra.mxu0 %v540
    %v611 = vpop.f32.mrf.mxu0
    %v612 = vadd.f32 0.0, %v611
    %v613 = vpop.f32.mrf.mxu0
    %614 = vmatprep.mubr.f32.mxu0 0.0
    %615 = vmatmul.mubr.f32.gmra.mxu0 %v543
    %v616 = vpop.f32.mrf.mxu0
    %v617 = vadd.f32 0.0, %v616
    %v618 = vpop.f32.mrf.mxu0
    %619 = vdwg.mxu0
    %620 = vrot.lane.b32.xlu0 %v277, 64
    %v621 = vpop.permute.xlu0 %620
    %622 = vrot.lane.b32.xlu0 %v282, 64
    %v623 = vpop.permute.xlu0 %622
    %v627 = vsel %vm488, %v531, 0
    %v630 = vsel %vm488, %v532, 0
    %632 = vmatprep.subr.mxu0 0.0
    %633 = vmatpush1.msra.mxu0 0.0
    %634 = vmatprep.subr.mxu0 0.0
    %635 = vmatpush1.msra.mxu0 0.0
    %636 = vmatprep.subr.mxu0 0.0
    %637 = vmatpush1.msra.mxu0 0.0
    %638 = vmatprep.subr.mxu0 0.0
    %639 = vmatpush1.msra.mxu0 0.0
    %640 = vmatprep.subr.mxu0 0.0
    %641 = vmatpush1.msra.mxu0 0.0
    %642 = vmatprep.subr.mxu0 0.0
    %643 = vmatpush1.msra.mxu0 0.0
    %644 = vmatprep.subr.mxu0 0.0
    %645 = vmatpush1.msra.mxu0 0.0
    %646 = vmatprep.subr.mxu0 0.0
    %647 = vmatpush1.msra.mxu0 0.0
    %648 = vmatprep.subr.mxu0 0.0
    %649 = vmatpush1.msra.mxu0 0.0
    %650 = vmatprep.subr.mxu0 0.0
    %651 = vmatpush1.msra.mxu0 0.0
    %652 = vmatprep.subr.mxu0 0.0
    %653 = vmatpush1.msra.mxu0 0.0
    %654 = vmatprep.subr.mxu0 0.0
    %655 = vmatpush1.msra.mxu0 0.0
    %656 = vmatprep.subr.mxu0 0.0
    %657 = vmatpush1.msra.mxu0 0.0
    %658 = vmatprep.subr.mxu0 0.0
    %659 = vmatpush1.msra.mxu0 0.0
    %660 = vmatprep.subr.mxu0 0.0
    %661 = vmatpush1.msra.mxu0 %v623
    %662 = vmatprep.subr.mxu0 0.0
    %663 = vmatpush1.msra.mxu0 %v621
    %664 = vmatprep.subr.mxu0 0.0
    %665 = vmatpush2.msra.mxu0 0.0
    %666 = vmatprep.subr.mxu0 0.0
    %667 = vmatpush2.msra.mxu0 0.0
    %668 = vmatprep.subr.mxu0 0.0
    %669 = vmatpush2.msra.mxu0 0.0
    %670 = vmatprep.subr.mxu0 0.0
    %671 = vmatpush2.msra.mxu0 0.0
    %672 = vmatprep.subr.mxu0 0.0
    %673 = vmatpush2.msra.mxu0 0.0
    %674 = vmatprep.subr.mxu0 0.0
    %675 = vmatpush2.msra.mxu0 0.0
    %676 = vmatprep.subr.mxu0 0.0
    %677 = vmatpush2.msra.mxu0 0.0
    %678 = vmatprep.subr.mxu0 0.0
    %679 = vmatpush2.msra.mxu0 0.0
    %680 = vmatprep.subr.mxu0 0.0
    %681 = vmatpush2.msra.mxu0 0.0
    %682 = vmatprep.subr.mxu0 0.0
    %683 = vmatpush2.msra.mxu0 0.0
    %684 = vmatprep.subr.mxu0 0.0
    %685 = vmatpush2.msra.mxu0 0.0
    %686 = vmatprep.subr.mxu0 0.0
    %687 = vmatpush2.msra.mxu0 0.0
    %688 = vmatprep.subr.mxu0 0.0
    %689 = vmatpush2.msra.mxu0 0.0
    %690 = vmatprep.subr.mxu0 0.0
    %691 = vmatpush2.msra.mxu0 0.0
    %692 = vmatprep.subr.mxu0 0.0
    %693 = vmatpush2.msra.mxu0 0.0
    %694 = vmatprep.subr.mxu0 0.0
    %695 = vmatpush2.msra.mxu0 0.0
    %696 = vmatprep.mubr.f32.mxu0 0.0
    %697 = vmatmul.mubr.f32.gmra.mxu0 %v627
    %v698 = vpop.f32.mrf.mxu0
    %v699 = vadd.f32 0.0, %v698
    %v700 = vpop.f32.mrf.mxu0
    %701 = vmatprep.mubr.f32.mxu0 0.0
    %702 = vmatmul.mubr.f32.gmra.mxu0 %v630
    %v703 = vpop.f32.mrf.mxu0
    %v704 = vadd.f32 0.0, %v703
    %v705 = vpop.f32.mrf.mxu0
    %706 = vdwg.mxu0
    %707 = vrot.lane.b32.xlu0 %v267, 120
    %v708 = vpop.permute.xlu0 %707
    %709 = vrot.lane.b32.xlu0 %v272, 120
    %v710 = vpop.permute.xlu0 %709
    %711 = vrot.lane.b32.xlu0 %v267, 88
    %v712 = vpop.permute.xlu0 %711
    %713 = vrot.lane.b32.xlu0 %v272, 88
    %v714 = vpop.permute.xlu0 %713
    %v715 = vsel %vm295, %v708, 0
    %v717 = vsel %vm295, %v710, 0
    %v719 = vsel %vm295, %v712, 0
    %v721 = vsel %vm295, %v714, 0
    %723 = vmatprep.subr.mxu0 0.0
    %724 = vmatpush1.xpose.msra.mxu0 0.0
    %725 = vmatprep.subr.mxu0 0.0
    %726 = vmatpush1.xpose.msra.mxu0 0.0
    %727 = vmatprep.subr.mxu0 0.0
    %728 = vmatpush1.xpose.msra.mxu0 0.0
    %729 = vmatprep.subr.mxu0 0.0
    %730 = vmatpush1.xpose.msra.mxu0 0.0
    %731 = vmatprep.subr.mxu0 0.0
    %732 = vmatpush1.xpose.msra.mxu0 0.0
    %733 = vmatprep.subr.mxu0 0.0
    %734 = vmatpush1.xpose.msra.mxu0 0.0
    %735 = vmatprep.subr.mxu0 0.0
    %736 = vmatpush1.xpose.msra.mxu0 0.0
    %737 = vmatprep.subr.mxu0 0.0
    %738 = vmatpush1.xpose.msra.mxu0 0.0
    %739 = vmatprep.subr.mxu0 0.0
    %740 = vmatpush1.xpose.msra.mxu0 0.0
    %741 = vmatprep.subr.mxu0 0.0
    %742 = vmatpush1.xpose.msra.mxu0 0.0
    %743 = vmatprep.subr.mxu0 0.0
    %744 = vmatpush1.xpose.msra.mxu0 0.0
    %745 = vmatprep.subr.mxu0 0.0
    %746 = vmatpush1.xpose.msra.mxu0 0.0
    %747 = vmatprep.subr.mxu0 0.0
    %748 = vmatpush1.xpose.msra.mxu0 0.0
    %749 = vmatprep.subr.mxu0 0.0
    %750 = vmatpush1.xpose.msra.mxu0 0.0
    %751 = vmatprep.subr.mxu0 0.0
    %752 = vmatpush1.xpose.msra.mxu0 %v721
    %753 = vmatprep.subr.mxu0 0.0
    %754 = vmatpush1.xpose.msra.mxu0 %v719
    %755 = vmatprep.subr.mxu0 0.0
    %756 = vmatpush2.xpose.msra.mxu0 0.0
    %757 = vmatprep.subr.mxu0 0.0
    %758 = vmatpush2.xpose.msra.mxu0 0.0
    %759 = vmatprep.subr.mxu0 0.0
    %760 = vmatpush2.xpose.msra.mxu0 0.0
    %761 = vmatprep.subr.mxu0 0.0
    %762 = vmatpush2.xpose.msra.mxu0 0.0
    %763 = vmatprep.subr.mxu0 0.0
    %764 = vmatpush2.xpose.msra.mxu0 0.0
    %765 = vmatprep.subr.mxu0 0.0
    %766 = vmatpush2.xpose.msra.mxu0 0.0
    %767 = vmatprep.subr.mxu0 0.0
    %768 = vmatpush2.xpose.msra.mxu0 0.0
    %769 = vmatprep.subr.mxu0 0.0
    %770 = vmatpush2.xpose.msra.mxu0 0.0
    %771 = vmatprep.subr.mxu0 0.0
    %772 = vmatpush2.xpose.msra.mxu0 0.0
    %773 = vmatprep.subr.mxu0 0.0
    %774 = vmatpush2.xpose.msra.mxu0 0.0
    %775 = vmatprep.subr.mxu0 0.0
    %776 = vmatpush2.xpose.msra.mxu0 0.0
    %777 = vmatprep.subr.mxu0 0.0
    %778 = vmatpush2.xpose.msra.mxu0 0.0
    %779 = vmatprep.subr.mxu0 0.0
    %780 = vmatpush2.xpose.msra.mxu0 0.0
    %781 = vmatprep.subr.mxu0 0.0
    %782 = vmatpush2.xpose.msra.mxu0 0.0
    %783 = vmatprep.subr.mxu0 0.0
    %784 = vmatpush2.xpose.msra.mxu0 0.0
    %785 = vmatprep.subr.mxu0 0.0
    %786 = vmatpush2.xpose.msra.mxu0 0.0
    %787 = vmatprep.mubr.f32.mxu0 0.0
    %788 = vmatmul.mubr.f32.gmra.mxu0 %v715
    %v789 = vpop.f32.mrf.mxu0
    %v790 = vadd.f32 0.0, %v789
    %v791 = vpop.f32.mrf.mxu0
    %792 = vmatprep.mubr.f32.mxu0 0.0
    %793 = vmatmul.mubr.f32.gmra.mxu0 %v717
    %v794 = vpop.f32.mrf.mxu0
    %v795 = vadd.f32 0.0, %v794
    %v796 = vpop.f32.mrf.mxu0
    %797 = vdwg.mxu0
    %798 = vrot.lane.b32.xlu0 %v277, 120
    %v799 = vpop.permute.xlu0 %798
    %800 = vrot.lane.b32.xlu0 %v282, 120
    %v801 = vpop.permute.xlu0 %800
    %802 = vrot.lane.b32.xlu0 %v277, 88
    %v803 = vpop.permute.xlu0 %802
    %804 = vrot.lane.b32.xlu0 %v282, 88
    %v805 = vpop.permute.xlu0 %804
    %v806 = vsel %vm295, %v799, 0
    %v808 = vsel %vm295, %v801, 0
    %v810 = vsel %vm295, %v803, 0
    %v812 = vsel %vm295, %v805, 0
    %814 = vmatprep.subr.mxu0 0.0
    %815 = vmatpush1.xpose.msra.mxu0 0.0
    %816 = vmatprep.subr.mxu0 0.0
    %817 = vmatpush1.xpose.msra.mxu0 0.0
    %818 = vmatprep.subr.mxu0 0.0
    %819 = vmatpush1.xpose.msra.mxu0 0.0
    %820 = vmatprep.subr.mxu0 0.0
    %821 = vmatpush1.xpose.msra.mxu0 0.0
    %822 = vmatprep.subr.mxu0 0.0
    %823 = vmatpush1.xpose.msra.mxu0 0.0
    %824 = vmatprep.subr.mxu0 0.0
    %825 = vmatpush1.xpose.msra.mxu0 0.0
    %826 = vmatprep.subr.mxu0 0.0
    %827 = vmatpush1.xpose.msra.mxu0 0.0
    %828 = vmatprep.subr.mxu0 0.0
    %829 = vmatpush1.xpose.msra.mxu0 0.0
    %830 = vmatprep.subr.mxu0 0.0
    %831 = vmatpush1.xpose.msra.mxu0 0.0
    %832 = vmatprep.subr.mxu0 0.0
    %833 = vmatpush1.xpose.msra.mxu0 0.0
    %834 = vmatprep.subr.mxu0 0.0
    %835 = vmatpush1.xpose.msra.mxu0 0.0
    %836 = vmatprep.subr.mxu0 0.0
    %837 = vmatpush1.xpose.msra.mxu0 0.0
    %838 = vmatprep.subr.mxu0 0.0
    %839 = vmatpush1.xpose.msra.mxu0 0.0
    %840 = vmatprep.subr.mxu0 0.0
    %841 = vmatpush1.xpose.msra.mxu0 0.0
    %842 = vmatprep.subr.mxu0 0.0
    %843 = vmatpush1.xpose.msra.mxu0 %v812
    %844 = vmatprep.subr.mxu0 0.0
    %845 = vmatpush1.xpose.msra.mxu0 %v810
    %846 = vmatprep.subr.mxu0 0.0
    %847 = vmatpush2.xpose.msra.mxu0 0.0
    %848 = vmatprep.subr.mxu0 0.0
    %849 = vmatpush2.xpose.msra.mxu0 0.0
    %850 = vmatprep.subr.mxu0 0.0
    %851 = vmatpush2.xpose.msra.mxu0 0.0
    %852 = vmatprep.subr.mxu0 0.0
    %853 = vmatpush2.xpose.msra.mxu0 0.0
    %854 = vmatprep.subr.mxu0 0.0
    %855 = vmatpush2.xpose.msra.mxu0 0.0
    %856 = vmatprep.subr.mxu0 0.0
    %857 = vmatpush2.xpose.msra.mxu0 0.0
    %858 = vmatprep.subr.mxu0 0.0
    %859 = vmatpush2.xpose.msra.mxu0 0.0
    %860 = vmatprep.subr.mxu0 0.0
    %861 = vmatpush2.xpose.msra.mxu0 0.0
    %862 = vmatprep.subr.mxu0 0.0
    %863 = vmatpush2.xpose.msra.mxu0 0.0
    %864 = vmatprep.subr.mxu0 0.0
    %865 = vmatpush2.xpose.msra.mxu0 0.0
    %866 = vmatprep.subr.mxu0 0.0
    %867 = vmatpush2.xpose.msra.mxu0 0.0
    %868 = vmatprep.subr.mxu0 0.0
    %869 = vmatpush2.xpose.msra.mxu0 0.0
    %870 = vmatprep.subr.mxu0 0.0
    %871 = vmatpush2.xpose.msra.mxu0 0.0
    %872 = vmatprep.subr.mxu0 0.0
    %873 = vmatpush2.xpose.msra.mxu0 0.0
    %874 = vmatprep.subr.mxu0 0.0
    %875 = vmatpush2.xpose.msra.mxu0 0.0
    %876 = vmatprep.subr.mxu0 0.0
    %877 = vmatpush2.xpose.msra.mxu0 0.0
    %878 = vmatprep.mubr.f32.mxu0 0.0
    %879 = vmatmul.mubr.f32.gmra.mxu0 %v806
    %v880 = vpop.f32.mrf.mxu0
    %v881 = vadd.f32 0.0, %v880
    %v882 = vpop.f32.mrf.mxu0
    %883 = vmatprep.mubr.f32.mxu0 0.0
    %884 = vmatmul.mubr.f32.gmra.mxu0 %v808
    %v885 = vpop.f32.mrf.mxu0
    %v886 = vadd.f32 0.0, %v885
    %v887 = vpop.f32.mrf.mxu0
    %888 = vdwg.mxu0
    %v889 = vmul.f32 %v790, 0.35355338
    %v890 = vmul.f32 %v795, 0.35355338
    %v891 = vmul.f32 %v881, 0.35355338
    %v892 = vmul.f32 %v886, 0.35355338
    %v893 = vadd.f32 %v889, %v477
    %v894 = vadd.f32 %v890, %v477
    %v895 = vadd.f32 %v891, %v481
    %v896 = vadd.f32 %v892, %v481
    %v897 = vsel %vm488, %v893, -inf
    %898 = vmax.xlane.f32.xlu0 %v897
    %v899 = vpop.xlane.xlu0 %898
    %v900 = vsel %vm488, %v894, -inf
    %901 = vmax.xlane.f32.xlu0 %v900
    %v902 = vpop.xlane.xlu0 %901
    %v903 = vsel %vm488, %v895, -inf
    %904 = vmax.xlane.f32.xlu0 %v903
    %v905 = vpop.xlane.xlu0 %904
    %v906 = vsel %vm488, %v896, -inf
    %907 = vmax.xlane.f32.xlu0 %v906
    %v908 = vpop.xlane.xlu0 %907
    %v909 = vsub.f32 %v893, %v899
    %v910 = vsub.f32 %v894, %v902
    %v911 = vsub.f32 %v895, %v905
    %v912 = vsub.f32 %v896, %v908
    %v913 = vmul.f32 %v909, 1.442695
    %v914 = vpow.pop %v913
    %v915 = vmul.f32 %v910, 1.442695
    %v916 = vpow.pop %v915
    %v917 = vmul.f32 %v911, 1.442695
    %v918 = vpow.pop %v917
    %v919 = vmul.f32 %v912, 1.442695
    %v920 = vpow.pop %v919
    %v921 = vsel %vm488, %v914, 0.0
    %922 = vadd.xlane.f32.xlu0 %v921
    %v923 = vpop.xlane.xlu0 %922
    %v924 = vsel %vm488, %v916, 0.0
    %925 = vadd.xlane.f32.xlu0 %v924
    %v926 = vpop.xlane.xlu0 %925
    %v927 = vsel %vm488, %v918, 0.0
    %928 = vadd.xlane.f32.xlu0 %v927
    %v929 = vpop.xlane.xlu0 %928
    %v930 = vsel %vm488, %v920, 0.0
    %931 = vadd.xlane.f32.xlu0 %v930
    %v932 = vpop.xlane.xlu0 %931
    %v933 = vrcp.pop %v923
    %v934 = vrcp.pop %v926
    %v935 = vrcp.pop %v929
    %v936 = vrcp.pop %v932
    %v937 = vmul.f32 %v914, %v933
    %v938 = vmul.f32 %v916, %v934
    %v939 = vmul.f32 %v918, %v935
    %v940 = vmul.f32 %v920, %v936
    %941 = vrot.lane.b32.xlu0 %v267, 56
    %v942 = vpop.permute.xlu0 %941
    %943 = vrot.lane.b32.xlu0 %v272, 56
    %v944 = vpop.permute.xlu0 %943
    %v948 = vsel %vm488, %v937, 0
    %v951 = vsel %vm488, %v938, 0
    %953 = vmatprep.subr.mxu0 0.0
    %954 = vmatpush1.msra.mxu0 0.0
    %955 = vmatprep.subr.mxu0 0.0
    %956 = vmatpush1.msra.mxu0 0.0
    %957 = vmatprep.subr.mxu0 0.0
    %958 = vmatpush1.msra.mxu0 0.0
    %959 = vmatprep.subr.mxu0 0.0
    %960 = vmatpush1.msra.mxu0 0.0
    %961 = vmatprep.subr.mxu0 0.0
    %962 = vmatpush1.msra.mxu0 0.0
    %963 = vmatprep.subr.mxu0 0.0
    %964 = vmatpush1.msra.mxu0 0.0
    %965 = vmatprep.subr.mxu0 0.0
    %966 = vmatpush1.msra.mxu0 0.0
    %967 = vmatprep.subr.mxu0 0.0
    %968 = vmatpush1.msra.mxu0 0.0
    %969 = vmatprep.subr.mxu0 0.0
    %970 = vmatpush1.msra.mxu0 0.0
    %971 = vmatprep.subr.mxu0 0.0
    %972 = vmatpush1.msra.mxu0 0.0
    %973 = vmatprep.subr.mxu0 0.0
    %974 = vmatpush1.msra.mxu0 0.0
    %975 = vmatprep.subr.mxu0 0.0
    %976 = vmatpush1.msra.mxu0 0.0
    %977 = vmatprep.subr.mxu0 0.0
    %978 = vmatpush1.msra.mxu0 0.0
    %979 = vmatprep.subr.mxu0 0.0
    %980 = vmatpush1.msra.mxu0 0.0
    %981 = vmatprep.subr.mxu0 0.0
    %982 = vmatpush1.msra.mxu0 %v944
    %983 = vmatprep.subr.mxu0 0.0
    %984 = vmatpush1.msra.mxu0 %v942
    %985 = vmatprep.subr.mxu0 0.0
    %986 = vmatpush2.msra.mxu0 0.0
    %987 = vmatprep.subr.mxu0 0.0
    %988 = vmatpush2.msra.mxu0 0.0
    %989 = vmatprep.subr.mxu0 0.0
    %990 = vmatpush2.msra.mxu0 0.0
    %991 = vmatprep.subr.mxu0 0.0
    %992 = vmatpush2.msra.mxu0 0.0
    %993 = vmatprep.subr.mxu0 0.0
    %994 = vmatpush2.msra.mxu0 0.0
    %995 = vmatprep.subr.mxu0 0.0
    %996 = vmatpush2.msra.mxu0 0.0
    %997 = vmatprep.subr.mxu0 0.0
    %998 = vmatpush2.msra.mxu0 0.0
    %999 = vmatprep.subr.mxu0 0.0
    %1000 = vmatpush2.msra.mxu0 0.0
    %1001 = vmatprep.subr.mxu0 0.0
    %1002 = vmatpush2.msra.mxu0 0.0
    %1003 = vmatprep.subr.mxu0 0.0
    %1004 = vmatpush2.msra.mxu0 0.0
    %1005 = vmatprep.subr.mxu0 0.0
    %1006 = vmatpush2.msra.mxu0 0.0
    %1007 = vmatprep.subr.mxu0 0.0
    %1008 = vmatpush2.msra.mxu0 0.0
    %1009 = vmatprep.subr.mxu0 0.0
    %1010 = vmatpush2.msra.mxu0 0.0
    %1011 = vmatprep.subr.mxu0 0.0
    %1012 = vmatpush2.msra.mxu0 0.0
    %1013 = vmatprep.subr.mxu0 0.0
    %1014 = vmatpush2.msra.mxu0 0.0
    %1015 = vmatprep.subr.mxu0 0.0
    %1016 = vmatpush2.msra.mxu0 0.0
    %1017 = vmatprep.mubr.f32.mxu0 0.0
    %1018 = vmatmul.mubr.f32.gmra.mxu0 %v948
    %v1019 = vpop.f32.mrf.mxu0
    %v1020 = vadd.f32 0.0, %v1019
    %v1021 = vpop.f32.mrf.mxu0
    %1022 = vmatprep.mubr.f32.mxu0 0.0
    %1023 = vmatmul.mubr.f32.gmra.mxu0 %v951
    %v1024 = vpop.f32.mrf.mxu0
    %v1025 = vadd.f32 0.0, %v1024
    %v1026 = vpop.f32.mrf.mxu0
    %1027 = vdwg.mxu0
    %1028 = vrot.lane.b32.xlu0 %v277, 56
    %v1029 = vpop.permute.xlu0 %1028
    %1030 = vrot.lane.b32.xlu0 %v282, 56
    %v1031 = vpop.permute.xlu0 %1030
    %v1035 = vsel %vm488, %v939, 0
    %v1038 = vsel %vm488, %v940, 0
    %1040 = vmatprep.subr.mxu0 0.0
    %1041 = vmatpush1.msra.mxu0 0.0
    %1042 = vmatprep.subr.mxu0 0.0
    %1043 = vmatpush1.msra.mxu0 0.0
    %1044 = vmatprep.subr.mxu0 0.0
    %1045 = vmatpush1.msra.mxu0 0.0
    %1046 = vmatprep.subr.mxu0 0.0
    %1047 = vmatpush1.msra.mxu0 0.0
    %1048 = vmatprep.subr.mxu0 0.0
    %1049 = vmatpush1.msra.mxu0 0.0
    %1050 = vmatprep.subr.mxu0 0.0
    %1051 = vmatpush1.msra.mxu0 0.0
    %1052 = vmatprep.subr.mxu0 0.0
    %1053 = vmatpush1.msra.mxu0 0.0
    %1054 = vmatprep.subr.mxu0 0.0
    %1055 = vmatpush1.msra.mxu0 0.0
    %1056 = vmatprep.subr.mxu0 0.0
    %1057 = vmatpush1.msra.mxu0 0.0
    %1058 = vmatprep.subr.mxu0 0.0
    %1059 = vmatpush1.msra.mxu0 0.0
    %1060 = vmatprep.subr.mxu0 0.0
    %1061 = vmatpush1.msra.mxu0 0.0
    %1062 = vmatprep.subr.mxu0 0.0
    %1063 = vmatpush1.msra.mxu0 0.0
    %1064 = vmatprep.subr.mxu0 0.0
    %1065 = vmatpush1.msra.mxu0 0.0
    %1066 = vmatprep.subr.mxu0 0.0
    %1067 = vmatpush1.msra.mxu0 0.0
    %1068 = vmatprep.subr.mxu0 0.0
    %1069 = vmatpush1.msra.mxu0 %v1031
    %1070 = vmatprep.subr.mxu0 0.0
    %1071 = vmatpush1.msra.mxu0 %v1029
    %1072 = vmatprep.subr.mxu0 0.0
    %1073 = vmatpush2.msra.mxu0 0.0
    %1074 = vmatprep.subr.mxu0 0.0
    %1075 = vmatpush2.msra.mxu0 0.0
    %1076 = vmatprep.subr.mxu0 0.0
    %1077 = vmatpush2.msra.mxu0 0.0
    %1078 = vmatprep.subr.mxu0 0.0
    %1079 = vmatpush2.msra.mxu0 0.0
    %1080 = vmatprep.subr.mxu0 0.0
    %1081 = vmatpush2.msra.mxu0 0.0
    %1082 = vmatprep.subr.mxu0 0.0
    %1083 = vmatpush2.msra.mxu0 0.0
    %1084 = vmatprep.subr.mxu0 0.0
    %1085 = vmatpush2.msra.mxu0 0.0
    %1086 = vmatprep.subr.mxu0 0.0
    %1087 = vmatpush2.msra.mxu0 0.0
    %1088 = vmatprep.subr.mxu0 0.0
    %1089 = vmatpush2.msra.mxu0 0.0
    %1090 = vmatprep.subr.mxu0 0.0
    %1091 = vmatpush2.msra.mxu0 0.0
    %1092 = vmatprep.subr.mxu0 0.0
    %1093 = vmatpush2.msra.mxu0 0.0
    %1094 = vmatprep.subr.mxu0 0.0
    %1095 = vmatpush2.msra.mxu0 0.0
    %1096 = vmatprep.subr.mxu0 0.0
    %1097 = vmatpush2.msra.mxu0 0.0
    %1098 = vmatprep.subr.mxu0 0.0
    %1099 = vmatpush2.msra.mxu0 0.0
    %1100 = vmatprep.subr.mxu0 0.0
    %1101 = vmatpush2.msra.mxu0 0.0
    %1102 = vmatprep.subr.mxu0 0.0
    %1103 = vmatpush2.msra.mxu0 0.0
    %1104 = vmatprep.mubr.f32.mxu0 0.0
    %1105 = vmatmul.mubr.f32.gmra.mxu0 %v1035
    %v1106 = vpop.f32.mrf.mxu0
    %v1107 = vadd.f32 0.0, %v1106
    %v1108 = vpop.f32.mrf.mxu0
    %1109 = vmatprep.mubr.f32.mxu0 0.0
    %1110 = vmatmul.mubr.f32.gmra.mxu0 %v1038
    %v1111 = vpop.f32.mrf.mxu0
    %v1112 = vadd.f32 0.0, %v1111
    %v1113 = vpop.f32.mrf.mxu0
    %1114 = vdwg.mxu0
    %v1116 = vsel %vm295, %v1020, 0
    %v1119 = vsel %vm295, %v1025, 0
    %v1122 = vsel %vm295, %v1107, 0
    %v1125 = vsel %vm295, %v1112, 0
    %1127 = vmatprep.subr.mxu0 0.0
    %1128 = vmatpush1.msra.mxu0 0.0
    %1129 = vmatprep.subr.mxu0 0.0
    %1130 = vmatpush1.msra.mxu0 0.0
    %1131 = vmatprep.subr.mxu0 0.0
    %1132 = vmatpush1.msra.mxu0 0.0
    %1133 = vmatprep.subr.mxu0 0.0
    %1134 = vmatpush1.msra.mxu0 0.0
    %1135 = vmatprep.subr.mxu0 0.0
    %1136 = vmatpush1.msra.mxu0 0.0
    %1137 = vmatprep.subr.mxu0 0.0
    %1138 = vmatpush1.msra.mxu0 0.0
    %1139 = vmatprep.subr.mxu0 0.0
    %1140 = vmatpush1.msra.mxu0 0.0
    %1141 = vmatprep.subr.mxu0 0.0
    %1142 = vmatpush1.msra.mxu0 0.0
    %1143 = vmatprep.subr.mxu0 0.0
    %1144 = vmatpush1.msra.mxu0 0.0
    %1145 = vmatprep.subr.mxu0 0.0
    %1146 = vmatpush1.msra.mxu0 0.0
    %1147 = vmatprep.subr.mxu0 0.0
    %1148 = vmatpush1.msra.mxu0 0.0
    %1149 = vmatprep.subr.mxu0 0.0
    %1150 = vmatpush1.msra.mxu0 0.0
    %1151 = vmatprep.subr.mxu0 0.0
    %1152 = vmatpush1.msra.mxu0 0.0
    %1153 = vmatprep.subr.mxu0 0.0
    %1154 = vmatpush1.msra.mxu0 0.0
    %1155 = vmatprep.subr.mxu0 0.0
    %1156 = vmatpush1.msra.mxu0 0.0
    %1157 = vmatprep.subr.mxu0 0.0
    %1158 = vmatpush1.msra.mxu0 %v286
    %1159 = vmatprep.subr.mxu0 0.0
    %1160 = vmatpush2.msra.mxu0 0.0
    %1161 = vmatprep.subr.mxu0 0.0
    %1162 = vmatpush2.msra.mxu0 0.0
    %1163 = vmatprep.subr.mxu0 0.0
    %1164 = vmatpush2.msra.mxu0 0.0
    %1165 = vmatprep.subr.mxu0 0.0
    %1166 = vmatpush2.msra.mxu0 0.0
    %1167 = vmatprep.subr.mxu0 0.0
    %1168 = vmatpush2.msra.mxu0 0.0
    %1169 = vmatprep.subr.mxu0 0.0
    %1170 = vmatpush2.msra.mxu0 0.0
    %1171 = vmatprep.subr.mxu0 0.0
    %1172 = vmatpush2.msra.mxu0 0.0
    %1173 = vmatprep.subr.mxu0 0.0
    %1174 = vmatpush2.msra.mxu0 0.0
    %1175 = vmatprep.subr.mxu0 0.0
    %1176 = vmatpush2.msra.mxu0 0.0
    %1177 = vmatprep.subr.mxu0 0.0
    %1178 = vmatpush2.msra.mxu0 0.0
    %1179 = vmatprep.subr.mxu0 0.0
    %1180 = vmatpush2.msra.mxu0 0.0
    %1181 = vmatprep.subr.mxu0 0.0
    %1182 = vmatpush2.msra.mxu0 0.0
    %1183 = vmatprep.subr.mxu0 0.0
    %1184 = vmatpush2.msra.mxu0 0.0
    %1185 = vmatprep.subr.mxu0 0.0
    %1186 = vmatpush2.msra.mxu0 0.0
    %1187 = vmatprep.subr.mxu0 0.0
    %1188 = vmatpush2.msra.mxu0 0.0
    %1189 = vmatprep.subr.mxu0 0.0
    %1190 = vmatpush2.msra.mxu0 0.0
    %1191 = vmatprep.mubr.f32.mxu0 0.0
    %1192 = vmatmul.mubr.f32.gmra.mxu0 %v1116
    %v1193 = vpop.f32.mrf.mxu0
    %v1194 = vadd.f32 0.0, %v1193
    %v1195 = vpop.f32.mrf.mxu0
    %1196 = vmatprep.mubr.f32.mxu0 0.0
    %1197 = vmatmul.mubr.f32.gmra.mxu0 %v1119
    %v1198 = vpop.f32.mrf.mxu0
    %v1199 = vadd.f32 0.0, %v1198
    %v1200 = vpop.f32.mrf.mxu0
    %1201 = vmatprep.mubr.f32.mxu0 0.0
    %1202 = vmatmul.mubr.f32.gmra.mxu0 %v1122
    %v1203 = vpop.f32.mrf.mxu0
    %v1204 = vadd.f32 0.0, %v1203
    %v1205 = vpop.f32.mrf.mxu0
    %1206 = vmatprep.mubr.f32.mxu0 0.0
    %1207 = vmatmul.mubr.f32.gmra.mxu0 %v1125
    %v1208 = vpop.f32.mrf.mxu0
    %v1209 = vadd.f32 0.0, %v1208
    %v1210 = vpop.f32.mrf.mxu0
    %1211 = vdwg.mxu0
    %v1213 = vsel %vm295, %v612, 0
    %v1216 = vsel %vm295, %v617, 0
    %v1219 = vsel %vm295, %v699, 0
    %v1222 = vsel %vm295, %v704, 0
    %1224 = vmatprep.subr.mxu0 0.0
    %1225 = vmatpush1.msra.mxu0 0.0
    %1226 = vmatprep.subr.mxu0 0.0
    %1227 = vmatpush1.msra.mxu0 0.0
    %1228 = vmatprep.subr.mxu0 0.0
    %1229 = vmatpush1.msra.mxu0 0.0
    %1230 = vmatprep.subr.mxu0 0.0
    %1231 = vmatpush1.msra.mxu0 0.0
    %1232 = vmatprep.subr.mxu0 0.0
    %1233 = vmatpush1.msra.mxu0 0.0
    %1234 = vmatprep.subr.mxu0 0.0
    %1235 = vmatpush1.msra.mxu0 0.0
    %1236 = vmatprep.subr.mxu0 0.0
    %1237 = vmatpush1.msra.mxu0 0.0
    %1238 = vmatprep.subr.mxu0 0.0
    %1239 = vmatpush1.msra.mxu0 0.0
    %1240 = vmatprep.subr.mxu0 0.0
    %1241 = vmatpush1.msra.mxu0 0.0
    %1242 = vmatprep.subr.mxu0 0.0
    %1243 = vmatpush1.msra.mxu0 0.0
    %1244 = vmatprep.subr.mxu0 0.0
    %1245 = vmatpush1.msra.mxu0 0.0
    %1246 = vmatprep.subr.mxu0 0.0
    %1247 = vmatpush1.msra.mxu0 0.0
    %1248 = vmatprep.subr.mxu0 0.0
    %1249 = vmatpush1.msra.mxu0 0.0
    %1250 = vmatprep.subr.mxu0 0.0
    %1251 = vmatpush1.msra.mxu0 0.0
    %1252 = vmatprep.subr.mxu0 0.0
    %1253 = vmatpush1.msra.mxu0 0.0
    %1254 = vmatprep.subr.mxu0 0.0
    %1255 = vmatpush1.msra.mxu0 %v285
    %1256 = vmatprep.subr.mxu0 0.0
    %1257 = vmatpush2.msra.mxu0 0.0
    %1258 = vmatprep.subr.mxu0 0.0
    %1259 = vmatpush2.msra.mxu0 0.0
    %1260 = vmatprep.subr.mxu0 0.0
    %1261 = vmatpush2.msra.mxu0 0.0
    %1262 = vmatprep.subr.mxu0 0.0
    %1263 = vmatpush2.msra.mxu0 0.0
    %1264 = vmatprep.subr.mxu0 0.0
    %1265 = vmatpush2.msra.mxu0 0.0
    %1266 = vmatprep.subr.mxu0 0.0
    %1267 = vmatpush2.msra.mxu0 0.0
    %1268 = vmatprep.subr.mxu0 0.0
    %1269 = vmatpush2.msra.mxu0 0.0
    %1270 = vmatprep.subr.mxu0 0.0
    %1271 = vmatpush2.msra.mxu0 0.0
    %1272 = vmatprep.subr.mxu0 0.0
    %1273 = vmatpush2.msra.mxu0 0.0
    %1274 = vmatprep.subr.mxu0 0.0
    %1275 = vmatpush2.msra.mxu0 0.0
    %1276 = vmatprep.subr.mxu0 0.0
    %1277 = vmatpush2.msra.mxu0 0.0
    %1278 = vmatprep.subr.mxu0 0.0
    %1279 = vmatpush2.msra.mxu0 0.0
    %1280 = vmatprep.subr.mxu0 0.0
    %1281 = vmatpush2.msra.mxu0 0.0
    %1282 = vmatprep.subr.mxu0 0.0
    %1283 = vmatpush2.msra.mxu0 0.0
    %1284 = vmatprep.subr.mxu0 0.0
    %1285 = vmatpush2.msra.mxu0 0.0
    %1286 = vmatprep.subr.mxu0 0.0
    %1287 = vmatpush2.msra.mxu0 0.0
    %1288 = vmatprep.mubr.f32.mxu0 0.0
    %1289 = vmatmul.mubr.f32.gmra.mxu0 %v1213
    %v1290 = vpop.f32.mrf.mxu0
    %v1291 = vadd.f32 %v1194, %v1290
    %v1292 = vpop.f32.mrf.mxu0
    %1293 = vmatprep.mubr.f32.mxu0 0.0
    %1294 = vmatmul.mubr.f32.gmra.mxu0 %v1216
    %v1295 = vpop.f32.mrf.mxu0
    %v1296 = vadd.f32 %v1199, %v1295
    %v1297 = vpop.f32.mrf.mxu0
    %1298 = vmatprep.mubr.f32.mxu0 0.0
    %1299 = vmatmul.mubr.f32.gmra.mxu0 %v1219
    %v1300 = vpop.f32.mrf.mxu0
    %v1301 = vadd.f32 %v1204, %v1300
    %v1302 = vpop.f32.mrf.mxu0
    %1303 = vmatprep.mubr.f32.mxu0 0.0
    %1304 = vmatmul.mubr.f32.gmra.mxu0 %v1222
    %v1305 = vpop.f32.mrf.mxu0
    %v1306 = vadd.f32 %v1209, %v1305
    %v1307 = vpop.f32.mrf.mxu0
    %1308 = vdwg.mxu0
    %1309 = vrot.lane.b32.xlu0 %v267, 112
    %v1310 = vpop.permute.xlu0 %1309
    %1311 = vrot.lane.b32.xlu0 %v272, 112
    %v1312 = vpop.permute.xlu0 %1311
    %1313 = vrot.lane.b32.xlu0 %v267, 80
    %v1314 = vpop.permute.xlu0 %1313
    %1315 = vrot.lane.b32.xlu0 %v272, 80
    %v1316 = vpop.permute.xlu0 %1315
    %v1317 = vsel %vm295, %v1310, 0
    %v1319 = vsel %vm295, %v1312, 0
    %v1321 = vsel %vm295, %v1314, 0
    %v1323 = vsel %vm295, %v1316, 0
    %1325 = vmatprep.subr.mxu0 0.0
    %1326 = vmatpush1.xpose.msra.mxu0 0.0
    %1327 = vmatprep.subr.mxu0 0.0
    %1328 = vmatpush1.xpose.msra.mxu0 0.0
    %1329 = vmatprep.subr.mxu0 0.0
    %1330 = vmatpush1.xpose.msra.mxu0 0.0
    %1331 = vmatprep.subr.mxu0 0.0
    %1332 = vmatpush1.xpose.msra.mxu0 0.0
    %1333 = vmatprep.subr.mxu0 0.0
    %1334 = vmatpush1.xpose.msra.mxu0 0.0
    %1335 = vmatprep.subr.mxu0 0.0
    %1336 = vmatpush1.xpose.msra.mxu0 0.0
    %1337 = vmatprep.subr.mxu0 0.0
    %1338 = vmatpush1.xpose.msra.mxu0 0.0
    %1339 = vmatprep.subr.mxu0 0.0
    %1340 = vmatpush1.xpose.msra.mxu0 0.0
    %1341 = vmatprep.subr.mxu0 0.0
    %1342 = vmatpush1.xpose.msra.mxu0 0.0
    %1343 = vmatprep.subr.mxu0 0.0
    %1344 = vmatpush1.xpose.msra.mxu0 0.0
    %1345 = vmatprep.subr.mxu0 0.0
    %1346 = vmatpush1.xpose.msra.mxu0 0.0
    %1347 = vmatprep.subr.mxu0 0.0
    %1348 = vmatpush1.xpose.msra.mxu0 0.0
    %1349 = vmatprep.subr.mxu0 0.0
    %1350 = vmatpush1.xpose.msra.mxu0 0.0
    %1351 = vmatprep.subr.mxu0 0.0
    %1352 = vmatpush1.xpose.msra.mxu0 0.0
    %1353 = vmatprep.subr.mxu0 0.0
    %1354 = vmatpush1.xpose.msra.mxu0 %v1323
    %1355 = vmatprep.subr.mxu0 0.0
    %1356 = vmatpush1.xpose.msra.mxu0 %v1321
    %1357 = vmatprep.subr.mxu0 0.0
    %1358 = vmatpush2.xpose.msra.mxu0 0.0
    %1359 = vmatprep.subr.mxu0 0.0
    %1360 = vmatpush2.xpose.msra.mxu0 0.0
    %1361 = vmatprep.subr.mxu0 0.0
    %1362 = vmatpush2.xpose.msra.mxu0 0.0
    %1363 = vmatprep.subr.mxu0 0.0
    %1364 = vmatpush2.xpose.msra.mxu0 0.0
    %1365 = vmatprep.subr.mxu0 0.0
    %1366 = vmatpush2.xpose.msra.mxu0 0.0
    %1367 = vmatprep.subr.mxu0 0.0
    %1368 = vmatpush2.xpose.msra.mxu0 0.0
    %1369 = vmatprep.subr.mxu0 0.0
    %1370 = vmatpush2.xpose.msra.mxu0 0.0
    %1371 = vmatprep.subr.mxu0 0.0
    %1372 = vmatpush2.xpose.msra.mxu0 0.0
    %1373 = vmatprep.subr.mxu0 0.0
    %1374 = vmatpush2.xpose.msra.mxu0 0.0
    %1375 = vmatprep.subr.mxu0 0.0
    %1376 = vmatpush2.xpose.msra.mxu0 0.0
    %1377 = vmatprep.subr.mxu0 0.0
    %1378 = vmatpush2.xpose.msra.mxu0 0.0
    %1379 = vmatprep.subr.mxu0 0.0
    %1380 = vmatpush2.xpose.msra.mxu0 0.0
    %1381 = vmatprep.subr.mxu0 0.0
    %1382 = vmatpush2.xpose.msra.mxu0 0.0
    %1383 = vmatprep.subr.mxu0 0.0
    %1384 = vmatpush2.xpose.msra.mxu0 0.0
    %1385 = vmatprep.subr.mxu0 0.0
    %1386 = vmatpush2.xpose.msra.mxu0 0.0
    %1387 = vmatprep.subr.mxu0 0.0
    %1388 = vmatpush2.xpose.msra.mxu0 0.0
    %1389 = vmatprep.mubr.f32.mxu0 0.0
    %1390 = vmatmul.mubr.f32.gmra.mxu0 %v1317
    %v1391 = vpop.f32.mrf.mxu0
    %v1392 = vadd.f32 0.0, %v1391
    %v1393 = vpop.f32.mrf.mxu0
    %1394 = vmatprep.mubr.f32.mxu0 0.0
    %1395 = vmatmul.mubr.f32.gmra.mxu0 %v1319
    %v1396 = vpop.f32.mrf.mxu0
    %v1397 = vadd.f32 0.0, %v1396
    %v1398 = vpop.f32.mrf.mxu0
    %1399 = vdwg.mxu0
    %1400 = vrot.lane.b32.xlu0 %v277, 112
    %v1401 = vpop.permute.xlu0 %1400
    %1402 = vrot.lane.b32.xlu0 %v282, 112
    %v1403 = vpop.permute.xlu0 %1402
    %1404 = vrot.lane.b32.xlu0 %v277, 80
    %v1405 = vpop.permute.xlu0 %1404
    %1406 = vrot.lane.b32.xlu0 %v282, 80
    %v1407 = vpop.permute.xlu0 %1406
    %v1408 = vsel %vm295, %v1401, 0
    %v1410 = vsel %vm295, %v1403, 0
    %v1412 = vsel %vm295, %v1405, 0
    %v1414 = vsel %vm295, %v1407, 0
    %1416 = vmatprep.subr.mxu0 0.0
    %1417 = vmatpush1.xpose.msra.mxu0 0.0
    %1418 = vmatprep.subr.mxu0 0.0
    %1419 = vmatpush1.xpose.msra.mxu0 0.0
    %1420 = vmatprep.subr.mxu0 0.0
    %1421 = vmatpush1.xpose.msra.mxu0 0.0
    %1422 = vmatprep.subr.mxu0 0.0
    %1423 = vmatpush1.xpose.msra.mxu0 0.0
    %1424 = vmatprep.subr.mxu0 0.0
    %1425 = vmatpush1.xpose.msra.mxu0 0.0
    %1426 = vmatprep.subr.mxu0 0.0
    %1427 = vmatpush1.xpose.msra.mxu0 0.0
    %1428 = vmatprep.subr.mxu0 0.0
    %1429 = vmatpush1.xpose.msra.mxu0 0.0
    %1430 = vmatprep.subr.mxu0 0.0
    %1431 = vmatpush1.xpose.msra.mxu0 0.0
    %1432 = vmatprep.subr.mxu0 0.0
    %1433 = vmatpush1.xpose.msra.mxu0 0.0
    %1434 = vmatprep.subr.mxu0 0.0
    %1435 = vmatpush1.xpose.msra.mxu0 0.0
    %1436 = vmatprep.subr.mxu0 0.0
    %1437 = vmatpush1.xpose.msra.mxu0 0.0
    %1438 = vmatprep.subr.mxu0 0.0
    %1439 = vmatpush1.xpose.msra.mxu0 0.0
    %1440 = vmatprep.subr.mxu0 0.0
    %1441 = vmatpush1.xpose.msra.mxu0 0.0
    %1442 = vmatprep.subr.mxu0 0.0
    %1443 = vmatpush1.xpose.msra.mxu0 0.0
    %1444 = vmatprep.subr.mxu0 0.0
    %1445 = vmatpush1.xpose.msra.mxu0 %v1414
    %1446 = vmatprep.subr.mxu0 0.0
    %1447 = vmatpush1.xpose.msra.mxu0 %v1412
    %1448 = vmatprep.subr.mxu0 0.0
    %1449 = vmatpush2.xpose.msra.mxu0 0.0
    %1450 = vmatprep.subr.mxu0 0.0
    %1451 = vmatpush2.xpose.msra.mxu0 0.0
    %1452 = vmatprep.subr.mxu0 0.0
    %1453 = vmatpush2.xpose.msra.mxu0 0.0
    %1454 = vmatprep.subr.mxu0 0.0
    %1455 = vmatpush2.xpose.msra.mxu0 0.0
    %1456 = vmatprep.subr.mxu0 0.0
    %1457 = vmatpush2.xpose.msra.mxu0 0.0
    %1458 = vmatprep.subr.mxu0 0.0
    %1459 = vmatpush2.xpose.msra.mxu0 0.0
    %1460 = vmatprep.subr.mxu0 0.0
    %1461 = vmatpush2.xpose.msra.mxu0 0.0
    %1462 = vmatprep.subr.mxu0 0.0
    %1463 = vmatpush2.xpose.msra.mxu0 0.0
    %1464 = vmatprep.subr.mxu0 0.0
    %1465 = vmatpush2.xpose.msra.mxu0 0.0
    %1466 = vmatprep.subr.mxu0 0.0
    %1467 = vmatpush2.xpose.msra.mxu0 0.0
    %1468 = vmatprep.subr.mxu0 0.0
    %1469 = vmatpush2.xpose.msra.mxu0 0.0
    %1470 = vmatprep.subr.mxu0 0.0
    %1471 = vmatpush2.xpose.msra.mxu0 0.0
    %1472 = vmatprep.subr.mxu0 0.0
    %1473 = vmatpush2.xpose.msra.mxu0 0.0
    %1474 = vmatprep.subr.mxu0 0.0
    %1475 = vmatpush2.xpose.msra.mxu0 0.0
    %1476 = vmatprep.subr.mxu0 0.0
    %1477 = vmatpush2.xpose.msra.mxu0 0.0
    %1478 = vmatprep.subr.mxu0 0.0
    %1479 = vmatpush2.xpose.msra.mxu0 0.0
    %1480 = vmatprep.mubr.f32.mxu0 0.0
    %1481 = vmatmul.mubr.f32.gmra.mxu0 %v1408
    %v1482 = vpop.f32.mrf.mxu0
    %v1483 = vadd.f32 0.0, %v1482
    %v1484 = vpop.f32.mrf.mxu0
    %1485 = vmatprep.mubr.f32.mxu0 0.0
    %1486 = vmatmul.mubr.f32.gmra.mxu0 %v1410
    %v1487 = vpop.f32.mrf.mxu0
    %v1488 = vadd.f32 0.0, %v1487
    %v1489 = vpop.f32.mrf.mxu0
    %1490 = vdwg.mxu0
    %v1491 = vmul.f32 %v1392, 0.35355338
    %v1492 = vmul.f32 %v1397, 0.35355338
    %v1493 = vmul.f32 %v1483, 0.35355338
    %v1494 = vmul.f32 %v1488, 0.35355338
    %v1495 = vadd.f32 %v1491, %v477
    %v1496 = vadd.f32 %v1492, %v477
    %v1497 = vadd.f32 %v1493, %v481
    %v1498 = vadd.f32 %v1494, %v481
    %v1499 = vsel %vm488, %v1495, -inf
    %1500 = vmax.xlane.f32.xlu0 %v1499
    %v1501 = vpop.xlane.xlu0 %1500
    %v1502 = vsel %vm488, %v1496, -inf
    %1503 = vmax.xlane.f32.xlu0 %v1502
    %v1504 = vpop.xlane.xlu0 %1503
    %v1505 = vsel %vm488, %v1497, -inf
    %1506 = vmax.xlane.f32.xlu0 %v1505
    %v1507 = vpop.xlane.xlu0 %1506
    %v1508 = vsel %vm488, %v1498, -inf
    %1509 = vmax.xlane.f32.xlu0 %v1508
    %v1510 = vpop.xlane.xlu0 %1509
    %v1511 = vsub.f32 %v1495, %v1501
    %v1512 = vsub.f32 %v1496, %v1504
    %v1513 = vsub.f32 %v1497, %v1507
    %v1514 = vsub.f32 %v1498, %v1510
    %v1515 = vmul.f32 %v1511, 1.442695
    %v1516 = vpow.pop %v1515
    %v1517 = vmul.f32 %v1512, 1.442695
    %v1518 = vpow.pop %v1517
    %v1519 = vmul.f32 %v1513, 1.442695
    %v1520 = vpow.pop %v1519
    %v1521 = vmul.f32 %v1514, 1.442695
    %v1522 = vpow.pop %v1521
    %v1523 = vsel %vm488, %v1516, 0.0
    %1524 = vadd.xlane.f32.xlu0 %v1523
    %v1525 = vpop.xlane.xlu0 %1524
    %v1526 = vsel %vm488, %v1518, 0.0
    %1527 = vadd.xlane.f32.xlu0 %v1526
    %v1528 = vpop.xlane.xlu0 %1527
    %v1529 = vsel %vm488, %v1520, 0.0
    %1530 = vadd.xlane.f32.xlu0 %v1529
    %v1531 = vpop.xlane.xlu0 %1530
    %v1532 = vsel %vm488, %v1522, 0.0
    %1533 = vadd.xlane.f32.xlu0 %v1532
    %v1534 = vpop.xlane.xlu0 %1533
    %v1535 = vrcp.pop %v1525
    %v1536 = vrcp.pop %v1528
    %v1537 = vrcp.pop %v1531
    %v1538 = vrcp.pop %v1534
    %v1539 = vmul.f32 %v1516, %v1535
    %v1540 = vmul.f32 %v1518, %v1536
    %v1541 = vmul.f32 %v1520, %v1537
    %v1542 = vmul.f32 %v1522, %v1538
    %1543 = vrot.lane.b32.xlu0 %v267, 48
    %v1544 = vpop.permute.xlu0 %1543
    %1545 = vrot.lane.b32.xlu0 %v272, 48
    %v1546 = vpop.permute.xlu0 %1545
    %v1550 = vsel %vm488, %v1539, 0
    %v1553 = vsel %vm488, %v1540, 0
    %1555 = vmatprep.subr.mxu0 0.0
    %1556 = vmatpush1.msra.mxu0 0.0
    %1557 = vmatprep.subr.mxu0 0.0
    %1558 = vmatpush1.msra.mxu0 0.0
    %1559 = vmatprep.subr.mxu0 0.0
    %1560 = vmatpush1.msra.mxu0 0.0
    %1561 = vmatprep.subr.mxu0 0.0
    %1562 = vmatpush1.msra.mxu0 0.0
    %1563 = vmatprep.subr.mxu0 0.0
    %1564 = vmatpush1.msra.mxu0 0.0
    %1565 = vmatprep.subr.mxu0 0.0
    %1566 = vmatpush1.msra.mxu0 0.0
    %1567 = vmatprep.subr.mxu0 0.0
    %1568 = vmatpush1.msra.mxu0 0.0
    %1569 = vmatprep.subr.mxu0 0.0
    %1570 = vmatpush1.msra.mxu0 0.0
    %1571 = vmatprep.subr.mxu0 0.0
    %1572 = vmatpush1.msra.mxu0 0.0
    %1573 = vmatprep.subr.mxu0 0.0
    %1574 = vmatpush1.msra.mxu0 0.0
    %1575 = vmatprep.subr.mxu0 0.0
    %1576 = vmatpush1.msra.mxu0 0.0
    %1577 = vmatprep.subr.mxu0 0.0
    %1578 = vmatpush1.msra.mxu0 0.0
    %1579 = vmatprep.subr.mxu0 0.0
    %1580 = vmatpush1.msra.mxu0 0.0
    %1581 = vmatprep.subr.mxu0 0.0
    %1582 = vmatpush1.msra.mxu0 0.0
    %1583 = vmatprep.subr.mxu0 0.0
    %1584 = vmatpush1.msra.mxu0 %v1546
    %1585 = vmatprep.subr.mxu0 0.0
    %1586 = vmatpush1.msra.mxu0 %v1544
    %1587 = vmatprep.subr.mxu0 0.0
    %1588 = vmatpush2.msra.mxu0 0.0
    %1589 = vmatprep.subr.mxu0 0.0
    %1590 = vmatpush2.msra.mxu0 0.0
    %1591 = vmatprep.subr.mxu0 0.0
    %1592 = vmatpush2.msra.mxu0 0.0
    %1593 = vmatprep.subr.mxu0 0.0
    %1594 = vmatpush2.msra.mxu0 0.0
    %1595 = vmatprep.subr.mxu0 0.0
    %1596 = vmatpush2.msra.mxu0 0.0
    %1597 = vmatprep.subr.mxu0 0.0
    %1598 = vmatpush2.msra.mxu0 0.0
    %1599 = vmatprep.subr.mxu0 0.0
    %1600 = vmatpush2.msra.mxu0 0.0
    %1601 = vmatprep.subr.mxu0 0.0
    %1602 = vmatpush2.msra.mxu0 0.0
    %1603 = vmatprep.subr.mxu0 0.0
    %1604 = vmatpush2.msra.mxu0 0.0
    %1605 = vmatprep.subr.mxu0 0.0
    %1606 = vmatpush2.msra.mxu0 0.0
    %1607 = vmatprep.subr.mxu0 0.0
    %1608 = vmatpush2.msra.mxu0 0.0
    %1609 = vmatprep.subr.mxu0 0.0
    %1610 = vmatpush2.msra.mxu0 0.0
    %1611 = vmatprep.subr.mxu0 0.0
    %1612 = vmatpush2.msra.mxu0 0.0
    %1613 = vmatprep.subr.mxu0 0.0
    %1614 = vmatpush2.msra.mxu0 0.0
    %1615 = vmatprep.subr.mxu0 0.0
    %1616 = vmatpush2.msra.mxu0 0.0
    %1617 = vmatprep.subr.mxu0 0.0
    %1618 = vmatpush2.msra.mxu0 0.0
    %1619 = vmatprep.mubr.f32.mxu0 0.0
    %1620 = vmatmul.mubr.f32.gmra.mxu0 %v1550
    %v1621 = vpop.f32.mrf.mxu0
    %v1622 = vadd.f32 0.0, %v1621
    %v1623 = vpop.f32.mrf.mxu0
    %1624 = vmatprep.mubr.f32.mxu0 0.0
    %1625 = vmatmul.mubr.f32.gmra.mxu0 %v1553
    %v1626 = vpop.f32.mrf.mxu0
    %v1627 = vadd.f32 0.0, %v1626
    %v1628 = vpop.f32.mrf.mxu0
    %1629 = vdwg.mxu0
    %1630 = vrot.lane.b32.xlu0 %v277, 48
    %v1631 = vpop.permute.xlu0 %1630
    %1632 = vrot.lane.b32.xlu0 %v282, 48
    %v1633 = vpop.permute.xlu0 %1632
    %v1637 = vsel %vm488, %v1541, 0
    %v1640 = vsel %vm488, %v1542, 0
    %1642 = vmatprep.subr.mxu0 0.0
    %1643 = vmatpush1.msra.mxu0 0.0
    %1644 = vmatprep.subr.mxu0 0.0
    %1645 = vmatpush1.msra.mxu0 0.0
    %1646 = vmatprep.subr.mxu0 0.0
    %1647 = vmatpush1.msra.mxu0 0.0
    %1648 = vmatprep.subr.mxu0 0.0
    %1649 = vmatpush1.msra.mxu0 0.0
    %1650 = vmatprep.subr.mxu0 0.0
    %1651 = vmatpush1.msra.mxu0 0.0
    %1652 = vmatprep.subr.mxu0 0.0
    %1653 = vmatpush1.msra.mxu0 0.0
    %1654 = vmatprep.subr.mxu0 0.0
    %1655 = vmatpush1.msra.mxu0 0.0
    %1656 = vmatprep.subr.mxu0 0.0
    %1657 = vmatpush1.msra.mxu0 0.0
    %1658 = vmatprep.subr.mxu0 0.0
    %1659 = vmatpush1.msra.mxu0 0.0
    %1660 = vmatprep.subr.mxu0 0.0
    %1661 = vmatpush1.msra.mxu0 0.0
    %1662 = vmatprep.subr.mxu0 0.0
    %1663 = vmatpush1.msra.mxu0 0.0
    %1664 = vmatprep.subr.mxu0 0.0
    %1665 = vmatpush1.msra.mxu0 0.0
    %1666 = vmatprep.subr.mxu0 0.0
    %1667 = vmatpush1.msra.mxu0 0.0
    %1668 = vmatprep.subr.mxu0 0.0
    %1669 = vmatpush1.msra.mxu0 0.0
    %1670 = vmatprep.subr.mxu0 0.0
    %1671 = vmatpush1.msra.mxu0 %v1633
    %1672 = vmatprep.subr.mxu0 0.0
    %1673 = vmatpush1.msra.mxu0 %v1631
    %1674 = vmatprep.subr.mxu0 0.0
    %1675 = vmatpush2.msra.mxu0 0.0
    %1676 = vmatprep.subr.mxu0 0.0
    %1677 = vmatpush2.msra.mxu0 0.0
    %1678 = vmatprep.subr.mxu0 0.0
    %1679 = vmatpush2.msra.mxu0 0.0
    %1680 = vmatprep.subr.mxu0 0.0
    %1681 = vmatpush2.msra.mxu0 0.0
    %1682 = vmatprep.subr.mxu0 0.0
    %1683 = vmatpush2.msra.mxu0 0.0
    %1684 = vmatprep.subr.mxu0 0.0
    %1685 = vmatpush2.msra.mxu0 0.0
    %1686 = vmatprep.subr.mxu0 0.0
    %1687 = vmatpush2.msra.mxu0 0.0
    %1688 = vmatprep.subr.mxu0 0.0
    %1689 = vmatpush2.msra.mxu0 0.0
    %1690 = vmatprep.subr.mxu0 0.0
    %1691 = vmatpush2.msra.mxu0 0.0
    %1692 = vmatprep.subr.mxu0 0.0
    %1693 = vmatpush2.msra.mxu0 0.0
    %1694 = vmatprep.subr.mxu0 0.0
    %1695 = vmatpush2.msra.mxu0 0.0
    %1696 = vmatprep.subr.mxu0 0.0
    %1697 = vmatpush2.msra.mxu0 0.0
    %1698 = vmatprep.subr.mxu0 0.0
    %1699 = vmatpush2.msra.mxu0 0.0
    %1700 = vmatprep.subr.mxu0 0.0
    %1701 = vmatpush2.msra.mxu0 0.0
    %1702 = vmatprep.subr.mxu0 0.0
    %1703 = vmatpush2.msra.mxu0 0.0
    %1704 = vmatprep.subr.mxu0 0.0
    %1705 = vmatpush2.msra.mxu0 0.0
    %1706 = vmatprep.mubr.f32.mxu0 0.0
    %1707 = vmatmul.mubr.f32.gmra.mxu0 %v1637
    %v1708 = vpop.f32.mrf.mxu0
    %v1709 = vadd.f32 0.0, %v1708
    %v1710 = vpop.f32.mrf.mxu0
    %1711 = vmatprep.mubr.f32.mxu0 0.0
    %1712 = vmatmul.mubr.f32.gmra.mxu0 %v1640
    %v1713 = vpop.f32.mrf.mxu0
    %v1714 = vadd.f32 0.0, %v1713
    %v1715 = vpop.f32.mrf.mxu0
    %1716 = vdwg.mxu0
    %v1718 = vsel %vm295, %v1622, 0
    %v1721 = vsel %vm295, %v1627, 0
    %v1724 = vsel %vm295, %v1709, 0
    %v1727 = vsel %vm295, %v1714, 0
    %1729 = vmatprep.subr.mxu0 0.0
    %1730 = vmatpush1.msra.mxu0 0.0
    %1731 = vmatprep.subr.mxu0 0.0
    %1732 = vmatpush1.msra.mxu0 0.0
    %1733 = vmatprep.subr.mxu0 0.0
    %1734 = vmatpush1.msra.mxu0 0.0
    %1735 = vmatprep.subr.mxu0 0.0
    %1736 = vmatpush1.msra.mxu0 0.0
    %1737 = vmatprep.subr.mxu0 0.0
    %1738 = vmatpush1.msra.mxu0 0.0
    %1739 = vmatprep.subr.mxu0 0.0
    %1740 = vmatpush1.msra.mxu0 0.0
    %1741 = vmatprep.subr.mxu0 0.0
    %1742 = vmatpush1.msra.mxu0 0.0
    %1743 = vmatprep.subr.mxu0 0.0
    %1744 = vmatpush1.msra.mxu0 0.0
    %1745 = vmatprep.subr.mxu0 0.0
    %1746 = vmatpush1.msra.mxu0 0.0
    %1747 = vmatprep.subr.mxu0 0.0
    %1748 = vmatpush1.msra.mxu0 0.0
    %1749 = vmatprep.subr.mxu0 0.0
    %1750 = vmatpush1.msra.mxu0 0.0
    %1751 = vmatprep.subr.mxu0 0.0
    %1752 = vmatpush1.msra.mxu0 0.0
    %1753 = vmatprep.subr.mxu0 0.0
    %1754 = vmatpush1.msra.mxu0 0.0
    %1755 = vmatprep.subr.mxu0 0.0
    %1756 = vmatpush1.msra.mxu0 0.0
    %1757 = vmatprep.subr.mxu0 0.0
    %1758 = vmatpush1.msra.mxu0 0.0
    %1759 = vmatprep.subr.mxu0 0.0
    %1760 = vmatpush1.msra.mxu0 %v287
    %1761 = vmatprep.subr.mxu0 0.0
    %1762 = vmatpush2.msra.mxu0 0.0
    %1763 = vmatprep.subr.mxu0 0.0
    %1764 = vmatpush2.msra.mxu0 0.0
    %1765 = vmatprep.subr.mxu0 0.0
    %1766 = vmatpush2.msra.mxu0 0.0
    %1767 = vmatprep.subr.mxu0 0.0
    %1768 = vmatpush2.msra.mxu0 0.0
    %1769 = vmatprep.subr.mxu0 0.0
    %1770 = vmatpush2.msra.mxu0 0.0
    %1771 = vmatprep.subr.mxu0 0.0
    %1772 = vmatpush2.msra.mxu0 0.0
    %1773 = vmatprep.subr.mxu0 0.0
    %1774 = vmatpush2.msra.mxu0 0.0
    %1775 = vmatprep.subr.mxu0 0.0
    %1776 = vmatpush2.msra.mxu0 0.0
    %1777 = vmatprep.subr.mxu0 0.0
    %1778 = vmatpush2.msra.mxu0 0.0
    %1779 = vmatprep.subr.mxu0 0.0
    %1780 = vmatpush2.msra.mxu0 0.0
    %1781 = vmatprep.subr.mxu0 0.0
    %1782 = vmatpush2.msra.mxu0 0.0
    %1783 = vmatprep.subr.mxu0 0.0
    %1784 = vmatpush2.msra.mxu0 0.0
    %1785 = vmatprep.subr.mxu0 0.0
    %1786 = vmatpush2.msra.mxu0 0.0
    %1787 = vmatprep.subr.mxu0 0.0
    %1788 = vmatpush2.msra.mxu0 0.0
    %1789 = vmatprep.subr.mxu0 0.0
    %1790 = vmatpush2.msra.mxu0 0.0
    %1791 = vmatprep.subr.mxu0 0.0
    %1792 = vmatpush2.msra.mxu0 0.0
    %1793 = vmatprep.mubr.f32.mxu0 0.0
    %1794 = vmatmul.mubr.f32.gmra.mxu0 %v1718
    %v1795 = vpop.f32.mrf.mxu0
    %v1796 = vadd.f32 0.0, %v1795
    %v1797 = vpop.f32.mrf.mxu0
    %1798 = vmatprep.mubr.f32.mxu0 0.0
    %1799 = vmatmul.mubr.f32.gmra.mxu0 %v1721
    %v1800 = vpop.f32.mrf.mxu0
    %v1801 = vadd.f32 0.0, %v1800
    %v1802 = vpop.f32.mrf.mxu0
    %1803 = vmatprep.mubr.f32.mxu0 0.0
    %1804 = vmatmul.mubr.f32.gmra.mxu0 %v1724
    %v1805 = vpop.f32.mrf.mxu0
    %v1806 = vadd.f32 0.0, %v1805
    %v1807 = vpop.f32.mrf.mxu0
    %1808 = vmatprep.mubr.f32.mxu0 0.0
    %1809 = vmatmul.mubr.f32.gmra.mxu0 %v1727
    %v1810 = vpop.f32.mrf.mxu0
    %v1811 = vadd.f32 0.0, %v1810
    %v1812 = vpop.f32.mrf.mxu0
    %1813 = vdwg.mxu0
    %v1814 = vadd.f32 %v1291, %v1796
    %v1815 = vadd.f32 %v1296, %v1801
    %v1816 = vadd.f32 %v1301, %v1806
    %v1817 = vadd.f32 %v1306, %v1811
    %1818 = vrot.lane.b32.xlu0 %v267, 104
    %v1819 = vpop.permute.xlu0 %1818
    %1820 = vrot.lane.b32.xlu0 %v272, 104
    %v1821 = vpop.permute.xlu0 %1820
    %1822 = vrot.lane.b32.xlu0 %v267, 72
    %v1823 = vpop.permute.xlu0 %1822
    %1824 = vrot.lane.b32.xlu0 %v272, 72
    %v1825 = vpop.permute.xlu0 %1824
    %v1826 = vsel %vm295, %v1819, 0
    %v1828 = vsel %vm295, %v1821, 0
    %v1830 = vsel %vm295, %v1823, 0
    %v1832 = vsel %vm295, %v1825, 0
    %1834 = vmatprep.subr.mxu0 0.0
    %1835 = vmatpush1.xpose.msra.mxu0 0.0
    %1836 = vmatprep.subr.mxu0 0.0
    %1837 = vmatpush1.xpose.msra.mxu0 0.0
    %1838 = vmatprep.subr.mxu0 0.0
    %1839 = vmatpush1.xpose.msra.mxu0 0.0
    %1840 = vmatprep.subr.mxu0 0.0
    %1841 = vmatpush1.xpose.msra.mxu0 0.0
    %1842 = vmatprep.subr.mxu0 0.0
    %1843 = vmatpush1.xpose.msra.mxu0 0.0
    %1844 = vmatprep.subr.mxu0 0.0
    %1845 = vmatpush1.xpose.msra.mxu0 0.0
    %1846 = vmatprep.subr.mxu0 0.0
    %1847 = vmatpush1.xpose.msra.mxu0 0.0
    %1848 = vmatprep.subr.mxu0 0.0
    %1849 = vmatpush1.xpose.msra.mxu0 0.0
    %1850 = vmatprep.subr.mxu0 0.0
    %1851 = vmatpush1.xpose.msra.mxu0 0.0
    %1852 = vmatprep.subr.mxu0 0.0
    %1853 = vmatpush1.xpose.msra.mxu0 0.0
    %1854 = vmatprep.subr.mxu0 0.0
    %1855 = vmatpush1.xpose.msra.mxu0 0.0
    %1856 = vmatprep.subr.mxu0 0.0
    %1857 = vmatpush1.xpose.msra.mxu0 0.0
    %1858 = vmatprep.subr.mxu0 0.0
    %1859 = vmatpush1.xpose.msra.mxu0 0.0
    %1860 = vmatprep.subr.mxu0 0.0
    %1861 = vmatpush1.xpose.msra.mxu0 0.0
    %1862 = vmatprep.subr.mxu0 0.0
    %1863 = vmatpush1.xpose.msra.mxu0 %v1832
    %1864 = vmatprep.subr.mxu0 0.0
    %1865 = vmatpush1.xpose.msra.mxu0 %v1830
    %1866 = vmatprep.subr.mxu0 0.0
    %1867 = vmatpush2.xpose.msra.mxu0 0.0
    %1868 = vmatprep.subr.mxu0 0.0
    %1869 = vmatpush2.xpose.msra.mxu0 0.0
    %1870 = vmatprep.subr.mxu0 0.0
    %1871 = vmatpush2.xpose.msra.mxu0 0.0
    %1872 = vmatprep.subr.mxu0 0.0
    %1873 = vmatpush2.xpose.msra.mxu0 0.0
    %1874 = vmatprep.subr.mxu0 0.0
    %1875 = vmatpush2.xpose.msra.mxu0 0.0
    %1876 = vmatprep.subr.mxu0 0.0
    %1877 = vmatpush2.xpose.msra.mxu0 0.0
    %1878 = vmatprep.subr.mxu0 0.0
    %1879 = vmatpush2.xpose.msra.mxu0 0.0
    %1880 = vmatprep.subr.mxu0 0.0
    %1881 = vmatpush2.xpose.msra.mxu0 0.0
    %1882 = vmatprep.subr.mxu0 0.0
    %1883 = vmatpush2.xpose.msra.mxu0 0.0
    %1884 = vmatprep.subr.mxu0 0.0
    %1885 = vmatpush2.xpose.msra.mxu0 0.0
    %1886 = vmatprep.subr.mxu0 0.0
    %1887 = vmatpush2.xpose.msra.mxu0 0.0
    %1888 = vmatprep.subr.mxu0 0.0
    %1889 = vmatpush2.xpose.msra.mxu0 0.0
    %1890 = vmatprep.subr.mxu0 0.0
    %1891 = vmatpush2.xpose.msra.mxu0 0.0
    %1892 = vmatprep.subr.mxu0 0.0
    %1893 = vmatpush2.xpose.msra.mxu0 0.0
    %1894 = vmatprep.subr.mxu0 0.0
    %1895 = vmatpush2.xpose.msra.mxu0 0.0
    %1896 = vmatprep.subr.mxu0 0.0
    %1897 = vmatpush2.xpose.msra.mxu0 0.0
    %1898 = vmatprep.mubr.f32.mxu0 0.0
    %1899 = vmatmul.mubr.f32.gmra.mxu0 %v1826
    %v1900 = vpop.f32.mrf.mxu0
    %v1901 = vadd.f32 0.0, %v1900
    %v1902 = vpop.f32.mrf.mxu0
    %1903 = vmatprep.mubr.f32.mxu0 0.0
    %1904 = vmatmul.mubr.f32.gmra.mxu0 %v1828
    %v1905 = vpop.f32.mrf.mxu0
    %v1906 = vadd.f32 0.0, %v1905
    %v1907 = vpop.f32.mrf.mxu0
    %1908 = vdwg.mxu0
    %1909 = vrot.lane.b32.xlu0 %v277, 104
    %v1910 = vpop.permute.xlu0 %1909
    %1911 = vrot.lane.b32.xlu0 %v282, 104
    %v1912 = vpop.permute.xlu0 %1911
    %1913 = vrot.lane.b32.xlu0 %v277, 72
    %v1914 = vpop.permute.xlu0 %1913
    %1915 = vrot.lane.b32.xlu0 %v282, 72
    %v1916 = vpop.permute.xlu0 %1915
    %v1917 = vsel %vm295, %v1910, 0
    %v1919 = vsel %vm295, %v1912, 0
    %v1921 = vsel %vm295, %v1914, 0
    %v1923 = vsel %vm295, %v1916, 0
    %1925 = vmatprep.subr.mxu0 0.0
    %1926 = vmatpush1.xpose.msra.mxu0 0.0
    %1927 = vmatprep.subr.mxu0 0.0
    %1928 = vmatpush1.xpose.msra.mxu0 0.0
    %1929 = vmatprep.subr.mxu0 0.0
    %1930 = vmatpush1.xpose.msra.mxu0 0.0
    %1931 = vmatprep.subr.mxu0 0.0
    %1932 = vmatpush1.xpose.msra.mxu0 0.0
    %1933 = vmatprep.subr.mxu0 0.0
    %1934 = vmatpush1.xpose.msra.mxu0 0.0
    %1935 = vmatprep.subr.mxu0 0.0
    %1936 = vmatpush1.xpose.msra.mxu0 0.0
    %1937 = vmatprep.subr.mxu0 0.0
    %1938 = vmatpush1.xpose.msra.mxu0 0.0
    %1939 = vmatprep.subr.mxu0 0.0
    %1940 = vmatpush1.xpose.msra.mxu0 0.0
    %1941 = vmatprep.subr.mxu0 0.0
    %1942 = vmatpush1.xpose.msra.mxu0 0.0
    %1943 = vmatprep.subr.mxu0 0.0
    %1944 = vmatpush1.xpose.msra.mxu0 0.0
    %1945 = vmatprep.subr.mxu0 0.0
    %1946 = vmatpush1.xpose.msra.mxu0 0.0
    %1947 = vmatprep.subr.mxu0 0.0
    %1948 = vmatpush1.xpose.msra.mxu0 0.0
    %1949 = vmatprep.subr.mxu0 0.0
    %1950 = vmatpush1.xpose.msra.mxu0 0.0
    %1951 = vmatprep.subr.mxu0 0.0
    %1952 = vmatpush1.xpose.msra.mxu0 0.0
    %1953 = vmatprep.subr.mxu0 0.0
    %1954 = vmatpush1.xpose.msra.mxu0 %v1923
    %1955 = vmatprep.subr.mxu0 0.0
    %1956 = vmatpush1.xpose.msra.mxu0 %v1921
    %1957 = vmatprep.subr.mxu0 0.0
    %1958 = vmatpush2.xpose.msra.mxu0 0.0
    %1959 = vmatprep.subr.mxu0 0.0
    %1960 = vmatpush2.xpose.msra.mxu0 0.0
    %1961 = vmatprep.subr.mxu0 0.0
    %1962 = vmatpush2.xpose.msra.mxu0 0.0
    %1963 = vmatprep.subr.mxu0 0.0
    %1964 = vmatpush2.xpose.msra.mxu0 0.0
    %1965 = vmatprep.subr.mxu0 0.0
    %1966 = vmatpush2.xpose.msra.mxu0 0.0
    %1967 = vmatprep.subr.mxu0 0.0
    %1968 = vmatpush2.xpose.msra.mxu0 0.0
    %1969 = vmatprep.subr.mxu0 0.0
    %1970 = vmatpush2.xpose.msra.mxu0 0.0
    %1971 = vmatprep.subr.mxu0 0.0
    %1972 = vmatpush2.xpose.msra.mxu0 0.0
    %1973 = vmatprep.subr.mxu0 0.0
    %1974 = vmatpush2.xpose.msra.mxu0 0.0
    %1975 = vmatprep.subr.mxu0 0.0
    %1976 = vmatpush2.xpose.msra.mxu0 0.0
    %1977 = vmatprep.subr.mxu0 0.0
    %1978 = vmatpush2.xpose.msra.mxu0 0.0
    %1979 = vmatprep.subr.mxu0 0.0
    %1980 = vmatpush2.xpose.msra.mxu0 0.0
    %1981 = vmatprep.subr.mxu0 0.0
    %1982 = vmatpush2.xpose.msra.mxu0 0.0
    %1983 = vmatprep.subr.mxu0 0.0
    %1984 = vmatpush2.xpose.msra.mxu0 0.0
    %1985 = vmatprep.subr.mxu0 0.0
    %1986 = vmatpush2.xpose.msra.mxu0 0.0
    %1987 = vmatprep.subr.mxu0 0.0
    %1988 = vmatpush2.xpose.msra.mxu0 0.0
    %1989 = vmatprep.mubr.f32.mxu0 0.0
    %1990 = vmatmul.mubr.f32.gmra.mxu0 %v1917
    %v1991 = vpop.f32.mrf.mxu0
    %v1992 = vadd.f32 0.0, %v1991
    %v1993 = vpop.f32.mrf.mxu0
    %1994 = vmatprep.mubr.f32.mxu0 0.0
    %1995 = vmatmul.mubr.f32.gmra.mxu0 %v1919
    %v1996 = vpop.f32.mrf.mxu0
    %v1997 = vadd.f32 0.0, %v1996
    %v1998 = vpop.f32.mrf.mxu0
    %1999 = vdwg.mxu0
    %v2000 = vmul.f32 %v1901, 0.35355338
    %v2001 = vmul.f32 %v1906, 0.35355338
    %v2002 = vmul.f32 %v1992, 0.35355338
    %v2003 = vmul.f32 %v1997, 0.35355338
    %v2004 = vadd.f32 %v2000, %v477
    %v2005 = vadd.f32 %v2001, %v477
    %v2006 = vadd.f32 %v2002, %v481
    %v2007 = vadd.f32 %v2003, %v481
    %v2008 = vsel %vm488, %v2004, -inf
    %2009 = vmax.xlane.f32.xlu0 %v2008
    %v2010 = vpop.xlane.xlu0 %2009
    %v2011 = vsel %vm488, %v2005, -inf
    %2012 = vmax.xlane.f32.xlu0 %v2011
    %v2013 = vpop.xlane.xlu0 %2012
    %v2014 = vsel %vm488, %v2006, -inf
    %2015 = vmax.xlane.f32.xlu0 %v2014
    %v2016 = vpop.xlane.xlu0 %2015
    %v2017 = vsel %vm488, %v2007, -inf
    %2018 = vmax.xlane.f32.xlu0 %v2017
    %v2019 = vpop.xlane.xlu0 %2018
    %v2020 = vsub.f32 %v2004, %v2010
    %v2021 = vsub.f32 %v2005, %v2013
    %v2022 = vsub.f32 %v2006, %v2016
    %v2023 = vsub.f32 %v2007, %v2019
    %v2024 = vmul.f32 %v2020, 1.442695
    %v2025 = vpow.pop %v2024
    %v2026 = vmul.f32 %v2021, 1.442695
    %v2027 = vpow.pop %v2026
    %v2028 = vmul.f32 %v2022, 1.442695
    %v2029 = vpow.pop %v2028
    %v2030 = vmul.f32 %v2023, 1.442695
    %v2031 = vpow.pop %v2030
    %v2032 = vsel %vm488, %v2025, 0.0
    %2033 = vadd.xlane.f32.xlu0 %v2032
    %v2034 = vpop.xlane.xlu0 %2033
    %v2035 = vsel %vm488, %v2027, 0.0
    %2036 = vadd.xlane.f32.xlu0 %v2035
    %v2037 = vpop.xlane.xlu0 %2036
    %v2038 = vsel %vm488, %v2029, 0.0
    %2039 = vadd.xlane.f32.xlu0 %v2038
    %v2040 = vpop.xlane.xlu0 %2039
    %v2041 = vsel %vm488, %v2031, 0.0
    %2042 = vadd.xlane.f32.xlu0 %v2041
    %v2043 = vpop.xlane.xlu0 %2042
    %v2044 = vrcp.pop %v2034
    %v2045 = vrcp.pop %v2037
    %v2046 = vrcp.pop %v2040
    %v2047 = vrcp.pop %v2043
    %v2048 = vmul.f32 %v2025, %v2044
    %v2049 = vmul.f32 %v2027, %v2045
    %v2050 = vmul.f32 %v2029, %v2046
    %v2051 = vmul.f32 %v2031, %v2047
    %2052 = vrot.lane.b32.xlu0 %v267, 40
    %v2053 = vpop.permute.xlu0 %2052
    %2054 = vrot.lane.b32.xlu0 %v272, 40
    %v2055 = vpop.permute.xlu0 %2054
    %v2059 = vsel %vm488, %v2048, 0
    %v2062 = vsel %vm488, %v2049, 0
    %2064 = vmatprep.subr.mxu0 0.0
    %2065 = vmatpush1.msra.mxu0 0.0
    %2066 = vmatprep.subr.mxu0 0.0
    %2067 = vmatpush1.msra.mxu0 0.0
    %2068 = vmatprep.subr.mxu0 0.0
    %2069 = vmatpush1.msra.mxu0 0.0
    %2070 = vmatprep.subr.mxu0 0.0
    %2071 = vmatpush1.msra.mxu0 0.0
    %2072 = vmatprep.subr.mxu0 0.0
    %2073 = vmatpush1.msra.mxu0 0.0
    %2074 = vmatprep.subr.mxu0 0.0
    %2075 = vmatpush1.msra.mxu0 0.0
    %2076 = vmatprep.subr.mxu0 0.0
    %2077 = vmatpush1.msra.mxu0 0.0
    %2078 = vmatprep.subr.mxu0 0.0
    %2079 = vmatpush1.msra.mxu0 0.0
    %2080 = vmatprep.subr.mxu0 0.0
    %2081 = vmatpush1.msra.mxu0 0.0
    %2082 = vmatprep.subr.mxu0 0.0
    %2083 = vmatpush1.msra.mxu0 0.0
    %2084 = vmatprep.subr.mxu0 0.0
    %2085 = vmatpush1.msra.mxu0 0.0
    %2086 = vmatprep.subr.mxu0 0.0
    %2087 = vmatpush1.msra.mxu0 0.0
    %2088 = vmatprep.subr.mxu0 0.0
    %2089 = vmatpush1.msra.mxu0 0.0
    %2090 = vmatprep.subr.mxu0 0.0
    %2091 = vmatpush1.msra.mxu0 0.0
    %2092 = vmatprep.subr.mxu0 0.0
    %2093 = vmatpush1.msra.mxu0 %v2055
    %2094 = vmatprep.subr.mxu0 0.0
    %2095 = vmatpush1.msra.mxu0 %v2053
    %2096 = vmatprep.subr.mxu0 0.0
    %2097 = vmatpush2.msra.mxu0 0.0
    %2098 = vmatprep.subr.mxu0 0.0
    %2099 = vmatpush2.msra.mxu0 0.0
    %2100 = vmatprep.subr.mxu0 0.0
    %2101 = vmatpush2.msra.mxu0 0.0
    %2102 = vmatprep.subr.mxu0 0.0
    %2103 = vmatpush2.msra.mxu0 0.0
    %2104 = vmatprep.subr.mxu0 0.0
    %2105 = vmatpush2.msra.mxu0 0.0
    %2106 = vmatprep.subr.mxu0 0.0
    %2107 = vmatpush2.msra.mxu0 0.0
    %2108 = vmatprep.subr.mxu0 0.0
    %2109 = vmatpush2.msra.mxu0 0.0
    %2110 = vmatprep.subr.mxu0 0.0
    %2111 = vmatpush2.msra.mxu0 0.0
    %2112 = vmatprep.subr.mxu0 0.0
    %2113 = vmatpush2.msra.mxu0 0.0
    %2114 = vmatprep.subr.mxu0 0.0
    %2115 = vmatpush2.msra.mxu0 0.0
    %2116 = vmatprep.subr.mxu0 0.0
    %2117 = vmatpush2.msra.mxu0 0.0
    %2118 = vmatprep.subr.mxu0 0.0
    %2119 = vmatpush2.msra.mxu0 0.0
    %2120 = vmatprep.subr.mxu0 0.0
    %2121 = vmatpush2.msra.mxu0 0.0
    %2122 = vmatprep.subr.mxu0 0.0
    %2123 = vmatpush2.msra.mxu0 0.0
    %2124 = vmatprep.subr.mxu0 0.0
    %2125 = vmatpush2.msra.mxu0 0.0
    %2126 = vmatprep.subr.mxu0 0.0
    %2127 = vmatpush2.msra.mxu0 0.0
    %2128 = vmatprep.mubr.f32.mxu0 0.0
    %2129 = vmatmul.mubr.f32.gmra.mxu0 %v2059
    %v2130 = vpop.f32.mrf.mxu0
    %v2131 = vadd.f32 0.0, %v2130
    %v2132 = vpop.f32.mrf.mxu0
    %2133 = vmatprep.mubr.f32.mxu0 0.0
    %2134 = vmatmul.mubr.f32.gmra.mxu0 %v2062
    %v2135 = vpop.f32.mrf.mxu0
    %v2136 = vadd.f32 0.0, %v2135
    %v2137 = vpop.f32.mrf.mxu0
    %2138 = vdwg.mxu0
    %2139 = vrot.lane.b32.xlu0 %v277, 40
    %v2140 = vpop.permute.xlu0 %2139
    %2141 = vrot.lane.b32.xlu0 %v282, 40
    %v2142 = vpop.permute.xlu0 %2141
    %v2146 = vsel %vm488, %v2050, 0
    %v2149 = vsel %vm488, %v2051, 0
    %2151 = vmatprep.subr.mxu0 0.0
    %2152 = vmatpush1.msra.mxu0 0.0
    %2153 = vmatprep.subr.mxu0 0.0
    %2154 = vmatpush1.msra.mxu0 0.0
    %2155 = vmatprep.subr.mxu0 0.0
    %2156 = vmatpush1.msra.mxu0 0.0
    %2157 = vmatprep.subr.mxu0 0.0
    %2158 = vmatpush1.msra.mxu0 0.0
    %2159 = vmatprep.subr.mxu0 0.0
    %2160 = vmatpush1.msra.mxu0 0.0
    %2161 = vmatprep.subr.mxu0 0.0
    %2162 = vmatpush1.msra.mxu0 0.0
    %2163 = vmatprep.subr.mxu0 0.0
    %2164 = vmatpush1.msra.mxu0 0.0
    %2165 = vmatprep.subr.mxu0 0.0
    %2166 = vmatpush1.msra.mxu0 0.0
    %2167 = vmatprep.subr.mxu0 0.0
    %2168 = vmatpush1.msra.mxu0 0.0
    %2169 = vmatprep.subr.mxu0 0.0
    %2170 = vmatpush1.msra.mxu0 0.0
    %2171 = vmatprep.subr.mxu0 0.0
    %2172 = vmatpush1.msra.mxu0 0.0
    %2173 = vmatprep.subr.mxu0 0.0
    %2174 = vmatpush1.msra.mxu0 0.0
    %2175 = vmatprep.subr.mxu0 0.0
    %2176 = vmatpush1.msra.mxu0 0.0
    %2177 = vmatprep.subr.mxu0 0.0
    %2178 = vmatpush1.msra.mxu0 0.0
    %2179 = vmatprep.subr.mxu0 0.0
    %2180 = vmatpush1.msra.mxu0 %v2142
    %2181 = vmatprep.subr.mxu0 0.0
    %2182 = vmatpush1.msra.mxu0 %v2140
    %2183 = vmatprep.subr.mxu0 0.0
    %2184 = vmatpush2.msra.mxu0 0.0
    %2185 = vmatprep.subr.mxu0 0.0
    %2186 = vmatpush2.msra.mxu0 0.0
    %2187 = vmatprep.subr.mxu0 0.0
    %2188 = vmatpush2.msra.mxu0 0.0
    %2189 = vmatprep.subr.mxu0 0.0
    %2190 = vmatpush2.msra.mxu0 0.0
    %2191 = vmatprep.subr.mxu0 0.0
    %2192 = vmatpush2.msra.mxu0 0.0
    %2193 = vmatprep.subr.mxu0 0.0
    %2194 = vmatpush2.msra.mxu0 0.0
    %2195 = vmatprep.subr.mxu0 0.0
    %2196 = vmatpush2.msra.mxu0 0.0
    %2197 = vmatprep.subr.mxu0 0.0
    %2198 = vmatpush2.msra.mxu0 0.0
    %2199 = vmatprep.subr.mxu0 0.0
    %2200 = vmatpush2.msra.mxu0 0.0
    %2201 = vmatprep.subr.mxu0 0.0
    %2202 = vmatpush2.msra.mxu0 0.0
    %2203 = vmatprep.subr.mxu0 0.0
    %2204 = vmatpush2.msra.mxu0 0.0
    %2205 = vmatprep.subr.mxu0 0.0
    %2206 = vmatpush2.msra.mxu0 0.0
    %2207 = vmatprep.subr.mxu0 0.0
    %2208 = vmatpush2.msra.mxu0 0.0
    %2209 = vmatprep.subr.mxu0 0.0
    %2210 = vmatpush2.msra.mxu0 0.0
    %2211 = vmatprep.subr.mxu0 0.0
    %2212 = vmatpush2.msra.mxu0 0.0
    %2213 = vmatprep.subr.mxu0 0.0
    %2214 = vmatpush2.msra.mxu0 0.0
    %2215 = vmatprep.mubr.f32.mxu0 0.0
    %2216 = vmatmul.mubr.f32.gmra.mxu0 %v2146
    %v2217 = vpop.f32.mrf.mxu0
    %v2218 = vadd.f32 0.0, %v2217
    %v2219 = vpop.f32.mrf.mxu0
    %2220 = vmatprep.mubr.f32.mxu0 0.0
    %2221 = vmatmul.mubr.f32.gmra.mxu0 %v2149
    %v2222 = vpop.f32.mrf.mxu0
    %v2223 = vadd.f32 0.0, %v2222
    %v2224 = vpop.f32.mrf.mxu0
    %2225 = vdwg.mxu0
    %v2227 = vsel %vm295, %v2131, 0
    %v2230 = vsel %vm295, %v2136, 0
    %v2233 = vsel %vm295, %v2218, 0
    %v2236 = vsel %vm295, %v2223, 0
    %2238 = vmatprep.subr.mxu0 0.0
    %2239 = vmatpush1.msra.mxu0 0.0
    %2240 = vmatprep.subr.mxu0 0.0
    %2241 = vmatpush1.msra.mxu0 0.0
    %2242 = vmatprep.subr.mxu0 0.0
    %2243 = vmatpush1.msra.mxu0 0.0
    %2244 = vmatprep.subr.mxu0 0.0
    %2245 = vmatpush1.msra.mxu0 0.0
    %2246 = vmatprep.subr.mxu0 0.0
    %2247 = vmatpush1.msra.mxu0 0.0
    %2248 = vmatprep.subr.mxu0 0.0
    %2249 = vmatpush1.msra.mxu0 0.0
    %2250 = vmatprep.subr.mxu0 0.0
    %2251 = vmatpush1.msra.mxu0 0.0
    %2252 = vmatprep.subr.mxu0 0.0
    %2253 = vmatpush1.msra.mxu0 0.0
    %2254 = vmatprep.subr.mxu0 0.0
    %2255 = vmatpush1.msra.mxu0 0.0
    %2256 = vmatprep.subr.mxu0 0.0
    %2257 = vmatpush1.msra.mxu0 0.0
    %2258 = vmatprep.subr.mxu0 0.0
    %2259 = vmatpush1.msra.mxu0 0.0
    %2260 = vmatprep.subr.mxu0 0.0
    %2261 = vmatpush1.msra.mxu0 0.0
    %2262 = vmatprep.subr.mxu0 0.0
    %2263 = vmatpush1.msra.mxu0 0.0
    %2264 = vmatprep.subr.mxu0 0.0
    %2265 = vmatpush1.msra.mxu0 0.0
    %2266 = vmatprep.subr.mxu0 0.0
    %2267 = vmatpush1.msra.mxu0 0.0
    %2268 = vmatprep.subr.mxu0 0.0
    %2269 = vmatpush1.msra.mxu0 %v288
    %2270 = vmatprep.subr.mxu0 0.0
    %2271 = vmatpush2.msra.mxu0 0.0
    %2272 = vmatprep.subr.mxu0 0.0
    %2273 = vmatpush2.msra.mxu0 0.0
    %2274 = vmatprep.subr.mxu0 0.0
    %2275 = vmatpush2.msra.mxu0 0.0
    %2276 = vmatprep.subr.mxu0 0.0
    %2277 = vmatpush2.msra.mxu0 0.0
    %2278 = vmatprep.subr.mxu0 0.0
    %2279 = vmatpush2.msra.mxu0 0.0
    %2280 = vmatprep.subr.mxu0 0.0
    %2281 = vmatpush2.msra.mxu0 0.0
    %2282 = vmatprep.subr.mxu0 0.0
    %2283 = vmatpush2.msra.mxu0 0.0
    %2284 = vmatprep.subr.mxu0 0.0
    %2285 = vmatpush2.msra.mxu0 0.0
    %2286 = vmatprep.subr.mxu0 0.0
    %2287 = vmatpush2.msra.mxu0 0.0
    %2288 = vmatprep.subr.mxu0 0.0
    %2289 = vmatpush2.msra.mxu0 0.0
    %2290 = vmatprep.subr.mxu0 0.0
    %2291 = vmatpush2.msra.mxu0 0.0
    %2292 = vmatprep.subr.mxu0 0.0
    %2293 = vmatpush2.msra.mxu0 0.0
    %2294 = vmatprep.subr.mxu0 0.0
    %2295 = vmatpush2.msra.mxu0 0.0
    %2296 = vmatprep.subr.mxu0 0.0
    %2297 = vmatpush2.msra.mxu0 0.0
    %2298 = vmatprep.subr.mxu0 0.0
    %2299 = vmatpush2.msra.mxu0 0.0
    %2300 = vmatprep.subr.mxu0 0.0
    %2301 = vmatpush2.msra.mxu0 0.0
    %2302 = vmatprep.mubr.f32.mxu0 0.0
    %2303 = vmatmul.mubr.f32.gmra.mxu0 %v2227
    %v2304 = vpop.f32.mrf.mxu0
    %v2305 = vadd.f32 0.0, %v2304
    %v2306 = vpop.f32.mrf.mxu0
    %2307 = vmatprep.mubr.f32.mxu0 0.0
    %2308 = vmatmul.mubr.f32.gmra.mxu0 %v2230
    %v2309 = vpop.f32.mrf.mxu0
    %v2310 = vadd.f32 0.0, %v2309
    %v2311 = vpop.f32.mrf.mxu0
    %2312 = vmatprep.mubr.f32.mxu0 0.0
    %2313 = vmatmul.mubr.f32.gmra.mxu0 %v2233
    %v2314 = vpop.f32.mrf.mxu0
    %v2315 = vadd.f32 0.0, %v2314
    %v2316 = vpop.f32.mrf.mxu0
    %2317 = vmatprep.mubr.f32.mxu0 0.0
    %2318 = vmatmul.mubr.f32.gmra.mxu0 %v2236
    %v2319 = vpop.f32.mrf.mxu0
    %v2320 = vadd.f32 0.0, %v2319
    %v2321 = vpop.f32.mrf.mxu0
    %2322 = vdwg.mxu0
    %v2323 = vadd.f32 %v1814, %v2305
    %v2324 = vadd.f32 %v1815, %v2310
    %v2325 = vadd.f32 %v1816, %v2315
    %v2326 = vadd.f32 %v1817, %v2320
    %v2327 = vld [vmem:[%s7] sm:$0x1]
    %v2329 = vlaneseq
    %v2330 = vshrl.u32 %v2329, 7
    %v2331 = vsub.s32 0, %v2330
    %v2332 = vrot.slane %v2327, %v2331
    %v2334 = vadd.f32 %v2323, %v2332
    %v2335 = vadd.f32 %v2324, %v2332
    %v2336 = vadd.f32 %v2325, %v2332
    %v2337 = vadd.f32 %v2326, %v2332
    %v2338 = vadd.f32 %v156, %v2334
    %v2339 = vadd.f32 %v161, %v2335
    %v2340 = vadd.f32 %v166, %v2336
    %v2341 = vadd.f32 %v171, %v2337
    %v2342 = vld [vmem:[%s12] sm:$0x1]
    %v2343 = vld [vmem:[%s13] sm:$0x1]
    %v2344 = vsel %vm187, %v2338, 0.0
    %2345 = vadd.xlane.f32.xlu0 %v2344
    %v2346 = vpop.xlane.xlu0 %2345
    %v2347 = vsel %vm187, %v2339, 0.0
    %2348 = vadd.xlane.f32.xlu0 %v2347
    %v2349 = vpop.xlane.xlu0 %2348
    %v2350 = vsel %vm187, %v2340, 0.0
    %2351 = vadd.xlane.f32.xlu0 %v2350
    %v2352 = vpop.xlane.xlu0 %2351
    %v2353 = vsel %vm187, %v2341, 0.0
    %2354 = vadd.xlane.f32.xlu0 %v2353
    %v2355 = vpop.xlane.xlu0 %2354
    %v2356 = vrcp.pop 32.0
    %v2357 = vmul.f32 %v2346, %v2356
    %v2358 = vmul.f32 %v2349, %v2356
    %v2359 = vmul.f32 %v2352, %v2356
    %v2360 = vmul.f32 %v2355, %v2356
    %v2361 = vsub.f32 %v2338, %v2357
    %v2362 = vsub.f32 %v2339, %v2358
    %v2363 = vsub.f32 %v2340, %v2359
    %v2364 = vsub.f32 %v2341, %v2360
    %v2365 = vmul.f32 %v2361, %v2361
    %v2366 = vmul.f32 %v2362, %v2362
    %v2367 = vmul.f32 %v2363, %v2363
    %v2368 = vmul.f32 %v2364, %v2364
    %v2369 = vsel %vm187, %v2365, 0.0
    %2370 = vadd.xlane.f32.xlu0 %v2369
    %v2371 = vpop.xlane.xlu0 %2370
    %v2372 = vsel %vm187, %v2366, 0.0
    %2373 = vadd.xlane.f32.xlu0 %v2372
    %v2374 = vpop.xlane.xlu0 %2373
    %v2375 = vsel %vm187, %v2367, 0.0
    %2376 = vadd.xlane.f32.xlu0 %v2375
    %v2377 = vpop.xlane.xlu0 %2376
    %v2378 = vsel %vm187, %v2368, 0.0
    %2379 = vadd.xlane.f32.xlu0 %v2378
    %v2380 = vpop.xlane.xlu0 %2379
    %v2381 = vmul.f32 %v2371, %v2356
    %v2382 = vmul.f32 %v2374, %v2356
    %v2383 = vmul.f32 %v2377, %v2356
    %v2384 = vmul.f32 %v2380, %v2356
    %v2385 = vadd.f32 %v2381, 1e-05
    %v2386 = vadd.f32 %v2382, 1e-05
    %v2387 = vadd.f32 %v2383, 1e-05
    %v2388 = vadd.f32 %v2384, 1e-05
    %v2389 = vrsqrt.pop %v2385
    %v2390 = vrsqrt.pop %v2386
    %v2391 = vrsqrt.pop %v2387
    %v2392 = vrsqrt.pop %v2388
    %v2393 = vmul.f32 %v2361, %v2389
    %v2394 = vmul.f32 %v2362, %v2390
    %v2395 = vmul.f32 %v2363, %v2391
    %v2396 = vmul.f32 %v2364, %v2392
    %v2398 = vlaneseq
    %v2399 = vshrl.u32 %v2398, 7
    %v2400 = vsub.s32 0, %v2399
    %v2401 = vrot.slane %v2342, %v2400
    %v2403 = vmul.f32 %v2393, %v2401
    %v2404 = vmul.f32 %v2394, %v2401
    %v2405 = vmul.f32 %v2395, %v2401
    %v2406 = vmul.f32 %v2396, %v2401
    %v2408 = vlaneseq
    %v2409 = vshrl.u32 %v2408, 7
    %v2410 = vsub.s32 0, %v2409
    %v2411 = vrot.slane %v2343, %v2410
    %v2413 = vadd.f32 %v2403, %v2411
    %v2414 = vadd.f32 %v2404, %v2411
    %v2415 = vadd.f32 %v2405, %v2411
    %v2416 = vadd.f32 %v2406, %v2411
    %v2417 = vld [vmem:[%s8] sm:$0xff]
    %v2418 = vld [vmem:[%s8 + $0x8] sm:$0xff]
    %v2419 = vld [vmem:[%s8 + $0x10] sm:$0xff]
    %v2420 = vld [vmem:[%s8 + $0x18] sm:$0xff]
    %v2421 = vld [vmem:[%s9] sm:$0x1]
    %v2423 = vlaneseq
    %v2424 = vshrl.u32 %v2423, 7
    %v2425 = vsub.s32 0, %v2424
    %v2426 = vrot.slane %v2421, %v2425
    %v2429 = vsel %vm187, %v2413, 0
    %v2432 = vsel %vm187, %v2414, 0
    %v2435 = vsel %vm187, %v2415, 0
    %v2438 = vsel %vm187, %v2416, 0
    %2440 = vmatprep.subr.mxu0 0.0
    %2441 = vmatpush1.msra.mxu0 0.0
    %2442 = vmatprep.subr.mxu0 0.0
    %2443 = vmatpush1.msra.mxu0 0.0
    %2444 = vmatprep.subr.mxu0 0.0
    %2445 = vmatpush1.msra.mxu0 0.0
    %2446 = vmatprep.subr.mxu0 0.0
    %2447 = vmatpush1.msra.mxu0 0.0
    %2448 = vmatprep.subr.mxu0 0.0
    %2449 = vmatpush1.msra.mxu0 0.0
    %2450 = vmatprep.subr.mxu0 0.0
    %2451 = vmatpush1.msra.mxu0 0.0
    %2452 = vmatprep.subr.mxu0 0.0
    %2453 = vmatpush1.msra.mxu0 0.0
    %2454 = vmatprep.subr.mxu0 0.0
    %2455 = vmatpush1.msra.mxu0 0.0
    %2456 = vmatprep.subr.mxu0 0.0
    %2457 = vmatpush1.msra.mxu0 0.0
    %2458 = vmatprep.subr.mxu0 0.0
    %2459 = vmatpush1.msra.mxu0 0.0
    %2460 = vmatprep.subr.mxu0 0.0
    %2461 = vmatpush1.msra.mxu0 0.0
    %2462 = vmatprep.subr.mxu0 0.0
    %2463 = vmatpush1.msra.mxu0 0.0
    %2464 = vmatprep.subr.mxu0 0.0
    %2465 = vmatpush1.msra.mxu0 %v2420
    %2466 = vmatprep.subr.mxu0 0.0
    %2467 = vmatpush1.msra.mxu0 %v2419
    %2468 = vmatprep.subr.mxu0 0.0
    %2469 = vmatpush1.msra.mxu0 %v2418
    %2470 = vmatprep.subr.mxu0 0.0
    %2471 = vmatpush1.msra.mxu0 %v2417
    %2472 = vmatprep.subr.mxu0 0.0
    %2473 = vmatpush2.msra.mxu0 0.0
    %2474 = vmatprep.subr.mxu0 0.0
    %2475 = vmatpush2.msra.mxu0 0.0
    %2476 = vmatprep.subr.mxu0 0.0
    %2477 = vmatpush2.msra.mxu0 0.0
    %2478 = vmatprep.subr.mxu0 0.0
    %2479 = vmatpush2.msra.mxu0 0.0
    %2480 = vmatprep.subr.mxu0 0.0
    %2481 = vmatpush2.msra.mxu0 0.0
    %2482 = vmatprep.subr.mxu0 0.0
    %2483 = vmatpush2.msra.mxu0 0.0
    %2484 = vmatprep.subr.mxu0 0.0
    %2485 = vmatpush2.msra.mxu0 0.0
    %2486 = vmatprep.subr.mxu0 0.0
    %2487 = vmatpush2.msra.mxu0 0.0
    %2488 = vmatprep.subr.mxu0 0.0
    %2489 = vmatpush2.msra.mxu0 0.0
    %2490 = vmatprep.subr.mxu0 0.0
    %2491 = vmatpush2.msra.mxu0 0.0
    %2492 = vmatprep.subr.mxu0 0.0
    %2493 = vmatpush2.msra.mxu0 0.0
    %2494 = vmatprep.subr.mxu0 0.0
    %2495 = vmatpush2.msra.mxu0 0.0
    %2496 = vmatprep.subr.mxu0 0.0
    %2497 = vmatpush2.msra.mxu0 0.0
    %2498 = vmatprep.subr.mxu0 0.0
    %2499 = vmatpush2.msra.mxu0 0.0
    %2500 = vmatprep.subr.mxu0 0.0
    %2501 = vmatpush2.msra.mxu0 0.0
    %2502 = vmatprep.subr.mxu0 0.0
    %2503 = vmatpush2.msra.mxu0 0.0
    %2504 = vmatprep.mubr.f32.mxu0 0.0
    %2505 = vmatmul.mubr.f32.gmra.mxu0 %v2429
    %v2506 = vpop.f32.mrf.mxu0
    %v2507 = vadd.f32 %v2426, %v2506
    %v2508 = vpop.f32.mrf.mxu0
    %2509 = vmatprep.mubr.f32.mxu0 0.0
    %2510 = vmatmul.mubr.f32.gmra.mxu0 %v2432
    %v2511 = vpop.f32.mrf.mxu0
    %v2512 = vadd.f32 %v2426, %v2511
    %v2513 = vpop.f32.mrf.mxu0
    %2514 = vmatprep.mubr.f32.mxu0 0.0
    %2515 = vmatmul.mubr.f32.gmra.mxu0 %v2435
    %v2516 = vpop.f32.mrf.mxu0
    %v2517 = vadd.f32 %v2426, %v2516
    %v2518 = vpop.f32.mrf.mxu0
    %2519 = vmatprep.mubr.f32.mxu0 0.0
    %2520 = vmatmul.mubr.f32.gmra.mxu0 %v2438
    %v2521 = vpop.f32.mrf.mxu0
    %v2522 = vadd.f32 %v2426, %v2521
    %v2523 = vpop.f32.mrf.mxu0
    %2524 = vdwg.mxu0
    %v2525 = vmax.f32 %v2507, 0.0
    %v2526 = vmax.f32 %v2512, 0.0
    %v2527 = vmax.f32 %v2517, 0.0
    %v2528 = vmax.f32 %v2522, 0.0
    %v2529 = vld [vmem:[%s10] sm:$0xff]
    %v2530 = vld [vmem:[%s10 + $0x8] sm:$0xff]
    %v2531 = vld [vmem:[%s10 + $0x10] sm:$0xff]
    %v2532 = vld [vmem:[%s10 + $0x18] sm:$0xff]
    %v2533 = vld [vmem:[%s10 + $0x20] sm:$0xff]
    %v2534 = vld [vmem:[%s10 + $0x28] sm:$0xff]
    %v2535 = vld [vmem:[%s10 + $0x30] sm:$0xff]
    %v2536 = vld [vmem:[%s10 + $0x38] sm:$0xff]
    %v2537 = vld [vmem:[%s11] sm:$0x1]
    %v2539 = vlaneseq
    %v2540 = vshrl.u32 %v2539, 7
    %v2541 = vsub.s32 0, %v2540
    %v2542 = vrot.slane %v2537, %v2541
    %vm2544 = vcmask 523264
    %v2546 = vsel %vm2544, %v2525, 0
    %v2549 = vsel %vm2544, %v2526, 0
    %v2552 = vsel %vm2544, %v2527, 0
    %v2555 = vsel %vm2544, %v2528, 0
    %2557 = vmatprep.subr.mxu0 0.0
    %2558 = vmatpush1.msra.mxu0 0.0
    %2559 = vmatprep.subr.mxu0 0.0
    %2560 = vmatpush1.msra.mxu0 0.0
    %2561 = vmatprep.subr.mxu0 0.0
    %2562 = vmatpush1.msra.mxu0 0.0
    %2563 = vmatprep.subr.mxu0 0.0
    %2564 = vmatpush1.msra.mxu0 0.0
    %2565 = vmatprep.subr.mxu0 0.0
    %2566 = vmatpush1.msra.mxu0 0.0
    %2567 = vmatprep.subr.mxu0 0.0
    %2568 = vmatpush1.msra.mxu0 0.0
    %2569 = vmatprep.subr.mxu0 0.0
    %2570 = vmatpush1.msra.mxu0 0.0
    %2571 = vmatprep.subr.mxu0 0.0
    %2572 = vmatpush1.msra.mxu0 0.0
    %2573 = vmatprep.subr.mxu0 0.0
    %2574 = vmatpush1.msra.mxu0 %v2536
    %2575 = vmatprep.subr.mxu0 0.0
    %2576 = vmatpush1.msra.mxu0 %v2535
    %2577 = vmatprep.subr.mxu0 0.0
    %2578 = vmatpush1.msra.mxu0 %v2534
    %2579 = vmatprep.subr.mxu0 0.0
    %2580 = vmatpush1.msra.mxu0 %v2533
    %2581 = vmatprep.subr.mxu0 0.0
    %2582 = vmatpush1.msra.mxu0 %v2532
    %2583 = vmatprep.subr.mxu0 0.0
    %2584 = vmatpush1.msra.mxu0 %v2531
    %2585 = vmatprep.subr.mxu0 0.0
    %2586 = vmatpush1.msra.mxu0 %v2530
    %2587 = vmatprep.subr.mxu0 0.0
    %2588 = vmatpush1.msra.mxu0 %v2529
    %2589 = vmatprep.subr.mxu0 0.0
    %2590 = vmatpush2.msra.mxu0 0.0
    %2591 = vmatprep.subr.mxu0 0.0
    %2592 = vmatpush2.msra.mxu0 0.0
    %2593 = vmatprep.subr.mxu0 0.0
    %2594 = vmatpush2.msra.mxu0 0.0
    %2595 = vmatprep.subr.mxu0 0.0
    %2596 = vmatpush2.msra.mxu0 0.0
    %2597 = vmatprep.subr.mxu0 0.0
    %2598 = vmatpush2.msra.mxu0 0.0
    %2599 = vmatprep.subr.mxu0 0.0
    %2600 = vmatpush2.msra.mxu0 0.0
    %2601 = vmatprep.subr.mxu0 0.0
    %2602 = vmatpush2.msra.mxu0 0.0
    %2603 = vmatprep.subr.mxu0 0.0
    %2604 = vmatpush2.msra.mxu0 0.0
    %2605 = vmatprep.subr.mxu0 0.0
    %2606 = vmatpush2.msra.mxu0 0.0
    %2607 = vmatprep.subr.mxu0 0.0
    %2608 = vmatpush2.msra.mxu0 0.0
    %2609 = vmatprep.subr.mxu0 0.0
    %2610 = vmatpush2.msra.mxu0 0.0
    %2611 = vmatprep.subr.mxu0 0.0
    %2612 = vmatpush2.msra.mxu0 0.0
    %2613 = vmatprep.subr.mxu0 0.0
    %2614 = vmatpush2.msra.mxu0 0.0
    %2615 = vmatprep.subr.mxu0 0.0
    %2616 = vmatpush2.msra.mxu0 0.0
    %2617 = vmatprep.subr.mxu0 0.0
    %2618 = vmatpush2.msra.mxu0 0.0
    %2619 = vmatprep.subr.mxu0 0.0
    %2620 = vmatpush2.msra.mxu0 0.0
    %2621 = vmatprep.mubr.f32.mxu0 0.0
    %2622 = vmatmul.mubr.f32.gmra.mxu0 %v2546
    %v2623 = vpop.f32.mrf.mxu0
    %v2624 = vadd.f32 %v2542, %v2623
    %v2625 = vpop.f32.mrf.mxu0
    %2626 = vmatprep.mubr.f32.mxu0 0.0
    %2627 = vmatmul.mubr.f32.gmra.mxu0 %v2549
    %v2628 = vpop.f32.mrf.mxu0
    %v2629 = vadd.f32 %v2542, %v2628
    %v2630 = vpop.f32.mrf.mxu0
    %2631 = vmatprep.mubr.f32.mxu0 0.0
    %2632 = vmatmul.mubr.f32.gmra.mxu0 %v2552
    %v2633 = vpop.f32.mrf.mxu0
    %v2634 = vadd.f32 %v2542, %v2633
    %v2635 = vpop.f32.mrf.mxu0
    %2636 = vmatprep.mubr.f32.mxu0 0.0
    %2637 = vmatmul.mubr.f32.gmra.mxu0 %v2555
    %v2638 = vpop.f32.mrf.mxu0
    %v2639 = vadd.f32 %v2542, %v2638
    %v2640 = vpop.f32.mrf.mxu0
    %2641 = vdwg.mxu0
    %v2642 = vadd.f32 %v2413, %v2624
    %v2643 = vadd.f32 %v2414, %v2629
    %v2644 = vadd.f32 %v2415, %v2634
    %v2645 = vadd.f32 %v2416, %v2639
    %v2646 = vld [vmem:[%s14] sm:$0x1]
    %v2647 = vld [vmem:[%s15] sm:$0x1]
    %v2648 = vsel %vm187, %v2642, 0.0
    %2649 = vadd.xlane.f32.xlu0 %v2648
    %v2650 = vpop.xlane.xlu0 %2649
    %v2651 = vsel %vm187, %v2643, 0.0
    %2652 = vadd.xlane.f32.xlu0 %v2651
    %v2653 = vpop.xlane.xlu0 %2652
    %v2654 = vsel %vm187, %v2644, 0.0
    %2655 = vadd.xlane.f32.xlu0 %v2654
    %v2656 = vpop.xlane.xlu0 %2655
    %v2657 = vsel %vm187, %v2645, 0.0
    %2658 = vadd.xlane.f32.xlu0 %v2657
    %v2659 = vpop.xlane.xlu0 %2658
    %v2660 = vmul.f32 %v2650, %v2356
    %v2661 = vmul.f32 %v2653, %v2356
    %v2662 = vmul.f32 %v2656, %v2356
    %v2663 = vmul.f32 %v2659, %v2356
    %v2664 = vsub.f32 %v2642, %v2660
    %v2665 = vsub.f32 %v2643, %v2661
    %v2666 = vsub.f32 %v2644, %v2662
    %v2667 = vsub.f32 %v2645, %v2663
    %v2668 = vmul.f32 %v2664, %v2664
    %v2669 = vmul.f32 %v2665, %v2665
    %v2670 = vmul.f32 %v2666, %v2666
    %v2671 = vmul.f32 %v2667, %v2667
    %v2672 = vsel %vm187, %v2668, 0.0
    %2673 = vadd.xlane.f32.xlu0 %v2672
    %v2674 = vpop.xlane.xlu0 %2673
    %v2675 = vsel %vm187, %v2669, 0.0
    %2676 = vadd.xlane.f32.xlu0 %v2675
    %v2677 = vpop.xlane.xlu0 %2676
    %v2678 = vsel %vm187, %v2670, 0.0
    %2679 = vadd.xlane.f32.xlu0 %v2678
    %v2680 = vpop.xlane.xlu0 %2679
    %v2681 = vsel %vm187, %v2671, 0.0
    %2682 = vadd.xlane.f32.xlu0 %v2681
    %v2683 = vpop.xlane.xlu0 %2682
    %v2684 = vmul.f32 %v2674, %v2356
    %v2685 = vmul.f32 %v2677, %v2356
    %v2686 = vmul.f32 %v2680, %v2356
    %v2687 = vmul.f32 %v2683, %v2356
    %v2688 = vadd.f32 %v2684, 1e-05
    %v2689 = vadd.f32 %v2685, 1e-05
    %v2690 = vadd.f32 %v2686, 1e-05
    %v2691 = vadd.f32 %v2687, 1e-05
    %v2692 = vrsqrt.pop %v2688
    %v2693 = vrsqrt.pop %v2689
    %v2694 = vrsqrt.pop %v2690
    %v2695 = vrsqrt.pop %v2691
    %v2696 = vmul.f32 %v2664, %v2692
    %v2697 = vmul.f32 %v2665, %v2693
    %v2698 = vmul.f32 %v2666, %v2694
    %v2699 = vmul.f32 %v2667, %v2695
    %v2701 = vlaneseq
    %v2702 = vshrl.u32 %v2701, 7
    %v2703 = vsub.s32 0, %v2702
    %v2704 = vrot.slane %v2646, %v2703
    %v2706 = vmul.f32 %v2696, %v2704
    %v2707 = vmul.f32 %v2697, %v2704
    %v2708 = vmul.f32 %v2698, %v2704
    %v2709 = vmul.f32 %v2699, %v2704
    %v2711 = vlaneseq
    %v2712 = vshrl.u32 %v2711, 7
    %v2713 = vsub.s32 0, %v2712
    %v2714 = vrot.slane %v2647, %v2713
    %v2716 = vadd.f32 %v2706, %v2714
    %v2717 = vadd.f32 %v2707, %v2714
    %v2718 = vadd.f32 %v2708, %v2714
    %v2719 = vadd.f32 %v2709, %v2714
    %s2720 = scalar_lea.vmem %s4, 32
    %v2721 = vld [vmem:[%s2720] sm:$0xff]
    %v2722 = vld [vmem:[%s2720 + $0x8] sm:$0xff]
    %v2723 = vld [vmem:[%s2720 + $0x10] sm:$0xff]
    %v2724 = vld [vmem:[%s2720 + $0x18] sm:$0xff]
    %s2725 = scalar_lea.vmem %s5, 1
    %v2726 = vld [vmem:[%s2725] sm:$0x1]
    %v2728 = vlaneseq
    %v2729 = vshrl.u32 %v2728, 7
    %v2730 = vsub.s32 0, %v2729
    %v2731 = vrot.slane %v2726, %v2730
    %v2734 = vsel %vm187, %v2716, 0
    %v2737 = vsel %vm187, %v2717, 0
    %v2740 = vsel %vm187, %v2718, 0
    %v2743 = vsel %vm187, %v2719, 0
    %2745 = vmatprep.subr.mxu0 0.0
    %2746 = vmatpush1.msra.mxu0 0.0
    %2747 = vmatprep.subr.mxu0 0.0
    %2748 = vmatpush1.msra.mxu0 0.0
    %2749 = vmatprep.subr.mxu0 0.0
    %2750 = vmatpush1.msra.mxu0 0.0
    %2751 = vmatprep.subr.mxu0 0.0
    %2752 = vmatpush1.msra.mxu0 0.0
    %2753 = vmatprep.subr.mxu0 0.0
    %2754 = vmatpush1.msra.mxu0 0.0
    %2755 = vmatprep.subr.mxu0 0.0
    %2756 = vmatpush1.msra.mxu0 0.0
    %2757 = vmatprep.subr.mxu0 0.0
    %2758 = vmatpush1.msra.mxu0 0.0
    %2759 = vmatprep.subr.mxu0 0.0
    %2760 = vmatpush1.msra.mxu0 0.0
    %2761 = vmatprep.subr.mxu0 0.0
    %2762 = vmatpush1.msra.mxu0 0.0
    %2763 = vmatprep.subr.mxu0 0.0
    %2764 = vmatpush1.msra.mxu0 0.0
    %2765 = vmatprep.subr.mxu0 0.0
    %2766 = vmatpush1.msra.mxu0 0.0
    %2767 = vmatprep.subr.mxu0 0.0
    %2768 = vmatpush1.msra.mxu0 0.0
    %2769 = vmatprep.subr.mxu0 0.0
    %2770 = vmatpush1.msra.mxu0 %v2724
    %2771 = vmatprep.subr.mxu0 0.0
    %2772 = vmatpush1.msra.mxu0 %v2723
    %2773 = vmatprep.subr.mxu0 0.0
    %2774 = vmatpush1.msra.mxu0 %v2722
    %2775 = vmatprep.subr.mxu0 0.0
    %2776 = vmatpush1.msra.mxu0 %v2721
    %2777 = vmatprep.subr.mxu0 0.0
    %2778 = vmatpush2.msra.mxu0 0.0
    %2779 = vmatprep.subr.mxu0 0.0
    %2780 = vmatpush2.msra.mxu0 0.0
    %2781 = vmatprep.subr.mxu0 0.0
    %2782 = vmatpush2.msra.mxu0 0.0
    %2783 = vmatprep.subr.mxu0 0.0
    %2784 = vmatpush2.msra.mxu0 0.0
    %2785 = vmatprep.subr.mxu0 0.0
    %2786 = vmatpush2.msra.mxu0 0.0
    %2787 = vmatprep.subr.mxu0 0.0
    %2788 = vmatpush2.msra.mxu0 0.0
    %2789 = vmatprep.subr.mxu0 0.0
    %2790 = vmatpush2.msra.mxu0 0.0
    %2791 = vmatprep.subr.mxu0 0.0
    %2792 = vmatpush2.msra.mxu0 0.0
    %2793 = vmatprep.subr.mxu0 0.0
    %2794 = vmatpush2.msra.mxu0 0.0
    %2795 = vmatprep.subr.mxu0 0.0
    %2796 = vmatpush2.msra.mxu0 0.0
    %2797 = vmatprep.subr.mxu0 0.0
    %2798 = vmatpush2.msra.mxu0 0.0
    %2799 = vmatprep.subr.mxu0 0.0
    %2800 = vmatpush2.msra.mxu0 0.0
    %2801 = vmatprep.subr.mxu0 0.0
    %2802 = vmatpush2.msra.mxu0 0.0
    %2803 = vmatprep.subr.mxu0 0.0
    %2804 = vmatpush2.msra.mxu0 0.0
    %2805 = vmatprep.subr.mxu0 0.0
    %2806 = vmatpush2.msra.mxu0 0.0
    %2807 = vmatprep.subr.mxu0 0.0
    %2808 = vmatpush2.msra.mxu0 0.0
    %2809 = vmatprep.mubr.f32.mxu0 0.0
    %2810 = vmatmul.mubr.f32.gmra.mxu0 %v2734
    %v2811 = vpop.f32.mrf.mxu0
    %v2812 = vadd.f32 %v2731, %v2811
    %v2813 = vpop.f32.mrf.mxu0
    %2814 = vmatprep.mubr.f32.mxu0 0.0
    %2815 = vmatmul.mubr.f32.gmra.mxu0 %v2737
    %v2816 = vpop.f32.mrf.mxu0
    %v2817 = vadd.f32 %v2731, %v2816
    %v2818 = vpop.f32.mrf.mxu0
    %2819 = vmatprep.mubr.f32.mxu0 0.0
    %2820 = vmatmul.mubr.f32.gmra.mxu0 %v2740
    %v2821 = vpop.f32.mrf.mxu0
    %v2822 = vadd.f32 %v2731, %v2821
    %v2823 = vpop.f32.mrf.mxu0
    %2824 = vmatprep.mubr.f32.mxu0 0.0
    %2825 = vmatmul.mubr.f32.gmra.mxu0 %v2743
    %v2826 = vpop.f32.mrf.mxu0
    %v2827 = vadd.f32 %v2731, %v2826
    %v2828 = vpop.f32.mrf.mxu0
    %2829 = vdwg.mxu0
    %s2830 = scalar_lea.vmem %s6, 32
    %v2831 = vld [vmem:[%s2830] sm:$0xff]
    %v2832 = vld [vmem:[%s2830 + $0x8] sm:$0xff]
    %v2833 = vld [vmem:[%s2830 + $0x10] sm:$0xff]
    %v2834 = vld [vmem:[%s2830 + $0x18] sm:$0xff]
    %2837 = vrot.lane.b32.xlu0 %v2812, 96
    %v2838 = vpop.permute.xlu0 %2837
    %2839 = vrot.lane.b32.xlu0 %v2817, 96
    %v2840 = vpop.permute.xlu0 %2839
    %v2841 = vsel %vm295, %v2812, 0
    %v2843 = vsel %vm295, %v2817, 0
    %v2845 = vsel %vm295, %v2838, 0
    %v2847 = vsel %vm295, %v2840, 0
    %2849 = vmatprep.subr.mxu0 0.0
    %2850 = vmatpush1.xpose.msra.mxu0 0.0
    %2851 = vmatprep.subr.mxu0 0.0
    %2852 = vmatpush1.xpose.msra.mxu0 0.0
    %2853 = vmatprep.subr.mxu0 0.0
    %2854 = vmatpush1.xpose.msra.mxu0 0.0
    %2855 = vmatprep.subr.mxu0 0.0
    %2856 = vmatpush1.xpose.msra.mxu0 0.0
    %2857 = vmatprep.subr.mxu0 0.0
    %2858 = vmatpush1.xpose.msra.mxu0 0.0
    %2859 = vmatprep.subr.mxu0 0.0
    %2860 = vmatpush1.xpose.msra.mxu0 0.0
    %2861 = vmatprep.subr.mxu0 0.0
    %2862 = vmatpush1.xpose.msra.mxu0 0.0
    %2863 = vmatprep.subr.mxu0 0.0
    %2864 = vmatpush1.xpose.msra.mxu0 0.0
    %2865 = vmatprep.subr.mxu0 0.0
    %2866 = vmatpush1.xpose.msra.mxu0 0.0
    %2867 = vmatprep.subr.mxu0 0.0
    %2868 = vmatpush1.xpose.msra.mxu0 0.0
    %2869 = vmatprep.subr.mxu0 0.0
    %2870 = vmatpush1.xpose.msra.mxu0 0.0
    %2871 = vmatprep.subr.mxu0 0.0
    %2872 = vmatpush1.xpose.msra.mxu0 0.0
    %2873 = vmatprep.subr.mxu0 0.0
    %2874 = vmatpush1.xpose.msra.mxu0 0.0
    %2875 = vmatprep.subr.mxu0 0.0
    %2876 = vmatpush1.xpose.msra.mxu0 0.0
    %2877 = vmatprep.subr.mxu0 0.0
    %2878 = vmatpush1.xpose.msra.mxu0 %v2847
    %2879 = vmatprep.subr.mxu0 0.0
    %2880 = vmatpush1.xpose.msra.mxu0 %v2845
    %2881 = vmatprep.subr.mxu0 0.0
    %2882 = vmatpush2.xpose.msra.mxu0 0.0
    %2883 = vmatprep.subr.mxu0 0.0
    %2884 = vmatpush2.xpose.msra.mxu0 0.0
    %2885 = vmatprep.subr.mxu0 0.0
    %2886 = vmatpush2.xpose.msra.mxu0 0.0
    %2887 = vmatprep.subr.mxu0 0.0
    %2888 = vmatpush2.xpose.msra.mxu0 0.0
    %2889 = vmatprep.subr.mxu0 0.0
    %2890 = vmatpush2.xpose.msra.mxu0 0.0
    %2891 = vmatprep.subr.mxu0 0.0
    %2892 = vmatpush2.xpose.msra.mxu0 0.0
    %2893 = vmatprep.subr.mxu0 0.0
    %2894 = vmatpush2.xpose.msra.mxu0 0.0
    %2895 = vmatprep.subr.mxu0 0.0
    %2896 = vmatpush2.xpose.msra.mxu0 0.0
    %2897 = vmatprep.subr.mxu0 0.0
    %2898 = vmatpush2.xpose.msra.mxu0 0.0
    %2899 = vmatprep.subr.mxu0 0.0
    %2900 = vmatpush2.xpose.msra.mxu0 0.0
    %2901 = vmatprep.subr.mxu0 0.0
    %2902 = vmatpush2.xpose.msra.mxu0 0.0
    %2903 = vmatprep.subr.mxu0 0.0
    %2904 = vmatpush2.xpose.msra.mxu0 0.0
    %2905 = vmatprep.subr.mxu0 0.0
    %2906 = vmatpush2.xpose.msra.mxu0 0.0
    %2907 = vmatprep.subr.mxu0 0.0
    %2908 = vmatpush2.xpose.msra.mxu0 0.0
    %2909 = vmatprep.subr.mxu0 0.0
    %2910 = vmatpush2.xpose.msra.mxu0 0.0
    %2911 = vmatprep.subr.mxu0 0.0
    %2912 = vmatpush2.xpose.msra.mxu0 0.0
    %2913 = vmatprep.mubr.f32.mxu0 0.0
    %2914 = vmatmul.mubr.f32.gmra.mxu0 %v2841
    %v2915 = vpop.f32.mrf.mxu0
    %v2916 = vadd.f32 0.0, %v2915
    %v2917 = vpop.f32.mrf.mxu0
    %2918 = vmatprep.mubr.f32.mxu0 0.0
    %2919 = vmatmul.mubr.f32.gmra.mxu0 %v2843
    %v2920 = vpop.f32.mrf.mxu0
    %v2921 = vadd.f32 0.0, %v2920
    %v2922 = vpop.f32.mrf.mxu0
    %2923 = vdwg.mxu0
    %2926 = vrot.lane.b32.xlu0 %v2822, 96
    %v2927 = vpop.permute.xlu0 %2926
    %2928 = vrot.lane.b32.xlu0 %v2827, 96
    %v2929 = vpop.permute.xlu0 %2928
    %v2930 = vsel %vm295, %v2822, 0
    %v2932 = vsel %vm295, %v2827, 0
    %v2934 = vsel %vm295, %v2927, 0
    %v2936 = vsel %vm295, %v2929, 0
    %2938 = vmatprep.subr.mxu0 0.0
    %2939 = vmatpush1.xpose.msra.mxu0 0.0
    %2940 = vmatprep.subr.mxu0 0.0
    %2941 = vmatpush1.xpose.msra.mxu0 0.0
    %2942 = vmatprep.subr.mxu0 0.0
    %2943 = vmatpush1.xpose.msra.mxu0 0.0
    %2944 = vmatprep.subr.mxu0 0.0
    %2945 = vmatpush1.xpose.msra.mxu0 0.0
    %2946 = vmatprep.subr.mxu0 0.0
    %2947 = vmatpush1.xpose.msra.mxu0 0.0
    %2948 = vmatprep.subr.mxu0 0.0
    %2949 = vmatpush1.xpose.msra.mxu0 0.0
    %2950 = vmatprep.subr.mxu0 0.0
    %2951 = vmatpush1.xpose.msra.mxu0 0.0
    %2952 = vmatprep.subr.mxu0 0.0
    %2953 = vmatpush1.xpose.msra.mxu0 0.0
    %2954 = vmatprep.subr.mxu0 0.0
    %2955 = vmatpush1.xpose.msra.mxu0 0.0
    %2956 = vmatprep.subr.mxu0 0.0
    %2957 = vmatpush1.xpose.msra.mxu0 0.0
    %2958 = vmatprep.subr.mxu0 0.0
    %2959 = vmatpush1.xpose.msra.mxu0 0.0
    %2960 = vmatprep.subr.mxu0 0.0
    %2961 = vmatpush1.xpose.msra.mxu0 0.0
    %2962 = vmatprep.subr.mxu0 0.0
    %2963 = vmatpush1.xpose.msra.mxu0 0.0
    %2964 = vmatprep.subr.mxu0 0.0
    %2965 = vmatpush1.xpose.msra.mxu0 0.0
    %2966 = vmatprep.subr.mxu0 0.0
    %2967 = vmatpush1.xpose.msra.mxu0 %v2936
    %2968 = vmatprep.subr.mxu0 0.0
    %2969 = vmatpush1.xpose.msra.mxu0 %v2934
    %2970 = vmatprep.subr.mxu0 0.0
    %2971 = vmatpush2.xpose.msra.mxu0 0.0
    %2972 = vmatprep.subr.mxu0 0.0
    %2973 = vmatpush2.xpose.msra.mxu0 0.0
    %2974 = vmatprep.subr.mxu0 0.0
    %2975 = vmatpush2.xpose.msra.mxu0 0.0
    %2976 = vmatprep.subr.mxu0 0.0
    %2977 = vmatpush2.xpose.msra.mxu0 0.0
    %2978 = vmatprep.subr.mxu0 0.0
    %2979 = vmatpush2.xpose.msra.mxu0 0.0
    %2980 = vmatprep.subr.mxu0 0.0
    %2981 = vmatpush2.xpose.msra.mxu0 0.0
    %2982 = vmatprep.subr.mxu0 0.0
    %2983 = vmatpush2.xpose.msra.mxu0 0.0
    %2984 = vmatprep.subr.mxu0 0.0
    %2985 = vmatpush2.xpose.msra.mxu0 0.0
    %2986 = vmatprep.subr.mxu0 0.0
    %2987 = vmatpush2.xpose.msra.mxu0 0.0
    %2988 = vmatprep.subr.mxu0 0.0
    %2989 = vmatpush2.xpose.msra.mxu0 0.0
    %2990 = vmatprep.subr.mxu0 0.0
    %2991 = vmatpush2.xpose.msra.mxu0 0.0
    %2992 = vmatprep.subr.mxu0 0.0
    %2993 = vmatpush2.xpose.msra.mxu0 0.0
    %2994 = vmatprep.subr.mxu0 0.0
    %2995 = vmatpush2.xpose.msra.mxu0 0.0
    %2996 = vmatprep.subr.mxu0 0.0
    %2997 = vmatpush2.xpose.msra.mxu0 0.0
    %2998 = vmatprep.subr.mxu0 0.0
    %2999 = vmatpush2.xpose.msra.mxu0 0.0
    %3000 = vmatprep.subr.mxu0 0.0
    %3001 = vmatpush2.xpose.msra.mxu0 0.0
    %3002 = vmatprep.mubr.f32.mxu0 0.0
    %3003 = vmatmul.mubr.f32.gmra.mxu0 %v2930
    %v3004 = vpop.f32.mrf.mxu0
    %v3005 = vadd.f32 0.0, %v3004
    %v3006 = vpop.f32.mrf.mxu0
    %3007 = vmatprep.mubr.f32.mxu0 0.0
    %3008 = vmatmul.mubr.f32.gmra.mxu0 %v2932
    %v3009 = vpop.f32.mrf.mxu0
    %v3010 = vadd.f32 0.0, %v3009
    %v3011 = vpop.f32.mrf.mxu0
    %3012 = vdwg.mxu0
    %v3013 = vmul.f32 %v2916, 0.35355338
    %v3014 = vmul.f32 %v2921, 0.35355338
    %v3015 = vmul.f32 %v3005, 0.35355338
    %v3016 = vmul.f32 %v3010, 0.35355338
    %v3017 = vadd.f32 %v3013, %v477
    %v3018 = vadd.f32 %v3014, %v477
    %v3019 = vadd.f32 %v3015, %v481
    %v3020 = vadd.f32 %v3016, %v481
    %v3021 = vsel %vm488, %v3017, -inf
    %3022 = vmax.xlane.f32.xlu0 %v3021
    %v3023 = vpop.xlane.xlu0 %3022
    %v3024 = vsel %vm488, %v3018, -inf
    %3025 = vmax.xlane.f32.xlu0 %v3024
    %v3026 = vpop.xlane.xlu0 %3025
    %v3027 = vsel %vm488, %v3019, -inf
    %3028 = vmax.xlane.f32.xlu0 %v3027
    %v3029 = vpop.xlane.xlu0 %3028
    %v3030 = vsel %vm488, %v3020, -inf
    %3031 = vmax.xlane.f32.xlu0 %v3030
    %v3032 = vpop.xlane.xlu0 %3031
    %v3033 = vsub.f32 %v3017, %v3023
    %v3034 = vsub.f32 %v3018, %v3026
    %v3035 = vsub.f32 %v3019, %v3029
    %v3036 = vsub.f32 %v3020, %v3032
    %v3037 = vmul.f32 %v3033, 1.442695
    %v3038 = vpow.pop %v3037
    %v3039 = vmul.f32 %v3034, 1.442695
    %v3040 = vpow.pop %v3039
    %v3041 = vmul.f32 %v3035, 1.442695
    %v3042 = vpow.pop %v3041
    %v3043 = vmul.f32 %v3036, 1.442695
    %v3044 = vpow.pop %v3043
    %v3045 = vsel %vm488, %v3038, 0.0
    %3046 = vadd.xlane.f32.xlu0 %v3045
    %v3047 = vpop.xlane.xlu0 %3046
    %v3048 = vsel %vm488, %v3040, 0.0
    %3049 = vadd.xlane.f32.xlu0 %v3048
    %v3050 = vpop.xlane.xlu0 %3049
    %v3051 = vsel %vm488, %v3042, 0.0
    %3052 = vadd.xlane.f32.xlu0 %v3051
    %v3053 = vpop.xlane.xlu0 %3052
    %v3054 = vsel %vm488, %v3044, 0.0
    %3055 = vadd.xlane.f32.xlu0 %v3054
    %v3056 = vpop.xlane.xlu0 %3055
    %v3057 = vrcp.pop %v3047
    %v3058 = vrcp.pop %v3050
    %v3059 = vrcp.pop %v3053
    %v3060 = vrcp.pop %v3056
    %v3061 = vmul.f32 %v3038, %v3057
    %v3062 = vmul.f32 %v3040, %v3058
    %v3063 = vmul.f32 %v3042, %v3059
    %v3064 = vmul.f32 %v3044, %v3060
    %3065 = vrot.lane.b32.xlu0 %v2812, 64
    %v3066 = vpop.permute.xlu0 %3065
    %3067 = vrot.lane.b32.xlu0 %v2817, 64
    %v3068 = vpop.permute.xlu0 %3067
    %v3072 = vsel %vm488, %v3061, 0
    %v3075 = vsel %vm488, %v3062, 0
    %3077 = vmatprep.subr.mxu0 0.0
    %3078 = vmatpush1.msra.mxu0 0.0
    %3079 = vmatprep.subr.mxu0 0.0
    %3080 = vmatpush1.msra.mxu0 0.0
    %3081 = vmatprep.subr.mxu0 0.0
    %3082 = vmatpush1.msra.mxu0 0.0
    %3083 = vmatprep.subr.mxu0 0.0
    %3084 = vmatpush1.msra.mxu0 0.0
    %3085 = vmatprep.subr.mxu0 0.0
    %3086 = vmatpush1.msra.mxu0 0.0
    %3087 = vmatprep.subr.mxu0 0.0
    %3088 = vmatpush1.msra.mxu0 0.0
    %3089 = vmatprep.subr.mxu0 0.0
    %3090 = vmatpush1.msra.mxu0 0.0
    %3091 = vmatprep.subr.mxu0 0.0
    %3092 = vmatpush1.msra.mxu0 0.0
    %3093 = vmatprep.subr.mxu0 0.0
    %3094 = vmatpush1.msra.mxu0 0.0
    %3095 = vmatprep.subr.mxu0 0.0
    %3096 = vmatpush1.msra.mxu0 0.0
    %3097 = vmatprep.subr.mxu0 0.0
    %3098 = vmatpush1.msra.mxu0 0.0
    %3099 = vmatprep.subr.mxu0 0.0
    %3100 = vmatpush1.msra.mxu0 0.0
    %3101 = vmatprep.subr.mxu0 0.0
    %3102 = vmatpush1.msra.mxu0 0.0
    %3103 = vmatprep.subr.mxu0 0.0
    %3104 = vmatpush1.msra.mxu0 0.0
    %3105 = vmatprep.subr.mxu0 0.0
    %3106 = vmatpush1.msra.mxu0 %v3068
    %3107 = vmatprep.subr.mxu0 0.0
    %3108 = vmatpush1.msra.mxu0 %v3066
    %3109 = vmatprep.subr.mxu0 0.0
    %3110 = vmatpush2.msra.mxu0 0.0
    %3111 = vmatprep.subr.mxu0 0.0
    %3112 = vmatpush2.msra.mxu0 0.0
    %3113 = vmatprep.subr.mxu0 0.0
    %3114 = vmatpush2.msra.mxu0 0.0
    %3115 = vmatprep.subr.mxu0 0.0
    %3116 = vmatpush2.msra.mxu0 0.0
    %3117 = vmatprep.subr.mxu0 0.0
    %3118 = vmatpush2.msra.mxu0 0.0
    %3119 = vmatprep.subr.mxu0 0.0
    %3120 = vmatpush2.msra.mxu0 0.0
    %3121 = vmatprep.subr.mxu0 0.0
    %3122 = vmatpush2.msra.mxu0 0.0
    %3123 = vmatprep.subr.mxu0 0.0
    %3124 = vmatpush2.msra.mxu0 0.0
    %3125 = vmatprep.subr.mxu0 0.0
    %3126 = vmatpush2.msra.mxu0 0.0
    %3127 = vmatprep.subr.mxu0 0.0
    %3128 = vmatpush2.msra.mxu0 0.0
    %3129 = vmatprep.subr.mxu0 0.0
    %3130 = vmatpush2.msra.mxu0 0.0
    %3131 = vmatprep.subr.mxu0 0.0
    %3132 = vmatpush2.msra.mxu0 0.0
    %3133 = vmatprep.subr.mxu0 0.0
    %3134 = vmatpush2.msra.mxu0 0.0
    %3135 = vmatprep.subr.mxu0 0.0
    %3136 = vmatpush2.msra.mxu0 0.0
    %3137 = vmatprep.subr.mxu0 0.0
    %3138 = vmatpush2.msra.mxu0 0.0
    %3139 = vmatprep.subr.mxu0 0.0
    %3140 = vmatpush2.msra.mxu0 0.0
    %3141 = vmatprep.mubr.f32.mxu0 0.0
    %3142 = vmatmul.mubr.f32.gmra.mxu0 %v3072
    %v3143 = vpop.f32.mrf.mxu0
    %v3144 = vadd.f32 0.0, %v3143
    %v3145 = vpop.f32.mrf.mxu0
    %3146 = vmatprep.mubr.f32.mxu0 0.0
    %3147 = vmatmul.mubr.f32.gmra.mxu0 %v3075
    %v3148 = vpop.f32.mrf.mxu0
    %v3149 = vadd.f32 0.0, %v3148
    %v3150 = vpop.f32.mrf.mxu0
    %3151 = vdwg.mxu0
    %3152 = vrot.lane.b32.xlu0 %v2822, 64
    %v3153 = vpop.permute.xlu0 %3152
    %3154 = vrot.lane.b32.xlu0 %v2827, 64
    %v3155 = vpop.permute.xlu0 %3154
    %v3159 = vsel %vm488, %v3063, 0
    %v3162 = vsel %vm488, %v3064, 0
    %3164 = vmatprep.subr.mxu0 0.0
    %3165 = vmatpush1.msra.mxu0 0.0
    %3166 = vmatprep.subr.mxu0 0.0
    %3167 = vmatpush1.msra.mxu0 0.0
    %3168 = vmatprep.subr.mxu0 0.0
    %3169 = vmatpush1.msra.mxu0 0.0
    %3170 = vmatprep.subr.mxu0 0.0
    %3171 = vmatpush1.msra.mxu0 0.0
    %3172 = vmatprep.subr.mxu0 0.0
    %3173 = vmatpush1.msra.mxu0 0.0
    %3174 = vmatprep.subr.mxu0 0.0
    %3175 = vmatpush1.msra.mxu0 0.0
    %3176 = vmatprep.subr.mxu0 0.0
    %3177 = vmatpush1.msra.mxu0 0.0
    %3178 = vmatprep.subr.mxu0 0.0
    %3179 = vmatpush1.msra.mxu0 0.0
    %3180 = vmatprep.subr.mxu0 0.0
    %3181 = vmatpush1.msra.mxu0 0.0
    %3182 = vmatprep.subr.mxu0 0.0
    %3183 = vmatpush1.msra.mxu0 0.0
    %3184 = vmatprep.subr.mxu0 0.0
    %3185 = vmatpush1.msra.mxu0 0.0
    %3186 = vmatprep.subr.mxu0 0.0
    %3187 = vmatpush1.msra.mxu0 0.0
    %3188 = vmatprep.subr.mxu0 0.0
    %3189 = vmatpush1.msra.mxu0 0.0
    %3190 = vmatprep.subr.mxu0 0.0
    %3191 = vmatpush1.msra.mxu0 0.0
    %3192 = vmatprep.subr.mxu0 0.0
    %3193 = vmatpush1.msra.mxu0 %v3155
    %3194 = vmatprep.subr.mxu0 0.0
    %3195 = vmatpush1.msra.mxu0 %v3153
    %3196 = vmatprep.subr.mxu0 0.0
    %3197 = vmatpush2.msra.mxu0 0.0
    %3198 = vmatprep.subr.mxu0 0.0
    %3199 = vmatpush2.msra.mxu0 0.0
    %3200 = vmatprep.subr.mxu0 0.0
    %3201 = vmatpush2.msra.mxu0 0.0
    %3202 = vmatprep.subr.mxu0 0.0
    %3203 = vmatpush2.msra.mxu0 0.0
    %3204 = vmatprep.subr.mxu0 0.0
    %3205 = vmatpush2.msra.mxu0 0.0
    %3206 = vmatprep.subr.mxu0 0.0
    %3207 = vmatpush2.msra.mxu0 0.0
    %3208 = vmatprep.subr.mxu0 0.0
    %3209 = vmatpush2.msra.mxu0 0.0
    %3210 = vmatprep.subr.mxu0 0.0
    %3211 = vmatpush2.msra.mxu0 0.0
    %3212 = vmatprep.subr.mxu0 0.0
    %3213 = vmatpush2.msra.mxu0 0.0
    %3214 = vmatprep.subr.mxu0 0.0
    %3215 = vmatpush2.msra.mxu0 0.0
    %3216 = vmatprep.subr.mxu0 0.0
    %3217 = vmatpush2.msra.mxu0 0.0
    %3218 = vmatprep.subr.mxu0 0.0
    %3219 = vmatpush2.msra.mxu0 0.0
    %3220 = vmatprep.subr.mxu0 0.0
    %3221 = vmatpush2.msra.mxu0 0.0
    %3222 = vmatprep.subr.mxu0 0.0
    %3223 = vmatpush2.msra.mxu0 0.0
    %3224 = vmatprep.subr.mxu0 0.0
    %3225 = vmatpush2.msra.mxu0 0.0
    %3226 = vmatprep.subr.mxu0 0.0
    %3227 = vmatpush2.msra.mxu0 0.0
    %3228 = vmatprep.mubr.f32.mxu0 0.0
    %3229 = vmatmul.mubr.f32.gmra.mxu0 %v3159
    %v3230 = vpop.f32.mrf.mxu0
    %v3231 = vadd.f32 0.0, %v3230
    %v3232 = vpop.f32.mrf.mxu0
    %3233 = vmatprep.mubr.f32.mxu0 0.0
    %3234 = vmatmul.mubr.f32.gmra.mxu0 %v3162
    %v3235 = vpop.f32.mrf.mxu0
    %v3236 = vadd.f32 0.0, %v3235
    %v3237 = vpop.f32.mrf.mxu0
    %3238 = vdwg.mxu0
    %3239 = vrot.lane.b32.xlu0 %v2812, 120
    %v3240 = vpop.permute.xlu0 %3239
    %3241 = vrot.lane.b32.xlu0 %v2817, 120
    %v3242 = vpop.permute.xlu0 %3241
    %3243 = vrot.lane.b32.xlu0 %v2812, 88
    %v3244 = vpop.permute.xlu0 %3243
    %3245 = vrot.lane.b32.xlu0 %v2817, 88
    %v3246 = vpop.permute.xlu0 %3245
    %v3247 = vsel %vm295, %v3240, 0
    %v3249 = vsel %vm295, %v3242, 0
    %v3251 = vsel %vm295, %v3244, 0
    %v3253 = vsel %vm295, %v3246, 0
    %3255 = vmatprep.subr.mxu0 0.0
    %3256 = vmatpush1.xpose.msra.mxu0 0.0
    %3257 = vmatprep.subr.mxu0 0.0
    %3258 = vmatpush1.xpose.msra.mxu0 0.0
    %3259 = vmatprep.subr.mxu0 0.0
    %3260 = vmatpush1.xpose.msra.mxu0 0.0
    %3261 = vmatprep.subr.mxu0 0.0
    %3262 = vmatpush1.xpose.msra.mxu0 0.0
    %3263 = vmatprep.subr.mxu0 0.0
    %3264 = vmatpush1.xpose.msra.mxu0 0.0
    %3265 = vmatprep.subr.mxu0 0.0
    %3266 = vmatpush1.xpose.msra.mxu0 0.0
    %3267 = vmatprep.subr.mxu0 0.0
    %3268 = vmatpush1.xpose.msra.mxu0 0.0
    %3269 = vmatprep.subr.mxu0 0.0
    %3270 = vmatpush1.xpose.msra.mxu0 0.0
    %3271 = vmatprep.subr.mxu0 0.0
    %3272 = vmatpush1.xpose.msra.mxu0 0.0
    %3273 = vmatprep.subr.mxu0 0.0
    %3274 = vmatpush1.xpose.msra.mxu0 0.0
    %3275 = vmatprep.subr.mxu0 0.0
    %3276 = vmatpush1.xpose.msra.mxu0 0.0
    %3277 = vmatprep.subr.mxu0 0.0
    %3278 = vmatpush1.xpose.msra.mxu0 0.0
    %3279 = vmatprep.subr.mxu0 0.0
    %3280 = vmatpush1.xpose.msra.mxu0 0.0
    %3281 = vmatprep.subr.mxu0 0.0
    %3282 = vmatpush1.xpose.msra.mxu0 0.0
    %3283 = vmatprep.subr.mxu0 0.0
    %3284 = vmatpush1.xpose.msra.mxu0 %v3253
    %3285 = vmatprep.subr.mxu0 0.0
    %3286 = vmatpush1.xpose.msra.mxu0 %v3251
    %3287 = vmatprep.subr.mxu0 0.0
    %3288 = vmatpush2.xpose.msra.mxu0 0.0
    %3289 = vmatprep.subr.mxu0 0.0
    %3290 = vmatpush2.xpose.msra.mxu0 0.0
    %3291 = vmatprep.subr.mxu0 0.0
    %3292 = vmatpush2.xpose.msra.mxu0 0.0
    %3293 = vmatprep.subr.mxu0 0.0
    %3294 = vmatpush2.xpose.msra.mxu0 0.0
    %3295 = vmatprep.subr.mxu0 0.0
    %3296 = vmatpush2.xpose.msra.mxu0 0.0
    %3297 = vmatprep.subr.mxu0 0.0
    %3298 = vmatpush2.xpose.msra.mxu0 0.0
    %3299 = vmatprep.subr.mxu0 0.0
    %3300 = vmatpush2.xpose.msra.mxu0 0.0
    %3301 = vmatprep.subr.mxu0 0.0
    %3302 = vmatpush2.xpose.msra.mxu0 0.0
    %3303 = vmatprep.subr.mxu0 0.0
    %3304 = vmatpush2.xpose.msra.mxu0 0.0
    %3305 = vmatprep.subr.mxu0 0.0
    %3306 = vmatpush2.xpose.msra.mxu0 0.0
    %3307 = vmatprep.subr.mxu0 0.0
    %3308 = vmatpush2.xpose.msra.mxu0 0.0
    %3309 = vmatprep.subr.mxu0 0.0
    %3310 = vmatpush2.xpose.msra.mxu0 0.0
    %3311 = vmatprep.subr.mxu0 0.0
    %3312 = vmatpush2.xpose.msra.mxu0 0.0
    %3313 = vmatprep.subr.mxu0 0.0
    %3314 = vmatpush2.xpose.msra.mxu0 0.0
    %3315 = vmatprep.subr.mxu0 0.0
    %3316 = vmatpush2.xpose.msra.mxu0 0.0
    %3317 = vmatprep.subr.mxu0 0.0
    %3318 = vmatpush2.xpose.msra.mxu0 0.0
    %3319 = vmatprep.mubr.f32.mxu0 0.0
    %3320 = vmatmul.mubr.f32.gmra.mxu0 %v3247
    %v3321 = vpop.f32.mrf.mxu0
    %v3322 = vadd.f32 0.0, %v3321
    %v3323 = vpop.f32.mrf.mxu0
    %3324 = vmatprep.mubr.f32.mxu0 0.0
    %3325 = vmatmul.mubr.f32.gmra.mxu0 %v3249
    %v3326 = vpop.f32.mrf.mxu0
    %v3327 = vadd.f32 0.0, %v3326
    %v3328 = vpop.f32.mrf.mxu0
    %3329 = vdwg.mxu0
    %3330 = vrot.lane.b32.xlu0 %v2822, 120
    %v3331 = vpop.permute.xlu0 %3330
    %3332 = vrot.lane.b32.xlu0 %v2827, 120
    %v3333 = vpop.permute.xlu0 %3332
    %3334 = vrot.lane.b32.xlu0 %v2822, 88
    %v3335 = vpop.permute.xlu0 %3334
    %3336 = vrot.lane.b32.xlu0 %v2827, 88
    %v3337 = vpop.permute.xlu0 %3336
    %v3338 = vsel %vm295, %v3331, 0
    %v3340 = vsel %vm295, %v3333, 0
    %v3342 = vsel %vm295, %v3335, 0
    %v3344 = vsel %vm295, %v3337, 0
    %3346 = vmatprep.subr.mxu0 0.0
    %3347 = vmatpush1.xpose.msra.mxu0 0.0
    %3348 = vmatprep.subr.mxu0 0.0
    %3349 = vmatpush1.xpose.msra.mxu0 0.0
    %3350 = vmatprep.subr.mxu0 0.0
    %3351 = vmatpush1.xpose.msra.mxu0 0.0
    %3352 = vmatprep.subr.mxu0 0.0
    %3353 = vmatpush1.xpose.msra.mxu0 0.0
    %3354 = vmatprep.subr.mxu0 0.0
    %3355 = vmatpush1.xpose.msra.mxu0 0.0
    %3356 = vmatprep.subr.mxu0 0.0
    %3357 = vmatpush1.xpose.msra.mxu0 0.0
    %3358 = vmatprep.subr.mxu0 0.0
    %3359 = vmatpush1.xpose.msra.mxu0 0.0
    %3360 = vmatprep.subr.mxu0 0.0
    %3361 = vmatpush1.xpose.msra.mxu0 0.0
    %3362 = vmatprep.subr.mxu0 0.0
    %3363 = vmatpush1.xpose.msra.mxu0 0.0
    %3364 = vmatprep.subr.mxu0 0.0
    %3365 = vmatpush1.xpose.msra.mxu0 0.0
    %3366 = vmatprep.subr.mxu0 0.0
    %3367 = vmatpush1.xpose.msra.mxu0 0.0
    %3368 = vmatprep.subr.mxu0 0.0
    %3369 = vmatpush1.xpose.msra.mxu0 0.0
    %3370 = vmatprep.subr.mxu0 0.0
    %3371 = vmatpush1.xpose.msra.mxu0 0.0
    %3372 = vmatprep.subr.mxu0 0.0
    %3373 = vmatpush1.xpose.msra.mxu0 0.0
    %3374 = vmatprep.subr.mxu0 0.0
    %3375 = vmatpush1.xpose.msra.mxu0 %v3344
    %3376 = vmatprep.subr.mxu0 0.0
    %3377 = vmatpush1.xpose.msra.mxu0 %v3342
    %3378 = vmatprep.subr.mxu0 0.0
    %3379 = vmatpush2.xpose.msra.mxu0 0.0
    %3380 = vmatprep.subr.mxu0 0.0
    %3381 = vmatpush2.xpose.msra.mxu0 0.0
    %3382 = vmatprep.subr.mxu0 0.0
    %3383 = vmatpush2.xpose.msra.mxu0 0.0
    %3384 = vmatprep.subr.mxu0 0.0
    %3385 = vmatpush2.xpose.msra.mxu0 0.0
    %3386 = vmatprep.subr.mxu0 0.0
    %3387 = vmatpush2.xpose.msra.mxu0 0.0
    %3388 = vmatprep.subr.mxu0 0.0
    %3389 = vmatpush2.xpose.msra.mxu0 0.0
    %3390 = vmatprep.subr.mxu0 0.0
    %3391 = vmatpush2.xpose.msra.mxu0 0.0
    %3392 = vmatprep.subr.mxu0 0.0
    %3393 = vmatpush2.xpose.msra.mxu0 0.0
    %3394 = vmatprep.subr.mxu0 0.0
    %3395 = vmatpush2.xpose.msra.mxu0 0.0
    %3396 = vmatprep.subr.mxu0 0.0
    %3397 = vmatpush2.xpose.msra.mxu0 0.0
    %3398 = vmatprep.subr.mxu0 0.0
    %3399 = vmatpush2.xpose.msra.mxu0 0.0
    %3400 = vmatprep.subr.mxu0 0.0
    %3401 = vmatpush2.xpose.msra.mxu0 0.0
    %3402 = vmatprep.subr.mxu0 0.0
    %3403 = vmatpush2.xpose.msra.mxu0 0.0
    %3404 = vmatprep.subr.mxu0 0.0
    %3405 = vmatpush2.xpose.msra.mxu0 0.0
    %3406 = vmatprep.subr.mxu0 0.0
    %3407 = vmatpush2.xpose.msra.mxu0 0.0
    %3408 = vmatprep.subr.mxu0 0.0
    %3409 = vmatpush2.xpose.msra.mxu0 0.0
    %3410 = vmatprep.mubr.f32.mxu0 0.0
    %3411 = vmatmul.mubr.f32.gmra.mxu0 %v3338
    %v3412 = vpop.f32.mrf.mxu0
    %v3413 = vadd.f32 0.0, %v3412
    %v3414 = vpop.f32.mrf.mxu0
    %3415 = vmatprep.mubr.f32.mxu0 0.0
    %3416 = vmatmul.mubr.f32.gmra.mxu0 %v3340
    %v3417 = vpop.f32.mrf.mxu0
    %v3418 = vadd.f32 0.0, %v3417
    %v3419 = vpop.f32.mrf.mxu0
    %3420 = vdwg.mxu0
    %v3421 = vmul.f32 %v3322, 0.35355338
    %v3422 = vmul.f32 %v3327, 0.35355338
    %v3423 = vmul.f32 %v3413, 0.35355338
    %v3424 = vmul.f32 %v3418, 0.35355338
    %v3425 = vadd.f32 %v3421, %v477
    %v3426 = vadd.f32 %v3422, %v477
    %v3427 = vadd.f32 %v3423, %v481
    %v3428 = vadd.f32 %v3424, %v481
    %v3429 = vsel %vm488, %v3425, -inf
    %3430 = vmax.xlane.f32.xlu0 %v3429
    %v3431 = vpop.xlane.xlu0 %3430
    %v3432 = vsel %vm488, %v3426, -inf
    %3433 = vmax.xlane.f32.xlu0 %v3432
    %v3434 = vpop.xlane.xlu0 %3433
    %v3435 = vsel %vm488, %v3427, -inf
    %3436 = vmax.xlane.f32.xlu0 %v3435
    %v3437 = vpop.xlane.xlu0 %3436
    %v3438 = vsel %vm488, %v3428, -inf
    %3439 = vmax.xlane.f32.xlu0 %v3438
    %v3440 = vpop.xlane.xlu0 %3439
    %v3441 = vsub.f32 %v3425, %v3431
    %v3442 = vsub.f32 %v3426, %v3434
    %v3443 = vsub.f32 %v3427, %v3437
    %v3444 = vsub.f32 %v3428, %v3440
    %v3445 = vmul.f32 %v3441, 1.442695
    %v3446 = vpow.pop %v3445
    %v3447 = vmul.f32 %v3442, 1.442695
    %v3448 = vpow.pop %v3447
    %v3449 = vmul.f32 %v3443, 1.442695
    %v3450 = vpow.pop %v3449
    %v3451 = vmul.f32 %v3444, 1.442695
    %v3452 = vpow.pop %v3451
    %v3453 = vsel %vm488, %v3446, 0.0
    %3454 = vadd.xlane.f32.xlu0 %v3453
    %v3455 = vpop.xlane.xlu0 %3454
    %v3456 = vsel %vm488, %v3448, 0.0
    %3457 = vadd.xlane.f32.xlu0 %v3456
    %v3458 = vpop.xlane.xlu0 %3457
    %v3459 = vsel %vm488, %v3450, 0.0
    %3460 = vadd.xlane.f32.xlu0 %v3459
    %v3461 = vpop.xlane.xlu0 %3460
    %v3462 = vsel %vm488, %v3452, 0.0
    %3463 = vadd.xlane.f32.xlu0 %v3462
    %v3464 = vpop.xlane.xlu0 %3463
    %v3465 = vrcp.pop %v3455
    %v3466 = vrcp.pop %v3458
    %v3467 = vrcp.pop %v3461
    %v3468 = vrcp.pop %v3464
    %v3469 = vmul.f32 %v3446, %v3465
    %v3470 = vmul.f32 %v3448, %v3466
    %v3471 = vmul.f32 %v3450, %v3467
    %v3472 = vmul.f32 %v3452, %v3468
    %3473 = vrot.lane.b32.xlu0 %v2812, 56
    %v3474 = vpop.permute.xlu0 %3473
    %3475 = vrot.lane.b32.xlu0 %v2817, 56
    %v3476 = vpop.permute.xlu0 %3475
    %v3480 = vsel %vm488, %v3469, 0
    %v3483 = vsel %vm488, %v3470, 0
    %3485 = vmatprep.subr.mxu0 0.0
    %3486 = vmatpush1.msra.mxu0 0.0
    %3487 = vmatprep.subr.mxu0 0.0
    %3488 = vmatpush1.msra.mxu0 0.0
    %3489 = vmatprep.subr.mxu0 0.0
    %3490 = vmatpush1.msra.mxu0 0.0
    %3491 = vmatprep.subr.mxu0 0.0
    %3492 = vmatpush1.msra.mxu0 0.0
    %3493 = vmatprep.subr.mxu0 0.0
    %3494 = vmatpush1.msra.mxu0 0.0
    %3495 = vmatprep.subr.mxu0 0.0
    %3496 = vmatpush1.msra.mxu0 0.0
    %3497 = vmatprep.subr.mxu0 0.0
    %3498 = vmatpush1.msra.mxu0 0.0
    %3499 = vmatprep.subr.mxu0 0.0
    %3500 = vmatpush1.msra.mxu0 0.0
    %3501 = vmatprep.subr.mxu0 0.0
    %3502 = vmatpush1.msra.mxu0 0.0
    %3503 = vmatprep.subr.mxu0 0.0
    %3504 = vmatpush1.msra.mxu0 0.0
    %3505 = vmatprep.subr.mxu0 0.0
    %3506 = vmatpush1.msra.mxu0 0.0
    %3507 = vmatprep.subr.mxu0 0.0
    %3508 = vmatpush1.msra.mxu0 0.0
    %3509 = vmatprep.subr.mxu0 0.0
    %3510 = vmatpush1.msra.mxu0 0.0
    %3511 = vmatprep.subr.mxu0 0.0
    %3512 = vmatpush1.msra.mxu0 0.0
    %3513 = vmatprep.subr.mxu0 0.0
    %3514 = vmatpush1.msra.mxu0 %v3476
    %3515 = vmatprep.subr.mxu0 0.0
    %3516 = vmatpush1.msra.mxu0 %v3474
    %3517 = vmatprep.subr.mxu0 0.0
    %3518 = vmatpush2.msra.mxu0 0.0
    %3519 = vmatprep.subr.mxu0 0.0
    %3520 = vmatpush2.msra.mxu0 0.0
    %3521 = vmatprep.subr.mxu0 0.0
    %3522 = vmatpush2.msra.mxu0 0.0
    %3523 = vmatprep.subr.mxu0 0.0
    %3524 = vmatpush2.msra.mxu0 0.0
    %3525 = vmatprep.subr.mxu0 0.0
    %3526 = vmatpush2.msra.mxu0 0.0
    %3527 = vmatprep.subr.mxu0 0.0
    %3528 = vmatpush2.msra.mxu0 0.0
    %3529 = vmatprep.subr.mxu0 0.0
    %3530 = vmatpush2.msra.mxu0 0.0
    %3531 = vmatprep.subr.mxu0 0.0
    %3532 = vmatpush2.msra.mxu0 0.0
    %3533 = vmatprep.subr.mxu0 0.0
    %3534 = vmatpush2.msra.mxu0 0.0
    %3535 = vmatprep.subr.mxu0 0.0
    %3536 = vmatpush2.msra.mxu0 0.0
    %3537 = vmatprep.subr.mxu0 0.0
    %3538 = vmatpush2.msra.mxu0 0.0
    %3539 = vmatprep.subr.mxu0 0.0
    %3540 = vmatpush2.msra.mxu0 0.0
    %3541 = vmatprep.subr.mxu0 0.0
    %3542 = vmatpush2.msra.mxu0 0.0
    %3543 = vmatprep.subr.mxu0 0.0
    %3544 = vmatpush2.msra.mxu0 0.0
    %3545 = vmatprep.subr.mxu0 0.0
    %3546 = vmatpush2.msra.mxu0 0.0
    %3547 = vmatprep.subr.mxu0 0.0
    %3548 = vmatpush2.msra.mxu0 0.0
    %3549 = vmatprep.mubr.f32.mxu0 0.0
    %3550 = vmatmul.mubr.f32.gmra.mxu0 %v3480
    %v3551 = vpop.f32.mrf.mxu0
    %v3552 = vadd.f32 0.0, %v3551
    %v3553 = vpop.f32.mrf.mxu0
    %3554 = vmatprep.mubr.f32.mxu0 0.0
    %3555 = vmatmul.mubr.f32.gmra.mxu0 %v3483
    %v3556 = vpop.f32.mrf.mxu0
    %v3557 = vadd.f32 0.0, %v3556
    %v3558 = vpop.f32.mrf.mxu0
    %3559 = vdwg.mxu0
    %3560 = vrot.lane.b32.xlu0 %v2822, 56
    %v3561 = vpop.permute.xlu0 %3560
    %3562 = vrot.lane.b32.xlu0 %v2827, 56
    %v3563 = vpop.permute.xlu0 %3562
    %v3567 = vsel %vm488, %v3471, 0
    %v3570 = vsel %vm488, %v3472, 0
    %3572 = vmatprep.subr.mxu0 0.0
    %3573 = vmatpush1.msra.mxu0 0.0
    %3574 = vmatprep.subr.mxu0 0.0
    %3575 = vmatpush1.msra.mxu0 0.0
    %3576 = vmatprep.subr.mxu0 0.0
    %3577 = vmatpush1.msra.mxu0 0.0
    %3578 = vmatprep.subr.mxu0 0.0
    %3579 = vmatpush1.msra.mxu0 0.0
    %3580 = vmatprep.subr.mxu0 0.0
    %3581 = vmatpush1.msra.mxu0 0.0
    %3582 = vmatprep.subr.mxu0 0.0
    %3583 = vmatpush1.msra.mxu0 0.0
    %3584 = vmatprep.subr.mxu0 0.0
    %3585 = vmatpush1.msra.mxu0 0.0
    %3586 = vmatprep.subr.mxu0 0.0
    %3587 = vmatpush1.msra.mxu0 0.0
    %3588 = vmatprep.subr.mxu0 0.0
    %3589 = vmatpush1.msra.mxu0 0.0
    %3590 = vmatprep.subr.mxu0 0.0
    %3591 = vmatpush1.msra.mxu0 0.0
    %3592 = vmatprep.subr.mxu0 0.0
    %3593 = vmatpush1.msra.mxu0 0.0
    %3594 = vmatprep.subr.mxu0 0.0
    %3595 = vmatpush1.msra.mxu0 0.0
    %3596 = vmatprep.subr.mxu0 0.0
    %3597 = vmatpush1.msra.mxu0 0.0
    %3598 = vmatprep.subr.mxu0 0.0
    %3599 = vmatpush1.msra.mxu0 0.0
    %3600 = vmatprep.subr.mxu0 0.0
    %3601 = vmatpush1.msra.mxu0 %v3563
    %3602 = vmatprep.subr.mxu0 0.0
    %3603 = vmatpush1.msra.mxu0 %v3561
    %3604 = vmatprep.subr.mxu0 0.0
    %3605 = vmatpush2.msra.mxu0 0.0
    %3606 = vmatprep.subr.mxu0 0.0
    %3607 = vmatpush2.msra.mxu0 0.0
    %3608 = vmatprep.subr.mxu0 0.0
    %3609 = vmatpush2.msra.mxu0 0.0
    %3610 = vmatprep.subr.mxu0 0.0
    %3611 = vmatpush2.msra.mxu0 0.0
    %3612 = vmatprep.subr.mxu0 0.0
    %3613 = vmatpush2.msra.mxu0 0.0
    %3614 = vmatprep.subr.mxu0 0.0
    %3615 = vmatpush2.msra.mxu0 0.0
    %3616 = vmatprep.subr.mxu0 0.0
    %3617 = vmatpush2.msra.mxu0 0.0
    %3618 = vmatprep.subr.mxu0 0.0
    %3619 = vmatpush2.msra.mxu0 0.0
    %3620 = vmatprep.subr.mxu0 0.0
    %3621 = vmatpush2.msra.mxu0 0.0
    %3622 = vmatprep.subr.mxu0 0.0
    %3623 = vmatpush2.msra.mxu0 0.0
    %3624 = vmatprep.subr.mxu0 0.0
    %3625 = vmatpush2.msra.mxu0 0.0
    %3626 = vmatprep.subr.mxu0 0.0
    %3627 = vmatpush2.msra.mxu0 0.0
    %3628 = vmatprep.subr.mxu0 0.0
    %3629 = vmatpush2.msra.mxu0 0.0
    %3630 = vmatprep.subr.mxu0 0.0
    %3631 = vmatpush2.msra.mxu0 0.0
    %3632 = vmatprep.subr.mxu0 0.0
    %3633 = vmatpush2.msra.mxu0 0.0
    %3634 = vmatprep.subr.mxu0 0.0
    %3635 = vmatpush2.msra.mxu0 0.0
    %3636 = vmatprep.mubr.f32.mxu0 0.0
    %3637 = vmatmul.mubr.f32.gmra.mxu0 %v3567
    %v3638 = vpop.f32.mrf.mxu0
    %v3639 = vadd.f32 0.0, %v3638
    %v3640 = vpop.f32.mrf.mxu0
    %3641 = vmatprep.mubr.f32.mxu0 0.0
    %3642 = vmatmul.mubr.f32.gmra.mxu0 %v3570
    %v3643 = vpop.f32.mrf.mxu0
    %v3644 = vadd.f32 0.0, %v3643
    %v3645 = vpop.f32.mrf.mxu0
    %3646 = vdwg.mxu0
    %v3648 = vsel %vm295, %v3552, 0
    %v3651 = vsel %vm295, %v3557, 0
    %v3654 = vsel %vm295, %v3639, 0
    %v3657 = vsel %vm295, %v3644, 0
    %3659 = vmatprep.subr.mxu0 0.0
    %3660 = vmatpush1.msra.mxu0 0.0
    %3661 = vmatprep.subr.mxu0 0.0
    %3662 = vmatpush1.msra.mxu0 0.0
    %3663 = vmatprep.subr.mxu0 0.0
    %3664 = vmatpush1.msra.mxu0 0.0
    %3665 = vmatprep.subr.mxu0 0.0
    %3666 = vmatpush1.msra.mxu0 0.0
    %3667 = vmatprep.subr.mxu0 0.0
    %3668 = vmatpush1.msra.mxu0 0.0
    %3669 = vmatprep.subr.mxu0 0.0
    %3670 = vmatpush1.msra.mxu0 0.0
    %3671 = vmatprep.subr.mxu0 0.0
    %3672 = vmatpush1.msra.mxu0 0.0
    %3673 = vmatprep.subr.mxu0 0.0
    %3674 = vmatpush1.msra.mxu0 0.0
    %3675 = vmatprep.subr.mxu0 0.0
    %3676 = vmatpush1.msra.mxu0 0.0
    %3677 = vmatprep.subr.mxu0 0.0
    %3678 = vmatpush1.msra.mxu0 0.0
    %3679 = vmatprep.subr.mxu0 0.0
    %3680 = vmatpush1.msra.mxu0 0.0
    %3681 = vmatprep.subr.mxu0 0.0
    %3682 = vmatpush1.msra.mxu0 0.0
    %3683 = vmatprep.subr.mxu0 0.0
    %3684 = vmatpush1.msra.mxu0 0.0
    %3685 = vmatprep.subr.mxu0 0.0
    %3686 = vmatpush1.msra.mxu0 0.0
    %3687 = vmatprep.subr.mxu0 0.0
    %3688 = vmatpush1.msra.mxu0 0.0
    %3689 = vmatprep.subr.mxu0 0.0
    %3690 = vmatpush1.msra.mxu0 %v2832
    %3691 = vmatprep.subr.mxu0 0.0
    %3692 = vmatpush2.msra.mxu0 0.0
    %3693 = vmatprep.subr.mxu0 0.0
    %3694 = vmatpush2.msra.mxu0 0.0
    %3695 = vmatprep.subr.mxu0 0.0
    %3696 = vmatpush2.msra.mxu0 0.0
    %3697 = vmatprep.subr.mxu0 0.0
    %3698 = vmatpush2.msra.mxu0 0.0
    %3699 = vmatprep.subr.mxu0 0.0
    %3700 = vmatpush2.msra.mxu0 0.0
    %3701 = vmatprep.subr.mxu0 0.0
    %3702 = vmatpush2.msra.mxu0 0.0
    %3703 = vmatprep.subr.mxu0 0.0
    %3704 = vmatpush2.msra.mxu0 0.0
    %3705 = vmatprep.subr.mxu0 0.0
    %3706 = vmatpush2.msra.mxu0 0.0
    %3707 = vmatprep.subr.mxu0 0.0
    %3708 = vmatpush2.msra.mxu0 0.0
    %3709 = vmatprep.subr.mxu0 0.0
    %3710 = vmatpush2.msra.mxu0 0.0
    %3711 = vmatprep.subr.mxu0 0.0
    %3712 = vmatpush2.msra.mxu0 0.0
    %3713 = vmatprep.subr.mxu0 0.0
    %3714 = vmatpush2.msra.mxu0 0.0
    %3715 = vmatprep.subr.mxu0 0.0
    %3716 = vmatpush2.msra.mxu0 0.0
    %3717 = vmatprep.subr.mxu0 0.0
    %3718 = vmatpush2.msra.mxu0 0.0
    %3719 = vmatprep.subr.mxu0 0.0
    %3720 = vmatpush2.msra.mxu0 0.0
    %3721 = vmatprep.subr.mxu0 0.0
    %3722 = vmatpush2.msra.mxu0 0.0
    %3723 = vmatprep.mubr.f32.mxu0 0.0
    %3724 = vmatmul.mubr.f32.gmra.mxu0 %v3648
    %v3725 = vpop.f32.mrf.mxu0
    %v3726 = vadd.f32 0.0, %v3725
    %v3727 = vpop.f32.mrf.mxu0
    %3728 = vmatprep.mubr.f32.mxu0 0.0
    %3729 = vmatmul.mubr.f32.gmra.mxu0 %v3651
    %v3730 = vpop.f32.mrf.mxu0
    %v3731 = vadd.f32 0.0, %v3730
    %v3732 = vpop.f32.mrf.mxu0
    %3733 = vmatprep.mubr.f32.mxu0 0.0
    %3734 = vmatmul.mubr.f32.gmra.mxu0 %v3654
    %v3735 = vpop.f32.mrf.mxu0
    %v3736 = vadd.f32 0.0, %v3735
    %v3737 = vpop.f32.mrf.mxu0
    %3738 = vmatprep.mubr.f32.mxu0 0.0
    %3739 = vmatmul.mubr.f32.gmra.mxu0 %v3657
    %v3740 = vpop.f32.mrf.mxu0
    %v3741 = vadd.f32 0.0, %v3740
    %v3742 = vpop.f32.mrf.mxu0
    %3743 = vdwg.mxu0
    %v3745 = vsel %vm295, %v3144, 0
    %v3748 = vsel %vm295, %v3149, 0
    %v3751 = vsel %vm295, %v3231, 0
    %v3754 = vsel %vm295, %v3236, 0
    %3756 = vmatprep.subr.mxu0 0.0
    %3757 = vmatpush1.msra.mxu0 0.0
    %3758 = vmatprep.subr.mxu0 0.0
    %3759 = vmatpush1.msra.mxu0 0.0
    %3760 = vmatprep.subr.mxu0 0.0
    %3761 = vmatpush1.msra.mxu0 0.0
    %3762 = vmatprep.subr.mxu0 0.0
    %3763 = vmatpush1.msra.mxu0 0.0
    %3764 = vmatprep.subr.mxu0 0.0
    %3765 = vmatpush1.msra.mxu0 0.0
    %3766 = vmatprep.subr.mxu0 0.0
    %3767 = vmatpush1.msra.mxu0 0.0
    %3768 = vmatprep.subr.mxu0 0.0
    %3769 = vmatpush1.msra.mxu0 0.0
    %3770 = vmatprep.subr.mxu0 0.0
    %3771 = vmatpush1.msra.mxu0 0.0
    %3772 = vmatprep.subr.mxu0 0.0
    %3773 = vmatpush1.msra.mxu0 0.0
    %3774 = vmatprep.subr.mxu0 0.0
    %3775 = vmatpush1.msra.mxu0 0.0
    %3776 = vmatprep.subr.mxu0 0.0
    %3777 = vmatpush1.msra.mxu0 0.0
    %3778 = vmatprep.subr.mxu0 0.0
    %3779 = vmatpush1.msra.mxu0 0.0
    %3780 = vmatprep.subr.mxu0 0.0
    %3781 = vmatpush1.msra.mxu0 0.0
    %3782 = vmatprep.subr.mxu0 0.0
    %3783 = vmatpush1.msra.mxu0 0.0
    %3784 = vmatprep.subr.mxu0 0.0
    %3785 = vmatpush1.msra.mxu0 0.0
    %3786 = vmatprep.subr.mxu0 0.0
    %3787 = vmatpush1.msra.mxu0 %v2831
    %3788 = vmatprep.subr.mxu0 0.0
    %3789 = vmatpush2.msra.mxu0 0.0
    %3790 = vmatprep.subr.mxu0 0.0
    %3791 = vmatpush2.msra.mxu0 0.0
    %3792 = vmatprep.subr.mxu0 0.0
    %3793 = vmatpush2.msra.mxu0 0.0
    %3794 = vmatprep.subr.mxu0 0.0
    %3795 = vmatpush2.msra.mxu0 0.0
    %3796 = vmatprep.subr.mxu0 0.0
    %3797 = vmatpush2.msra.mxu0 0.0
    %3798 = vmatprep.subr.mxu0 0.0
    %3799 = vmatpush2.msra.mxu0 0.0
    %3800 = vmatprep.subr.mxu0 0.0
    %3801 = vmatpush2.msra.mxu0 0.0
    %3802 = vmatprep.subr.mxu0 0.0
    %3803 = vmatpush2.msra.mxu0 0.0
    %3804 = vmatprep.subr.mxu0 0.0
    %3805 = vmatpush2.msra.mxu0 0.0
    %3806 = vmatprep.subr.mxu0 0.0
    %3807 = vmatpush2.msra.mxu0 0.0
    %3808 = vmatprep.subr.mxu0 0.0
    %3809 = vmatpush2.msra.mxu0 0.0
    %3810 = vmatprep.subr.mxu0 0.0
    %3811 = vmatpush2.msra.mxu0 0.0
    %3812 = vmatprep.subr.mxu0 0.0
    %3813 = vmatpush2.msra.mxu0 0.0
    %3814 = vmatprep.subr.mxu0 0.0
    %3815 = vmatpush2.msra.mxu0 0.0
    %3816 = vmatprep.subr.mxu0 0.0
    %3817 = vmatpush2.msra.mxu0 0.0
    %3818 = vmatprep.subr.mxu0 0.0
    %3819 = vmatpush2.msra.mxu0 0.0
    %3820 = vmatprep.mubr.f32.mxu0 0.0
    %3821 = vmatmul.mubr.f32.gmra.mxu0 %v3745
    %v3822 = vpop.f32.mrf.mxu0
    %v3823 = vadd.f32 %v3726, %v3822
    %v3824 = vpop.f32.mrf.mxu0
    %3825 = vmatprep.mubr.f32.mxu0 0.0
    %3826 = vmatmul.mubr.f32.gmra.mxu0 %v3748
    %v3827 = vpop.f32.mrf.mxu0
    %v3828 = vadd.f32 %v3731, %v3827
    %v3829 = vpop.f32.mrf.mxu0
    %3830 = vmatprep.mubr.f32.mxu0 0.0
    %3831 = vmatmul.mubr.f32.gmra.mxu0 %v3751
    %v3832 = vpop.f32.mrf.mxu0
    %v3833 = vadd.f32 %v3736, %v3832
    %v3834 = vpop.f32.mrf.mxu0
    %3835 = vmatprep.mubr.f32.mxu0 0.0
    %3836 = vmatmul.mubr.f32.gmra.mxu0 %v3754
    %v3837 = vpop.f32.mrf.mxu0
    %v3838 = vadd.f32 %v3741, %v3837
    %v3839 = vpop.f32.mrf.mxu0
    %3840 = vdwg.mxu0
    %3841 = vrot.lane.b32.xlu0 %v2812, 112
    %v3842 = vpop.permute.xlu0 %3841
    %3843 = vrot.lane.b32.xlu0 %v2817, 112
    %v3844 = vpop.permute.xlu0 %3843
    %3845 = vrot.lane.b32.xlu0 %v2812, 80
    %v3846 = vpop.permute.xlu0 %3845
    %3847 = vrot.lane.b32.xlu0 %v2817, 80
    %v3848 = vpop.permute.xlu0 %3847
    %v3849 = vsel %vm295, %v3842, 0
    %v3851 = vsel %vm295, %v3844, 0
    %v3853 = vsel %vm295, %v3846, 0
    %v3855 = vsel %vm295, %v3848, 0
    %3857 = vmatprep.subr.mxu0 0.0
    %3858 = vmatpush1.xpose.msra.mxu0 0.0
    %3859 = vmatprep.subr.mxu0 0.0
    %3860 = vmatpush1.xpose.msra.mxu0 0.0
    %3861 = vmatprep.subr.mxu0 0.0
    %3862 = vmatpush1.xpose.msra.mxu0 0.0
    %3863 = vmatprep.subr.mxu0 0.0
    %3864 = vmatpush1.xpose.msra.mxu0 0.0
    %3865 = vmatprep.subr.mxu0 0.0
    %3866 = vmatpush1.xpose.msra.mxu0 0.0
    %3867 = vmatprep.subr.mxu0 0.0
    %3868 = vmatpush1.xpose.msra.mxu0 0.0
    %3869 = vmatprep.subr.mxu0 0.0
    %3870 = vmatpush1.xpose.msra.mxu0 0.0
    %3871 = vmatprep.subr.mxu0 0.0
    %3872 = vmatpush1.xpose.msra.mxu0 0.0
    %3873 = vmatprep.subr.mxu0 0.0
    %3874 = vmatpush1.xpose.msra.mxu0 0.0
    %3875 = vmatprep.subr.mxu0 0.0
    %3876 = vmatpush1.xpose.msra.mxu0 0.0
    %3877 = vmatprep.subr.mxu0 0.0
    %3878 = vmatpush1.xpose.msra.mxu0 0.0
    %3879 = vmatprep.subr.mxu0 0.0
    %3880 = vmatpush1.xpose.msra.mxu0 0.0
    %3881 = vmatprep.subr.mxu0 0.0
    %3882 = vmatpush1.xpose.msra.mxu0 0.0
    %3883 = vmatprep.subr.mxu0 0.0
    %3884 = vmatpush1.xpose.msra.mxu0 0.0
    %3885 = vmatprep.subr.mxu0 0.0
    %3886 = vmatpush1.xpose.msra.mxu0 %v3855
    %3887 = vmatprep.subr.mxu0 0.0
    %3888 = vmatpush1.xpose.msra.mxu0 %v3853
    %3889 = vmatprep.subr.mxu0 0.0
    %3890 = vmatpush2.xpose.msra.mxu0 0.0
    %3891 = vmatprep.subr.mxu0 0.0
    %3892 = vmatpush2.xpose.msra.mxu0 0.0
    %3893 = vmatprep.subr.mxu0 0.0
    %3894 = vmatpush2.xpose.msra.mxu0 0.0
    %3895 = vmatprep.subr.mxu0 0.0
    %3896 = vmatpush2.xpose.msra.mxu0 0.0
    %3897 = vmatprep.subr.mxu0 0.0
    %3898 = vmatpush2.xpose.msra.mxu0 0.0
    %3899 = vmatprep.subr.mxu0 0.0
    %3900 = vmatpush2.xpose.msra.mxu0 0.0
    %3901 = vmatprep.subr.mxu0 0.0
    %3902 = vmatpush2.xpose.msra.mxu0 0.0
    %3903 = vmatprep.subr.mxu0 0.0
    %3904 = vmatpush2.xpose.msra.mxu0 0.0
    %3905 = vmatprep.subr.mxu0 0.0
    %3906 = vmatpush2.xpose.msra.mxu0 0.0
    %3907 = vmatprep.subr.mxu0 0.0
    %3908 = vmatpush2.xpose.msra.mxu0 0.0
    %3909 = vmatprep.subr.mxu0 0.0
    %3910 = vmatpush2.xpose.msra.mxu0 0.0
    %3911 = vmatprep.subr.mxu0 0.0
    %3912 = vmatpush2.xpose.msra.mxu0 0.0
    %3913 = vmatprep.subr.mxu0 0.0
    %3914 = vmatpush2.xpose.msra.mxu0 0.0
    %3915 = vmatprep.subr.mxu0 0.0
    %3916 = vmatpush2.xpose.msra.mxu0 0.0
    %3917 = vmatprep.subr.mxu0 0.0
    %3918 = vmatpush2.xpose.msra.mxu0 0.0
    %3919 = vmatprep.subr.mxu0 0.0
    %3920 = vmatpush2.xpose.msra.mxu0 0.0
    %3921 = vmatprep.mubr.f32.mxu0 0.0
    %3922 = vmatmul.mubr.f32.gmra.mxu0 %v3849
    %v3923 = vpop.f32.mrf.mxu0
    %v3924 = vadd.f32 0.0, %v3923
    %v3925 = vpop.f32.mrf.mxu0
    %3926 = vmatprep.mubr.f32.mxu0 0.0
    %3927 = vmatmul.mubr.f32.gmra.mxu0 %v3851
    %v3928 = vpop.f32.mrf.mxu0
    %v3929 = vadd.f32 0.0, %v3928
    %v3930 = vpop.f32.mrf.mxu0
    %3931 = vdwg.mxu0
    %3932 = vrot.lane.b32.xlu0 %v2822, 112
    %v3933 = vpop.permute.xlu0 %3932
    %3934 = vrot.lane.b32.xlu0 %v2827, 112
    %v3935 = vpop.permute.xlu0 %3934
    %3936 = vrot.lane.b32.xlu0 %v2822, 80
    %v3937 = vpop.permute.xlu0 %3936
    %3938 = vrot.lane.b32.xlu0 %v2827, 80
    %v3939 = vpop.permute.xlu0 %3938
    %v3940 = vsel %vm295, %v3933, 0
    %v3942 = vsel %vm295, %v3935, 0
    %v3944 = vsel %vm295, %v3937, 0
    %v3946 = vsel %vm295, %v3939, 0
    %3948 = vmatprep.subr.mxu0 0.0
    %3949 = vmatpush1.xpose.msra.mxu0 0.0
    %3950 = vmatprep.subr.mxu0 0.0
    %3951 = vmatpush1.xpose.msra.mxu0 0.0
    %3952 = vmatprep.subr.mxu0 0.0
    %3953 = vmatpush1.xpose.msra.mxu0 0.0
    %3954 = vmatprep.subr.mxu0 0.0
    %3955 = vmatpush1.xpose.msra.mxu0 0.0
    %3956 = vmatprep.subr.mxu0 0.0
    %3957 = vmatpush1.xpose.msra.mxu0 0.0
    %3958 = vmatprep.subr.mxu0 0.0
    %3959 = vmatpush1.xpose.msra.mxu0 0.0
    %3960 = vmatprep.subr.mxu0 0.0
    %3961 = vmatpush1.xpose.msra.mxu0 0.0
    %3962 = vmatprep.subr.mxu0 0.0
    %3963 = vmatpush1.xpose.msra.mxu0 0.0
    %3964 = vmatprep.subr.mxu0 0.0
    %3965 = vmatpush1.xpose.msra.mxu0 0.0
    %3966 = vmatprep.subr.mxu0 0.0
    %3967 = vmatpush1.xpose.msra.mxu0 0.0
    %3968 = vmatprep.subr.mxu0 0.0
    %3969 = vmatpush1.xpose.msra.mxu0 0.0
    %3970 = vmatprep.subr.mxu0 0.0
    %3971 = vmatpush1.xpose.msra.mxu0 0.0
    %3972 = vmatprep.subr.mxu0 0.0
    %3973 = vmatpush1.xpose.msra.mxu0 0.0
    %3974 = vmatprep.subr.mxu0 0.0
    %3975 = vmatpush1.xpose.msra.mxu0 0.0
    %3976 = vmatprep.subr.mxu0 0.0
    %3977 = vmatpush1.xpose.msra.mxu0 %v3946
    %3978 = vmatprep.subr.mxu0 0.0
    %3979 = vmatpush1.xpose.msra.mxu0 %v3944
    %3980 = vmatprep.subr.mxu0 0.0
    %3981 = vmatpush2.xpose.msra.mxu0 0.0
    %3982 = vmatprep.subr.mxu0 0.0
    %3983 = vmatpush2.xpose.msra.mxu0 0.0
    %3984 = vmatprep.subr.mxu0 0.0
    %3985 = vmatpush2.xpose.msra.mxu0 0.0
    %3986 = vmatprep.subr.mxu0 0.0
    %3987 = vmatpush2.xpose.msra.mxu0 0.0
    %3988 = vmatprep.subr.mxu0 0.0
    %3989 = vmatpush2.xpose.msra.mxu0 0.0
    %3990 = vmatprep.subr.mxu0 0.0
    %3991 = vmatpush2.xpose.msra.mxu0 0.0
    %3992 = vmatprep.subr.mxu0 0.0
    %3993 = vmatpush2.xpose.msra.mxu0 0.0
    %3994 = vmatprep.subr.mxu0 0.0
    %3995 = vmatpush2.xpose.msra.mxu0 0.0
    %3996 = vmatprep.subr.mxu0 0.0
    %3997 = vmatpush2.xpose.msra.mxu0 0.0
    %3998 = vmatprep.subr.mxu0 0.0
    %3999 = vmatpush2.xpose.msra.mxu0 0.0
    %4000 = vmatprep.subr.mxu0 0.0
    %4001 = vmatpush2.xpose.msra.mxu0 0.0
    %4002 = vmatprep.subr.mxu0 0.0
    %4003 = vmatpush2.xpose.msra.mxu0 0.0
    %4004 = vmatprep.subr.mxu0 0.0
    %4005 = vmatpush2.xpose.msra.mxu0 0.0
    %4006 = vmatprep.subr.mxu0 0.0
    %4007 = vmatpush2.xpose.msra.mxu0 0.0
    %4008 = vmatprep.subr.mxu0 0.0
    %4009 = vmatpush2.xpose.msra.mxu0 0.0
    %4010 = vmatprep.subr.mxu0 0.0
    %4011 = vmatpush2.xpose.msra.mxu0 0.0
    %4012 = vmatprep.mubr.f32.mxu0 0.0
    %4013 = vmatmul.mubr.f32.gmra.mxu0 %v3940
    %v4014 = vpop.f32.mrf.mxu0
    %v4015 = vadd.f32 0.0, %v4014
    %v4016 = vpop.f32.mrf.mxu0
    %4017 = vmatprep.mubr.f32.mxu0 0.0
    %4018 = vmatmul.mubr.f32.gmra.mxu0 %v3942
    %v4019 = vpop.f32.mrf.mxu0
    %v4020 = vadd.f32 0.0, %v4019
    %v4021 = vpop.f32.mrf.mxu0
    %4022 = vdwg.mxu0
    %v4023 = vmul.f32 %v3924, 0.35355338
    %v4024 = vmul.f32 %v3929, 0.35355338
    %v4025 = vmul.f32 %v4015, 0.35355338
    %v4026 = vmul.f32 %v4020, 0.35355338
    %v4027 = vadd.f32 %v4023, %v477
    %v4028 = vadd.f32 %v4024, %v477
    %v4029 = vadd.f32 %v4025, %v481
    %v4030 = vadd.f32 %v4026, %v481
    %v4031 = vsel %vm488, %v4027, -inf
    %4032 = vmax.xlane.f32.xlu0 %v4031
    %v4033 = vpop.xlane.xlu0 %4032
    %v4034 = vsel %vm488, %v4028, -inf
    %4035 = vmax.xlane.f32.xlu0 %v4034
    %v4036 = vpop.xlane.xlu0 %4035
    %v4037 = vsel %vm488, %v4029, -inf
    %4038 = vmax.xlane.f32.xlu0 %v4037
    %v4039 = vpop.xlane.xlu0 %4038
    %v4040 = vsel %vm488, %v4030, -inf
    %4041 = vmax.xlane.f32.xlu0 %v4040
    %v4042 = vpop.xlane.xlu0 %4041
    %v4043 = vsub.f32 %v4027, %v4033
    %v4044 = vsub.f32 %v4028, %v4036
    %v4045 = vsub.f32 %v4029, %v4039
    %v4046 = vsub.f32 %v4030, %v4042
    %v4047 = vmul.f32 %v4043, 1.442695
    %v4048 = vpow.pop %v4047
    %v4049 = vmul.f32 %v4044, 1.442695
    %v4050 = vpow.pop %v4049
    %v4051 = vmul.f32 %v4045, 1.442695
    %v4052 = vpow.pop %v4051
    %v4053 = vmul.f32 %v4046, 1.442695
    %v4054 = vpow.pop %v4053
    %v4055 = vsel %vm488, %v4048, 0.0
    %4056 = vadd.xlane.f32.xlu0 %v4055
    %v4057 = vpop.xlane.xlu0 %4056
    %v4058 = vsel %vm488, %v4050, 0.0
    %4059 = vadd.xlane.f32.xlu0 %v4058
    %v4060 = vpop.xlane.xlu0 %4059
    %v4061 = vsel %vm488, %v4052, 0.0
    %4062 = vadd.xlane.f32.xlu0 %v4061
    %v4063 = vpop.xlane.xlu0 %4062
    %v4064 = vsel %vm488, %v4054, 0.0
    %4065 = vadd.xlane.f32.xlu0 %v4064
    %v4066 = vpop.xlane.xlu0 %4065
    %v4067 = vrcp.pop %v4057
    %v4068 = vrcp.pop %v4060
    %v4069 = vrcp.pop %v4063
    %v4070 = vrcp.pop %v4066
    %v4071 = vmul.f32 %v4048, %v4067
    %v4072 = vmul.f32 %v4050, %v4068
    %v4073 = vmul.f32 %v4052, %v4069
    %v4074 = vmul.f32 %v4054, %v4070
    %4075 = vrot.lane.b32.xlu0 %v2812, 48
    %v4076 = vpop.permute.xlu0 %4075
    %4077 = vrot.lane.b32.xlu0 %v2817, 48
    %v4078 = vpop.permute.xlu0 %4077
    %v4082 = vsel %vm488, %v4071, 0
    %v4085 = vsel %vm488, %v4072, 0
    %4087 = vmatprep.subr.mxu0 0.0
    %4088 = vmatpush1.msra.mxu0 0.0
    %4089 = vmatprep.subr.mxu0 0.0
    %4090 = vmatpush1.msra.mxu0 0.0
    %4091 = vmatprep.subr.mxu0 0.0
    %4092 = vmatpush1.msra.mxu0 0.0
    %4093 = vmatprep.subr.mxu0 0.0
    %4094 = vmatpush1.msra.mxu0 0.0
    %4095 = vmatprep.subr.mxu0 0.0
    %4096 = vmatpush1.msra.mxu0 0.0
    %4097 = vmatprep.subr.mxu0 0.0
    %4098 = vmatpush1.msra.mxu0 0.0
    %4099 = vmatprep.subr.mxu0 0.0
    %4100 = vmatpush1.msra.mxu0 0.0
    %4101 = vmatprep.subr.mxu0 0.0
    %4102 = vmatpush1.msra.mxu0 0.0
    %4103 = vmatprep.subr.mxu0 0.0
    %4104 = vmatpush1.msra.mxu0 0.0
    %4105 = vmatprep.subr.mxu0 0.0
    %4106 = vmatpush1.msra.mxu0 0.0
    %4107 = vmatprep.subr.mxu0 0.0
    %4108 = vmatpush1.msra.mxu0 0.0
    %4109 = vmatprep.subr.mxu0 0.0
    %4110 = vmatpush1.msra.mxu0 0.0
    %4111 = vmatprep.subr.mxu0 0.0
    %4112 = vmatpush1.msra.mxu0 0.0
    %4113 = vmatprep.subr.mxu0 0.0
    %4114 = vmatpush1.msra.mxu0 0.0
    %4115 = vmatprep.subr.mxu0 0.0
    %4116 = vmatpush1.msra.mxu0 %v4078
    %4117 = vmatprep.subr.mxu0 0.0
    %4118 = vmatpush1.msra.mxu0 %v4076
    %4119 = vmatprep.subr.mxu0 0.0
    %4120 = vmatpush2.msra.mxu0 0.0
    %4121 = vmatprep.subr.mxu0 0.0
    %4122 = vmatpush2.msra.mxu0 0.0
    %4123 = vmatprep.subr.mxu0 0.0
    %4124 = vmatpush2.msra.mxu0 0.0
    %4125 = vmatprep.subr.mxu0 0.0
    %4126 = vmatpush2.msra.mxu0 0.0
    %4127 = vmatprep.subr.mxu0 0.0
    %4128 = vmatpush2.msra.mxu0 0.0
    %4129 = vmatprep.subr.mxu0 0.0
    %4130 = vmatpush2.msra.mxu0 0.0
    %4131 = vmatprep.subr.mxu0 0.0
    %4132 = vmatpush2.msra.mxu0 0.0
    %4133 = vmatprep.subr.mxu0 0.0
    %4134 = vmatpush2.msra.mxu0 0.0
    %4135 = vmatprep.subr.mxu0 0.0
    %4136 = vmatpush2.msra.mxu0 0.0
    %4137 = vmatprep.subr.mxu0 0.0
    %4138 = vmatpush2.msra.mxu0 0.0
    %4139 = vmatprep.subr.mxu0 0.0
    %4140 = vmatpush2.msra.mxu0 0.0
    %4141 = vmatprep.subr.mxu0 0.0
    %4142 = vmatpush2.msra.mxu0 0.0
    %4143 = vmatprep.subr.mxu0 0.0
    %4144 = vmatpush2.msra.mxu0 0.0
    %4145 = vmatprep.subr.mxu0 0.0
    %4146 = vmatpush2.msra.mxu0 0.0
    %4147 = vmatprep.subr.mxu0 0.0
    %4148 = vmatpush2.msra.mxu0 0.0
    %4149 = vmatprep.subr.mxu0 0.0
    %4150 = vmatpush2.msra.mxu0 0.0
    %4151 = vmatprep.mubr.f32.mxu0 0.0
    %4152 = vmatmul.mubr.f32.gmra.mxu0 %v4082
    %v4153 = vpop.f32.mrf.mxu0
    %v4154 = vadd.f32 0.0, %v4153
    %v4155 = vpop.f32.mrf.mxu0
    %4156 = vmatprep.mubr.f32.mxu0 0.0
    %4157 = vmatmul.mubr.f32.gmra.mxu0 %v4085
    %v4158 = vpop.f32.mrf.mxu0
    %v4159 = vadd.f32 0.0, %v4158
    %v4160 = vpop.f32.mrf.mxu0
    %4161 = vdwg.mxu0
    %4162 = vrot.lane.b32.xlu0 %v2822, 48
    %v4163 = vpop.permute.xlu0 %4162
    %4164 = vrot.lane.b32.xlu0 %v2827, 48
    %v4165 = vpop.permute.xlu0 %4164
    %v4169 = vsel %vm488, %v4073, 0
    %v4172 = vsel %vm488, %v4074, 0
    %4174 = vmatprep.subr.mxu0 0.0
    %4175 = vmatpush1.msra.mxu0 0.0
    %4176 = vmatprep.subr.mxu0 0.0
    %4177 = vmatpush1.msra.mxu0 0.0
    %4178 = vmatprep.subr.mxu0 0.0
    %4179 = vmatpush1.msra.mxu0 0.0
    %4180 = vmatprep.subr.mxu0 0.0
    %4181 = vmatpush1.msra.mxu0 0.0
    %4182 = vmatprep.subr.mxu0 0.0
    %4183 = vmatpush1.msra.mxu0 0.0
    %4184 = vmatprep.subr.mxu0 0.0
    %4185 = vmatpush1.msra.mxu0 0.0
    %4186 = vmatprep.subr.mxu0 0.0
    %4187 = vmatpush1.msra.mxu0 0.0
    %4188 = vmatprep.subr.mxu0 0.0
    %4189 = vmatpush1.msra.mxu0 0.0
    %4190 = vmatprep.subr.mxu0 0.0
    %4191 = vmatpush1.msra.mxu0 0.0
    %4192 = vmatprep.subr.mxu0 0.0
    %4193 = vmatpush1.msra.mxu0 0.0
    %4194 = vmatprep.subr.mxu0 0.0
    %4195 = vmatpush1.msra.mxu0 0.0
    %4196 = vmatprep.subr.mxu0 0.0
    %4197 = vmatpush1.msra.mxu0 0.0
    %4198 = vmatprep.subr.mxu0 0.0
    %4199 = vmatpush1.msra.mxu0 0.0
    %4200 = vmatprep.subr.mxu0 0.0
    %4201 = vmatpush1.msra.mxu0 0.0
    %4202 = vmatprep.subr.mxu0 0.0
    %4203 = vmatpush1.msra.mxu0 %v4165
    %4204 = vmatprep.subr.mxu0 0.0
    %4205 = vmatpush1.msra.mxu0 %v4163
    %4206 = vmatprep.subr.mxu0 0.0
    %4207 = vmatpush2.msra.mxu0 0.0
    %4208 = vmatprep.subr.mxu0 0.0
    %4209 = vmatpush2.msra.mxu0 0.0
    %4210 = vmatprep.subr.mxu0 0.0
    %4211 = vmatpush2.msra.mxu0 0.0
    %4212 = vmatprep.subr.mxu0 0.0
    %4213 = vmatpush2.msra.mxu0 0.0
    %4214 = vmatprep.subr.mxu0 0.0
    %4215 = vmatpush2.msra.mxu0 0.0
    %4216 = vmatprep.subr.mxu0 0.0
    %4217 = vmatpush2.msra.mxu0 0.0
    %4218 = vmatprep.subr.mxu0 0.0
    %4219 = vmatpush2.msra.mxu0 0.0
    %4220 = vmatprep.subr.mxu0 0.0
    %4221 = vmatpush2.msra.mxu0 0.0
    %4222 = vmatprep.subr.mxu0 0.0
    %4223 = vmatpush2.msra.mxu0 0.0
    %4224 = vmatprep.subr.mxu0 0.0
    %4225 = vmatpush2.msra.mxu0 0.0
    %4226 = vmatprep.subr.mxu0 0.0
    %4227 = vmatpush2.msra.mxu0 0.0
    %4228 = vmatprep.subr.mxu0 0.0
    %4229 = vmatpush2.msra.mxu0 0.0
    %4230 = vmatprep.subr.mxu0 0.0
    %4231 = vmatpush2.msra.mxu0 0.0
    %4232 = vmatprep.subr.mxu0 0.0
    %4233 = vmatpush2.msra.mxu0 0.0
    %4234 = vmatprep.subr.mxu0 0.0
    %4235 = vmatpush2.msra.mxu0 0.0
    %4236 = vmatprep.subr.mxu0 0.0
    %4237 = vmatpush2.msra.mxu0 0.0
    %4238 = vmatprep.mubr.f32.mxu0 0.0
    %4239 = vmatmul.mubr.f32.gmra.mxu0 %v4169
    %v4240 = vpop.f32.mrf.mxu0
    %v4241 = vadd.f32 0.0, %v4240
    %v4242 = vpop.f32.mrf.mxu0
    %4243 = vmatprep.mubr.f32.mxu0 0.0
    %4244 = vmatmul.mubr.f32.gmra.mxu0 %v4172
    %v4245 = vpop.f32.mrf.mxu0
    %v4246 = vadd.f32 0.0, %v4245
    %v4247 = vpop.f32.mrf.mxu0
    %4248 = vdwg.mxu0
    %v4250 = vsel %vm295, %v4154, 0
    %v4253 = vsel %vm295, %v4159, 0
    %v4256 = vsel %vm295, %v4241, 0
    %v4259 = vsel %vm295, %v4246, 0
    %4261 = vmatprep.subr.mxu0 0.0
    %4262 = vmatpush1.msra.mxu0 0.0
    %4263 = vmatprep.subr.mxu0 0.0
    %4264 = vmatpush1.msra.mxu0 0.0
    %4265 = vmatprep.subr.mxu0 0.0
    %4266 = vmatpush1.msra.mxu0 0.0
    %4267 = vmatprep.subr.mxu0 0.0
    %4268 = vmatpush1.msra.mxu0 0.0
    %4269 = vmatprep.subr.mxu0 0.0
    %4270 = vmatpush1.msra.mxu0 0.0
    %4271 = vmatprep.subr.mxu0 0.0
    %4272 = vmatpush1.msra.mxu0 0.0
    %4273 = vmatprep.subr.mxu0 0.0
    %4274 = vmatpush1.msra.mxu0 0.0
    %4275 = vmatprep.subr.mxu0 0.0
    %4276 = vmatpush1.msra.mxu0 0.0
    %4277 = vmatprep.subr.mxu0 0.0
    %4278 = vmatpush1.msra.mxu0 0.0
    %4279 = vmatprep.subr.mxu0 0.0
    %4280 = vmatpush1.msra.mxu0 0.0
    %4281 = vmatprep.subr.mxu0 0.0
    %4282 = vmatpush1.msra.mxu0 0.0
    %4283 = vmatprep.subr.mxu0 0.0
    %4284 = vmatpush1.msra.mxu0 0.0
    %4285 = vmatprep.subr.mxu0 0.0
    %4286 = vmatpush1.msra.mxu0 0.0
    %4287 = vmatprep.subr.mxu0 0.0
    %4288 = vmatpush1.msra.mxu0 0.0
    %4289 = vmatprep.subr.mxu0 0.0
    %4290 = vmatpush1.msra.mxu0 0.0
    %4291 = vmatprep.subr.mxu0 0.0
    %4292 = vmatpush1.msra.mxu0 %v2833
    %4293 = vmatprep.subr.mxu0 0.0
    %4294 = vmatpush2.msra.mxu0 0.0
    %4295 = vmatprep.subr.mxu0 0.0
    %4296 = vmatpush2.msra.mxu0 0.0
    %4297 = vmatprep.subr.mxu0 0.0
    %4298 = vmatpush2.msra.mxu0 0.0
    %4299 = vmatprep.subr.mxu0 0.0
    %4300 = vmatpush2.msra.mxu0 0.0
    %4301 = vmatprep.subr.mxu0 0.0
    %4302 = vmatpush2.msra.mxu0 0.0
    %4303 = vmatprep.subr.mxu0 0.0
    %4304 = vmatpush2.msra.mxu0 0.0
    %4305 = vmatprep.subr.mxu0 0.0
    %4306 = vmatpush2.msra.mxu0 0.0
    %4307 = vmatprep.subr.mxu0 0.0
    %4308 = vmatpush2.msra.mxu0 0.0
    %4309 = vmatprep.subr.mxu0 0.0
    %4310 = vmatpush2.msra.mxu0 0.0
    %4311 = vmatprep.subr.mxu0 0.0
    %4312 = vmatpush2.msra.mxu0 0.0
    %4313 = vmatprep.subr.mxu0 0.0
    %4314 = vmatpush2.msra.mxu0 0.0
    %4315 = vmatprep.subr.mxu0 0.0
    %4316 = vmatpush2.msra.mxu0 0.0
    %4317 = vmatprep.subr.mxu0 0.0
    %4318 = vmatpush2.msra.mxu0 0.0
    %4319 = vmatprep.subr.mxu0 0.0
    %4320 = vmatpush2.msra.mxu0 0.0
    %4321 = vmatprep.subr.mxu0 0.0
    %4322 = vmatpush2.msra.mxu0 0.0
    %4323 = vmatprep.subr.mxu0 0.0
    %4324 = vmatpush2.msra.mxu0 0.0
    %4325 = vmatprep.mubr.f32.mxu0 0.0
    %4326 = vmatmul.mubr.f32.gmra.mxu0 %v4250
    %v4327 = vpop.f32.mrf.mxu0
    %v4328 = vadd.f32 0.0, %v4327
    %v4329 = vpop.f32.mrf.mxu0
    %4330 = vmatprep.mubr.f32.mxu0 0.0
    %4331 = vmatmul.mubr.f32.gmra.mxu0 %v4253
    %v4332 = vpop.f32.mrf.mxu0
    %v4333 = vadd.f32 0.0, %v4332
    %v4334 = vpop.f32.mrf.mxu0
    %4335 = vmatprep.mubr.f32.mxu0 0.0
    %4336 = vmatmul.mubr.f32.gmra.mxu0 %v4256
    %v4337 = vpop.f32.mrf.mxu0
    %v4338 = vadd.f32 0.0, %v4337
    %v4339 = vpop.f32.mrf.mxu0
    %4340 = vmatprep.mubr.f32.mxu0 0.0
    %4341 = vmatmul.mubr.f32.gmra.mxu0 %v4259
    %v4342 = vpop.f32.mrf.mxu0
    %v4343 = vadd.f32 0.0, %v4342
    %v4344 = vpop.f32.mrf.mxu0
    %4345 = vdwg.mxu0
    %v4346 = vadd.f32 %v3823, %v4328
    %v4347 = vadd.f32 %v3828, %v4333
    %v4348 = vadd.f32 %v3833, %v4338
    %v4349 = vadd.f32 %v3838, %v4343
    %4350 = vrot.lane.b32.xlu0 %v2812, 104
    %v4351 = vpop.permute.xlu0 %4350
    %4352 = vrot.lane.b32.xlu0 %v2817, 104
    %v4353 = vpop.permute.xlu0 %4352
    %4354 = vrot.lane.b32.xlu0 %v2812, 72
    %v4355 = vpop.permute.xlu0 %4354
    %4356 = vrot.lane.b32.xlu0 %v2817, 72
    %v4357 = vpop.permute.xlu0 %4356
    %v4358 = vsel %vm295, %v4351, 0
    %v4360 = vsel %vm295, %v4353, 0
    %v4362 = vsel %vm295, %v4355, 0
    %v4364 = vsel %vm295, %v4357, 0
    %4366 = vmatprep.subr.mxu0 0.0
    %4367 = vmatpush1.xpose.msra.mxu0 0.0
    %4368 = vmatprep.subr.mxu0 0.0
    %4369 = vmatpush1.xpose.msra.mxu0 0.0
    %4370 = vmatprep.subr.mxu0 0.0
    %4371 = vmatpush1.xpose.msra.mxu0 0.0
    %4372 = vmatprep.subr.mxu0 0.0
    %4373 = vmatpush1.xpose.msra.mxu0 0.0
    %4374 = vmatprep.subr.mxu0 0.0
    %4375 = vmatpush1.xpose.msra.mxu0 0.0
    %4376 = vmatprep.subr.mxu0 0.0
    %4377 = vmatpush1.xpose.msra.mxu0 0.0
    %4378 = vmatprep.subr.mxu0 0.0
    %4379 = vmatpush1.xpose.msra.mxu0 0.0
    %4380 = vmatprep.subr.mxu0 0.0
    %4381 = vmatpush1.xpose.msra.mxu0 0.0
    %4382 = vmatprep.subr.mxu0 0.0
    %4383 = vmatpush1.xpose.msra.mxu0 0.0
    %4384 = vmatprep.subr.mxu0 0.0
    %4385 = vmatpush1.xpose.msra.mxu0 0.0
    %4386 = vmatprep.subr.mxu0 0.0
    %4387 = vmatpush1.xpose.msra.mxu0 0.0
    %4388 = vmatprep.subr.mxu0 0.0
    %4389 = vmatpush1.xpose.msra.mxu0 0.0
    %4390 = vmatprep.subr.mxu0 0.0
    %4391 = vmatpush1.xpose.msra.mxu0 0.0
    %4392 = vmatprep.subr.mxu0 0.0
    %4393 = vmatpush1.xpose.msra.mxu0 0.0
    %4394 = vmatprep.subr.mxu0 0.0
    %4395 = vmatpush1.xpose.msra.mxu0 %v4364
    %4396 = vmatprep.subr.mxu0 0.0
    %4397 = vmatpush1.xpose.msra.mxu0 %v4362
    %4398 = vmatprep.subr.mxu0 0.0
    %4399 = vmatpush2.xpose.msra.mxu0 0.0
    %4400 = vmatprep.subr.mxu0 0.0
    %4401 = vmatpush2.xpose.msra.mxu0 0.0
    %4402 = vmatprep.subr.mxu0 0.0
    %4403 = vmatpush2.xpose.msra.mxu0 0.0
    %4404 = vmatprep.subr.mxu0 0.0
    %4405 = vmatpush2.xpose.msra.mxu0 0.0
    %4406 = vmatprep.subr.mxu0 0.0
    %4407 = vmatpush2.xpose.msra.mxu0 0.0
    %4408 = vmatprep.subr.mxu0 0.0
    %4409 = vmatpush2.xpose.msra.mxu0 0.0
    %4410 = vmatprep.subr.mxu0 0.0
    %4411 = vmatpush2.xpose.msra.mxu0 0.0
    %4412 = vmatprep.subr.mxu0 0.0
    %4413 = vmatpush2.xpose.msra.mxu0 0.0
    %4414 = vmatprep.subr.mxu0 0.0
    %4415 = vmatpush2.xpose.msra.mxu0 0.0
    %4416 = vmatprep.subr.mxu0 0.0
    %4417 = vmatpush2.xpose.msra.mxu0 0.0
    %4418 = vmatprep.subr.mxu0 0.0
    %4419 = vmatpush2.xpose.msra.mxu0 0.0
    %4420 = vmatprep.subr.mxu0 0.0
    %4421 = vmatpush2.xpose.msra.mxu0 0.0
    %4422 = vmatprep.subr.mxu0 0.0
    %4423 = vmatpush2.xpose.msra.mxu0 0.0
    %4424 = vmatprep.subr.mxu0 0.0
    %4425 = vmatpush2.xpose.msra.mxu0 0.0
    %4426 = vmatprep.subr.mxu0 0.0
    %4427 = vmatpush2.xpose.msra.mxu0 0.0
    %4428 = vmatprep.subr.mxu0 0.0
    %4429 = vmatpush2.xpose.msra.mxu0 0.0
    %4430 = vmatprep.mubr.f32.mxu0 0.0
    %4431 = vmatmul.mubr.f32.gmra.mxu0 %v4358
    %v4432 = vpop.f32.mrf.mxu0
    %v4433 = vadd.f32 0.0, %v4432
    %v4434 = vpop.f32.mrf.mxu0
    %4435 = vmatprep.mubr.f32.mxu0 0.0
    %4436 = vmatmul.mubr.f32.gmra.mxu0 %v4360
    %v4437 = vpop.f32.mrf.mxu0
    %v4438 = vadd.f32 0.0, %v4437
    %v4439 = vpop.f32.mrf.mxu0
    %4440 = vdwg.mxu0
    %4441 = vrot.lane.b32.xlu0 %v2822, 104
    %v4442 = vpop.permute.xlu0 %4441
    %4443 = vrot.lane.b32.xlu0 %v2827, 104
    %v4444 = vpop.permute.xlu0 %4443
    %4445 = vrot.lane.b32.xlu0 %v2822, 72
    %v4446 = vpop.permute.xlu0 %4445
    %4447 = vrot.lane.b32.xlu0 %v2827, 72
    %v4448 = vpop.permute.xlu0 %4447
    %v4449 = vsel %vm295, %v4442, 0
    %v4451 = vsel %vm295, %v4444, 0
    %v4453 = vsel %vm295, %v4446, 0
    %v4455 = vsel %vm295, %v4448, 0
    %4457 = vmatprep.subr.mxu0 0.0
    %4458 = vmatpush1.xpose.msra.mxu0 0.0
    %4459 = vmatprep.subr.mxu0 0.0
    %4460 = vmatpush1.xpose.msra.mxu0 0.0
    %4461 = vmatprep.subr.mxu0 0.0
    %4462 = vmatpush1.xpose.msra.mxu0 0.0
    %4463 = vmatprep.subr.mxu0 0.0
    %4464 = vmatpush1.xpose.msra.mxu0 0.0
    %4465 = vmatprep.subr.mxu0 0.0
    %4466 = vmatpush1.xpose.msra.mxu0 0.0
    %4467 = vmatprep.subr.mxu0 0.0
    %4468 = vmatpush1.xpose.msra.mxu0 0.0
    %4469 = vmatprep.subr.mxu0 0.0
    %4470 = vmatpush1.xpose.msra.mxu0 0.0
    %4471 = vmatprep.subr.mxu0 0.0
    %4472 = vmatpush1.xpose.msra.mxu0 0.0
    %4473 = vmatprep.subr.mxu0 0.0
    %4474 = vmatpush1.xpose.msra.mxu0 0.0
    %4475 = vmatprep.subr.mxu0 0.0
    %4476 = vmatpush1.xpose.msra.mxu0 0.0
    %4477 = vmatprep.subr.mxu0 0.0
    %4478 = vmatpush1.xpose.msra.mxu0 0.0
    %4479 = vmatprep.subr.mxu0 0.0
    %4480 = vmatpush1.xpose.msra.mxu0 0.0
    %4481 = vmatprep.subr.mxu0 0.0
    %4482 = vmatpush1.xpose.msra.mxu0 0.0
    %4483 = vmatprep.subr.mxu0 0.0
    %4484 = vmatpush1.xpose.msra.mxu0 0.0
    %4485 = vmatprep.subr.mxu0 0.0
    %4486 = vmatpush1.xpose.msra.mxu0 %v4455
    %4487 = vmatprep.subr.mxu0 0.0
    %4488 = vmatpush1.xpose.msra.mxu0 %v4453
    %4489 = vmatprep.subr.mxu0 0.0
    %4490 = vmatpush2.xpose.msra.mxu0 0.0
    %4491 = vmatprep.subr.mxu0 0.0
    %4492 = vmatpush2.xpose.msra.mxu0 0.0
    %4493 = vmatprep.subr.mxu0 0.0
    %4494 = vmatpush2.xpose.msra.mxu0 0.0
    %4495 = vmatprep.subr.mxu0 0.0
    %4496 = vmatpush2.xpose.msra.mxu0 0.0
    %4497 = vmatprep.subr.mxu0 0.0
    %4498 = vmatpush2.xpose.msra.mxu0 0.0
    %4499 = vmatprep.subr.mxu0 0.0
    %4500 = vmatpush2.xpose.msra.mxu0 0.0
    %4501 = vmatprep.subr.mxu0 0.0
    %4502 = vmatpush2.xpose.msra.mxu0 0.0
    %4503 = vmatprep.subr.mxu0 0.0
    %4504 = vmatpush2.xpose.msra.mxu0 0.0
    %4505 = vmatprep.subr.mxu0 0.0
    %4506 = vmatpush2.xpose.msra.mxu0 0.0
    %4507 = vmatprep.subr.mxu0 0.0
    %4508 = vmatpush2.xpose.msra.mxu0 0.0
    %4509 = vmatprep.subr.mxu0 0.0
    %4510 = vmatpush2.xpose.msra.mxu0 0.0
    %4511 = vmatprep.subr.mxu0 0.0
    %4512 = vmatpush2.xpose.msra.mxu0 0.0
    %4513 = vmatprep.subr.mxu0 0.0
    %4514 = vmatpush2.xpose.msra.mxu0 0.0
    %4515 = vmatprep.subr.mxu0 0.0
    %4516 = vmatpush2.xpose.msra.mxu0 0.0
    %4517 = vmatprep.subr.mxu0 0.0
    %4518 = vmatpush2.xpose.msra.mxu0 0.0
    %4519 = vmatprep.subr.mxu0 0.0
    %4520 = vmatpush2.xpose.msra.mxu0 0.0
    %4521 = vmatprep.mubr.f32.mxu0 0.0
    %4522 = vmatmul.mubr.f32.gmra.mxu0 %v4449
    %v4523 = vpop.f32.mrf.mxu0
    %v4524 = vadd.f32 0.0, %v4523
    %v4525 = vpop.f32.mrf.mxu0
    %4526 = vmatprep.mubr.f32.mxu0 0.0
    %4527 = vmatmul.mubr.f32.gmra.mxu0 %v4451
    %v4528 = vpop.f32.mrf.mxu0
    %v4529 = vadd.f32 0.0, %v4528
    %v4530 = vpop.f32.mrf.mxu0
    %4531 = vdwg.mxu0
    %v4532 = vmul.f32 %v4433, 0.35355338
    %v4533 = vmul.f32 %v4438, 0.35355338
    %v4534 = vmul.f32 %v4524, 0.35355338
    %v4535 = vmul.f32 %v4529, 0.35355338
    %v4536 = vadd.f32 %v4532, %v477
    %v4537 = vadd.f32 %v4533, %v477
    %v4538 = vadd.f32 %v4534, %v481
    %v4539 = vadd.f32 %v4535, %v481
    %v4540 = vsel %vm488, %v4536, -inf
    %4541 = vmax.xlane.f32.xlu0 %v4540
    %v4542 = vpop.xlane.xlu0 %4541
    %v4543 = vsel %vm488, %v4537, -inf
    %4544 = vmax.xlane.f32.xlu0 %v4543
    %v4545 = vpop.xlane.xlu0 %4544
    %v4546 = vsel %vm488, %v4538, -inf
    %4547 = vmax.xlane.f32.xlu0 %v4546
    %v4548 = vpop.xlane.xlu0 %4547
    %v4549 = vsel %vm488, %v4539, -inf
    %4550 = vmax.xlane.f32.xlu0 %v4549
    %v4551 = vpop.xlane.xlu0 %4550
    %v4552 = vsub.f32 %v4536, %v4542
    %v4553 = vsub.f32 %v4537, %v4545
    %v4554 = vsub.f32 %v4538, %v4548
    %v4555 = vsub.f32 %v4539, %v4551
    %v4556 = vmul.f32 %v4552, 1.442695
    %v4557 = vpow.pop %v4556
    %v4558 = vmul.f32 %v4553, 1.442695
    %v4559 = vpow.pop %v4558
    %v4560 = vmul.f32 %v4554, 1.442695
    %v4561 = vpow.pop %v4560
    %v4562 = vmul.f32 %v4555, 1.442695
    %v4563 = vpow.pop %v4562
    %v4564 = vsel %vm488, %v4557, 0.0
    %4565 = vadd.xlane.f32.xlu0 %v4564
    %v4566 = vpop.xlane.xlu0 %4565
    %v4567 = vsel %vm488, %v4559, 0.0
    %4568 = vadd.xlane.f32.xlu0 %v4567
    %v4569 = vpop.xlane.xlu0 %4568
    %v4570 = vsel %vm488, %v4561, 0.0
    %4571 = vadd.xlane.f32.xlu0 %v4570
    %v4572 = vpop.xlane.xlu0 %4571
    %v4573 = vsel %vm488, %v4563, 0.0
    %4574 = vadd.xlane.f32.xlu0 %v4573
    %v4575 = vpop.xlane.xlu0 %4574
    %v4576 = vrcp.pop %v4566
    %v4577 = vrcp.pop %v4569
    %v4578 = vrcp.pop %v4572
    %v4579 = vrcp.pop %v4575
    %v4580 = vmul.f32 %v4557, %v4576
    %v4581 = vmul.f32 %v4559, %v4577
    %v4582 = vmul.f32 %v4561, %v4578
    %v4583 = vmul.f32 %v4563, %v4579
    %4584 = vrot.lane.b32.xlu0 %v2812, 40
    %v4585 = vpop.permute.xlu0 %4584
    %4586 = vrot.lane.b32.xlu0 %v2817, 40
    %v4587 = vpop.permute.xlu0 %4586
    %v4591 = vsel %vm488, %v4580, 0
    %v4594 = vsel %vm488, %v4581, 0
    %4596 = vmatprep.subr.mxu0 0.0
    %4597 = vmatpush1.msra.mxu0 0.0
    %4598 = vmatprep.subr.mxu0 0.0
    %4599 = vmatpush1.msra.mxu0 0.0
    %4600 = vmatprep.subr.mxu0 0.0
    %4601 = vmatpush1.msra.mxu0 0.0
    %4602 = vmatprep.subr.mxu0 0.0
    %4603 = vmatpush1.msra.mxu0 0.0
    %4604 = vmatprep.subr.mxu0 0.0
    %4605 = vmatpush1.msra.mxu0 0.0
    %4606 = vmatprep.subr.mxu0 0.0
    %4607 = vmatpush1.msra.mxu0 0.0
    %4608 = vmatprep.subr.mxu0 0.0
    %4609 = vmatpush1.msra.mxu0 0.0
    %4610 = vmatprep.subr.mxu0 0.0
    %4611 = vmatpush1.msra.mxu0 0.0
    %4612 = vmatprep.subr.mxu0 0.0
    %4613 = vmatpush1.msra.mxu0 0.0
    %4614 = vmatprep.subr.mxu0 0.0
    %4615 = vmatpush1.msra.mxu0 0.0
    %4616 = vmatprep.subr.mxu0 0.0
    %4617 = vmatpush1.msra.mxu0 0.0
    %4618 = vmatprep.subr.mxu0 0.0
    %4619 = vmatpush1.msra.mxu0 0.0
    %4620 = vmatprep.subr.mxu0 0.0
    %4621 = vmatpush1.msra.mxu0 0.0
    %4622 = vmatprep.subr.mxu0 0.0
    %4623 = vmatpush1.msra.mxu0 0.0
    %4624 = vmatprep.subr.mxu0 0.0
    %4625 = vmatpush1.msra.mxu0 %v4587
    %4626 = vmatprep.subr.mxu0 0.0
    %4627 = vmatpush1.msra.mxu0 %v4585
    %4628 = vmatprep.subr.mxu0 0.0
    %4629 = vmatpush2.msra.mxu0 0.0
    %4630 = vmatprep.subr.mxu0 0.0
    %4631 = vmatpush2.msra.mxu0 0.0
    %4632 = vmatprep.subr.mxu0 0.0
    %4633 = vmatpush2.msra.mxu0 0.0
    %4634 = vmatprep.subr.mxu0 0.0
    %4635 = vmatpush2.msra.mxu0 0.0
    %4636 = vmatprep.subr.mxu0 0.0
    %4637 = vmatpush2.msra.mxu0 0.0
    %4638 = vmatprep.subr.mxu0 0.0
    %4639 = vmatpush2.msra.mxu0 0.0
    %4640 = vmatprep.subr.mxu0 0.0
    %4641 = vmatpush2.msra.mxu0 0.0
    %4642 = vmatprep.subr.mxu0 0.0
    %4643 = vmatpush2.msra.mxu0 0.0
    %4644 = vmatprep.subr.mxu0 0.0
    %4645 = vmatpush2.msra.mxu0 0.0
    %4646 = vmatprep.subr.mxu0 0.0
    %4647 = vmatpush2.msra.mxu0 0.0
    %4648 = vmatprep.subr.mxu0 0.0
    %4649 = vmatpush2.msra.mxu0 0.0
    %4650 = vmatprep.subr.mxu0 0.0
    %4651 = vmatpush2.msra.mxu0 0.0
    %4652 = vmatprep.subr.mxu0 0.0
    %4653 = vmatpush2.msra.mxu0 0.0
    %4654 = vmatprep.subr.mxu0 0.0
    %4655 = vmatpush2.msra.mxu0 0.0
    %4656 = vmatprep.subr.mxu0 0.0
    %4657 = vmatpush2.msra.mxu0 0.0
    %4658 = vmatprep.subr.mxu0 0.0
    %4659 = vmatpush2.msra.mxu0 0.0
    %4660 = vmatprep.mubr.f32.mxu0 0.0
    %4661 = vmatmul.mubr.f32.gmra.mxu0 %v4591
    %v4662 = vpop.f32.mrf.mxu0
    %v4663 = vadd.f32 0.0, %v4662
    %v4664 = vpop.f32.mrf.mxu0
    %4665 = vmatprep.mubr.f32.mxu0 0.0
    %4666 = vmatmul.mubr.f32.gmra.mxu0 %v4594
    %v4667 = vpop.f32.mrf.mxu0
    %v4668 = vadd.f32 0.0, %v4667
    %v4669 = vpop.f32.mrf.mxu0
    %4670 = vdwg.mxu0
    %4671 = vrot.lane.b32.xlu0 %v2822, 40
    %v4672 = vpop.permute.xlu0 %4671
    %4673 = vrot.lane.b32.xlu0 %v2827, 40
    %v4674 = vpop.permute.xlu0 %4673
    %v4678 = vsel %vm488, %v4582, 0
    %v4681 = vsel %vm488, %v4583, 0
    %4683 = vmatprep.subr.mxu0 0.0
    %4684 = vmatpush1.msra.mxu0 0.0
    %4685 = vmatprep.subr.mxu0 0.0
    %4686 = vmatpush1.msra.mxu0 0.0
    %4687 = vmatprep.subr.mxu0 0.0
    %4688 = vmatpush1.msra.mxu0 0.0
    %4689 = vmatprep.subr.mxu0 0.0
    %4690 = vmatpush1.msra.mxu0 0.0
    %4691 = vmatprep.subr.mxu0 0.0
    %4692 = vmatpush1.msra.mxu0 0.0
    %4693 = vmatprep.subr.mxu0 0.0
    %4694 = vmatpush1.msra.mxu0 0.0
    %4695 = vmatprep.subr.mxu0 0.0
    %4696 = vmatpush1.msra.mxu0 0.0
    %4697 = vmatprep.subr.mxu0 0.0
    %4698 = vmatpush1.msra.mxu0 0.0
    %4699 = vmatprep.subr.mxu0 0.0
    %4700 = vmatpush1.msra.mxu0 0.0
    %4701 = vmatprep.subr.mxu0 0.0
    %4702 = vmatpush1.msra.mxu0 0.0
    %4703 = vmatprep.subr.mxu0 0.0
    %4704 = vmatpush1.msra.mxu0 0.0
    %4705 = vmatprep.subr.mxu0 0.0
    %4706 = vmatpush1.msra.mxu0 0.0
    %4707 = vmatprep.subr.mxu0 0.0
    %4708 = vmatpush1.msra.mxu0 0.0
    %4709 = vmatprep.subr.mxu0 0.0
    %4710 = vmatpush1.msra.mxu0 0.0
    %4711 = vmatprep.subr.mxu0 0.0
    %4712 = vmatpush1.msra.mxu0 %v4674
    %4713 = vmatprep.subr.mxu0 0.0
    %4714 = vmatpush1.msra.mxu0 %v4672
    %4715 = vmatprep.subr.mxu0 0.0
    %4716 = vmatpush2.msra.mxu0 0.0
    %4717 = vmatprep.subr.mxu0 0.0
    %4718 = vmatpush2.msra.mxu0 0.0
    %4719 = vmatprep.subr.mxu0 0.0
    %4720 = vmatpush2.msra.mxu0 0.0
    %4721 = vmatprep.subr.mxu0 0.0
    %4722 = vmatpush2.msra.mxu0 0.0
    %4723 = vmatprep.subr.mxu0 0.0
    %4724 = vmatpush2.msra.mxu0 0.0
    %4725 = vmatprep.subr.mxu0 0.0
    %4726 = vmatpush2.msra.mxu0 0.0
    %4727 = vmatprep.subr.mxu0 0.0
    %4728 = vmatpush2.msra.mxu0 0.0
    %4729 = vmatprep.subr.mxu0 0.0
    %4730 = vmatpush2.msra.mxu0 0.0
    %4731 = vmatprep.subr.mxu0 0.0
    %4732 = vmatpush2.msra.mxu0 0.0
    %4733 = vmatprep.subr.mxu0 0.0
    %4734 = vmatpush2.msra.mxu0 0.0
    %4735 = vmatprep.subr.mxu0 0.0
    %4736 = vmatpush2.msra.mxu0 0.0
    %4737 = vmatprep.subr.mxu0 0.0
    %4738 = vmatpush2.msra.mxu0 0.0
    %4739 = vmatprep.subr.mxu0 0.0
    %4740 = vmatpush2.msra.mxu0 0.0
    %4741 = vmatprep.subr.mxu0 0.0
    %4742 = vmatpush2.msra.mxu0 0.0
    %4743 = vmatprep.subr.mxu0 0.0
    %4744 = vmatpush2.msra.mxu0 0.0
    %4745 = vmatprep.subr.mxu0 0.0
    %4746 = vmatpush2.msra.mxu0 0.0
    %4747 = vmatprep.mubr.f32.mxu0 0.0
    %4748 = vmatmul.mubr.f32.gmra.mxu0 %v4678
    %v4749 = vpop.f32.mrf.mxu0
    %v4750 = vadd.f32 0.0, %v4749
    %v4751 = vpop.f32.mrf.mxu0
    %4752 = vmatprep.mubr.f32.mxu0 0.0
    %4753 = vmatmul.mubr.f32.gmra.mxu0 %v4681
    %v4754 = vpop.f32.mrf.mxu0
    %v4755 = vadd.f32 0.0, %v4754
    %v4756 = vpop.f32.mrf.mxu0
    %4757 = vdwg.mxu0
    %v4759 = vsel %vm295, %v4663, 0
    %v4762 = vsel %vm295, %v4668, 0
    %v4765 = vsel %vm295, %v4750, 0
    %v4768 = vsel %vm295, %v4755, 0
    %4770 = vmatprep.subr.mxu0 0.0
    %4771 = vmatpush1.msra.mxu0 0.0
    %4772 = vmatprep.subr.mxu0 0.0
    %4773 = vmatpush1.msra.mxu0 0.0
    %4774 = vmatprep.subr.mxu0 0.0
    %4775 = vmatpush1.msra.mxu0 0.0
    %4776 = vmatprep.subr.mxu0 0.0
    %4777 = vmatpush1.msra.mxu0 0.0
    %4778 = vmatprep.subr.mxu0 0.0
    %4779 = vmatpush1.msra.mxu0 0.0
    %4780 = vmatprep.subr.mxu0 0.0
    %4781 = vmatpush1.msra.mxu0 0.0
    %4782 = vmatprep.subr.mxu0 0.0
    %4783 = vmatpush1.msra.mxu0 0.0
    %4784 = vmatprep.subr.mxu0 0.0
    %4785 = vmatpush1.msra.mxu0 0.0
    %4786 = vmatprep.subr.mxu0 0.0
    %4787 = vmatpush1.msra.mxu0 0.0
    %4788 = vmatprep.subr.mxu0 0.0
    %4789 = vmatpush1.msra.mxu0 0.0
    %4790 = vmatprep.subr.mxu0 0.0
    %4791 = vmatpush1.msra.mxu0 0.0
    %4792 = vmatprep.subr.mxu0 0.0
    %4793 = vmatpush1.msra.mxu0 0.0
    %4794 = vmatprep.subr.mxu0 0.0
    %4795 = vmatpush1.msra.mxu0 0.0
    %4796 = vmatprep.subr.mxu0 0.0
    %4797 = vmatpush1.msra.mxu0 0.0
    %4798 = vmatprep.subr.mxu0 0.0
    %4799 = vmatpush1.msra.mxu0 0.0
    %4800 = vmatprep.subr.mxu0 0.0
    %4801 = vmatpush1.msra.mxu0 %v2834
    %4802 = vmatprep.subr.mxu0 0.0
    %4803 = vmatpush2.msra.mxu0 0.0
    %4804 = vmatprep.subr.mxu0 0.0
    %4805 = vmatpush2.msra.mxu0 0.0
    %4806 = vmatprep.subr.mxu0 0.0
    %4807 = vmatpush2.msra.mxu0 0.0
    %4808 = vmatprep.subr.mxu0 0.0
    %4809 = vmatpush2.msra.mxu0 0.0
    %4810 = vmatprep.subr.mxu0 0.0
    %4811 = vmatpush2.msra.mxu0 0.0
    %4812 = vmatprep.subr.mxu0 0.0
    %4813 = vmatpush2.msra.mxu0 0.0
    %4814 = vmatprep.subr.mxu0 0.0
    %4815 = vmatpush2.msra.mxu0 0.0
    %4816 = vmatprep.subr.mxu0 0.0
    %4817 = vmatpush2.msra.mxu0 0.0
    %4818 = vmatprep.subr.mxu0 0.0
    %4819 = vmatpush2.msra.mxu0 0.0
    %4820 = vmatprep.subr.mxu0 0.0
    %4821 = vmatpush2.msra.mxu0 0.0
    %4822 = vmatprep.subr.mxu0 0.0
    %4823 = vmatpush2.msra.mxu0 0.0
    %4824 = vmatprep.subr.mxu0 0.0
    %4825 = vmatpush2.msra.mxu0 0.0
    %4826 = vmatprep.subr.mxu0 0.0
    %4827 = vmatpush2.msra.mxu0 0.0
    %4828 = vmatprep.subr.mxu0 0.0
    %4829 = vmatpush2.msra.mxu0 0.0
    %4830 = vmatprep.subr.mxu0 0.0
    %4831 = vmatpush2.msra.mxu0 0.0
    %4832 = vmatprep.subr.mxu0 0.0
    %4833 = vmatpush2.msra.mxu0 0.0
    %4834 = vmatprep.mubr.f32.mxu0 0.0
    %4835 = vmatmul.mubr.f32.gmra.mxu0 %v4759
    %v4836 = vpop.f32.mrf.mxu0
    %v4837 = vadd.f32 0.0, %v4836
    %v4838 = vpop.f32.mrf.mxu0
    %4839 = vmatprep.mubr.f32.mxu0 0.0
    %4840 = vmatmul.mubr.f32.gmra.mxu0 %v4762
    %v4841 = vpop.f32.mrf.mxu0
    %v4842 = vadd.f32 0.0, %v4841
    %v4843 = vpop.f32.mrf.mxu0
    %4844 = vmatprep.mubr.f32.mxu0 0.0
    %4845 = vmatmul.mubr.f32.gmra.mxu0 %v4765
    %v4846 = vpop.f32.mrf.mxu0
    %v4847 = vadd.f32 0.0, %v4846
    %v4848 = vpop.f32.mrf.mxu0
    %4849 = vmatprep.mubr.f32.mxu0 0.0
    %4850 = vmatmul.mubr.f32.gmra.mxu0 %v4768
    %v4851 = vpop.f32.mrf.mxu0
    %v4852 = vadd.f32 0.0, %v4851
    %v4853 = vpop.f32.mrf.mxu0
    %4854 = vdwg.mxu0
    %v4855 = vadd.f32 %v4346, %v4837
    %v4856 = vadd.f32 %v4347, %v4842
    %v4857 = vadd.f32 %v4348, %v4847
    %v4858 = vadd.f32 %v4349, %v4852
    %s4859 = scalar_lea.vmem %s7, 1
    %v4860 = vld [vmem:[%s4859] sm:$0x1]
    %v4862 = vlaneseq
    %v4863 = vshrl.u32 %v4862, 7
    %v4864 = vsub.s32 0, %v4863
    %v4865 = vrot.slane %v4860, %v4864
    %v4867 = vadd.f32 %v4855, %v4865
    %v4868 = vadd.f32 %v4856, %v4865
    %v4869 = vadd.f32 %v4857, %v4865
    %v4870 = vadd.f32 %v4858, %v4865
    %v4871 = vadd.f32 %v2716, %v4867
    %v4872 = vadd.f32 %v2717, %v4868
    %v4873 = vadd.f32 %v2718, %v4869
    %v4874 = vadd.f32 %v2719, %v4870
    %s4875 = scalar_lea.vmem %s12, 1
    %v4876 = vld [vmem:[%s4875] sm:$0x1]
    %s4877 = scalar_lea.vmem %s13, 1
    %v4878 = vld [vmem:[%s4877] sm:$0x1]
    %v4879 = vsel %vm187, %v4871, 0.0
    %4880 = vadd.xlane.f32.xlu0 %v4879
    %v4881 = vpop.xlane.xlu0 %4880
    %v4882 = vsel %vm187, %v4872, 0.0
    %4883 = vadd.xlane.f32.xlu0 %v4882
    %v4884 = vpop.xlane.xlu0 %4883
    %v4885 = vsel %vm187, %v4873, 0.0
    %4886 = vadd.xlane.f32.xlu0 %v4885
    %v4887 = vpop.xlane.xlu0 %4886
    %v4888 = vsel %vm187, %v4874, 0.0
    %4889 = vadd.xlane.f32.xlu0 %v4888
    %v4890 = vpop.xlane.xlu0 %4889
    %v4891 = vmul.f32 %v4881, %v2356
    %v4892 = vmul.f32 %v4884, %v2356
    %v4893 = vmul.f32 %v4887, %v2356
    %v4894 = vmul.f32 %v4890, %v2356
    %v4895 = vsub.f32 %v4871, %v4891
    %v4896 = vsub.f32 %v4872, %v4892
    %v4897 = vsub.f32 %v4873, %v4893
    %v4898 = vsub.f32 %v4874, %v4894
    %v4899 = vmul.f32 %v4895, %v4895
    %v4900 = vmul.f32 %v4896, %v4896
    %v4901 = vmul.f32 %v4897, %v4897
    %v4902 = vmul.f32 %v4898, %v4898
    %v4903 = vsel %vm187, %v4899, 0.0
    %4904 = vadd.xlane.f32.xlu0 %v4903
    %v4905 = vpop.xlane.xlu0 %4904
    %v4906 = vsel %vm187, %v4900, 0.0
    %4907 = vadd.xlane.f32.xlu0 %v4906
    %v4908 = vpop.xlane.xlu0 %4907
    %v4909 = vsel %vm187, %v4901, 0.0
    %4910 = vadd.xlane.f32.xlu0 %v4909
    %v4911 = vpop.xlane.xlu0 %4910
    %v4912 = vsel %vm187, %v4902, 0.0
    %4913 = vadd.xlane.f32.xlu0 %v4912
    %v4914 = vpop.xlane.xlu0 %4913
    %v4915 = vmul.f32 %v4905, %v2356
    %v4916 = vmul.f32 %v4908, %v2356
    %v4917 = vmul.f32 %v4911, %v2356
    %v4918 = vmul.f32 %v4914, %v2356
    %v4919 = vadd.f32 %v4915, 1e-05
    %v4920 = vadd.f32 %v4916, 1e-05
    %v4921 = vadd.f32 %v4917, 1e-05
    %v4922 = vadd.f32 %v4918, 1e-05
    %v4923 = vrsqrt.pop %v4919
    %v4924 = vrsqrt.pop %v4920
    %v4925 = vrsqrt.pop %v4921
    %v4926 = vrsqrt.pop %v4922
    %v4927 = vmul.f32 %v4895, %v4923
    %v4928 = vmul.f32 %v4896, %v4924
    %v4929 = vmul.f32 %v4897, %v4925
    %v4930 = vmul.f32 %v4898, %v4926
    %v4932 = vlaneseq
    %v4933 = vshrl.u32 %v4932, 7
    %v4934 = vsub.s32 0, %v4933
    %v4935 = vrot.slane %v4876, %v4934
    %v4937 = vmul.f32 %v4927, %v4935
    %v4938 = vmul.f32 %v4928, %v4935
    %v4939 = vmul.f32 %v4929, %v4935
    %v4940 = vmul.f32 %v4930, %v4935
    %v4942 = vlaneseq
    %v4943 = vshrl.u32 %v4942, 7
    %v4944 = vsub.s32 0, %v4943
    %v4945 = vrot.slane %v4878, %v4944
    %v4947 = vadd.f32 %v4937, %v4945
    %v4948 = vadd.f32 %v4938, %v4945
    %v4949 = vadd.f32 %v4939, %v4945
    %v4950 = vadd.f32 %v4940, %v4945
    %s4951 = scalar_lea.vmem %s8, 32
    %v4952 = vld [vmem:[%s4951] sm:$0xff]
    %v4953 = vld [vmem:[%s4951 + $0x8] sm:$0xff]
    %v4954 = vld [vmem:[%s4951 + $0x10] sm:$0xff]
    %v4955 = vld [vmem:[%s4951 + $0x18] sm:$0xff]
    %s4956 = scalar_lea.vmem %s9, 1
    %v4957 = vld [vmem:[%s4956] sm:$0x1]
    %v4959 = vlaneseq
    %v4960 = vshrl.u32 %v4959, 7
    %v4961 = vsub.s32 0, %v4960
    %v4962 = vrot.slane %v4957, %v4961
    %v4965 = vsel %vm187, %v4947, 0
    %v4968 = vsel %vm187, %v4948, 0
    %v4971 = vsel %vm187, %v4949, 0
    %v4974 = vsel %vm187, %v4950, 0
    %4976 = vmatprep.subr.mxu0 0.0
    %4977 = vmatpush1.msra.mxu0 0.0
    %4978 = vmatprep.subr.mxu0 0.0
    %4979 = vmatpush1.msra.mxu0 0.0
    %4980 = vmatprep.subr.mxu0 0.0
    %4981 = vmatpush1.msra.mxu0 0.0
    %4982 = vmatprep.subr.mxu0 0.0
    %4983 = vmatpush1.msra.mxu0 0.0
    %4984 = vmatprep.subr.mxu0 0.0
    %4985 = vmatpush1.msra.mxu0 0.0
    %4986 = vmatprep.subr.mxu0 0.0
    %4987 = vmatpush1.msra.mxu0 0.0
    %4988 = vmatprep.subr.mxu0 0.0
    %4989 = vmatpush1.msra.mxu0 0.0
    %4990 = vmatprep.subr.mxu0 0.0
    %4991 = vmatpush1.msra.mxu0 0.0
    %4992 = vmatprep.subr.mxu0 0.0
    %4993 = vmatpush1.msra.mxu0 0.0
    %4994 = vmatprep.subr.mxu0 0.0
    %4995 = vmatpush1.msra.mxu0 0.0
    %4996 = vmatprep.subr.mxu0 0.0
    %4997 = vmatpush1.msra.mxu0 0.0
    %4998 = vmatprep.subr.mxu0 0.0
    %4999 = vmatpush1.msra.mxu0 0.0
    %5000 = vmatprep.subr.mxu0 0.0
    %5001 = vmatpush1.msra.mxu0 %v4955
    %5002 = vmatprep.subr.mxu0 0.0
    %5003 = vmatpush1.msra.mxu0 %v4954
    %5004 = vmatprep.subr.mxu0 0.0
    %5005 = vmatpush1.msra.mxu0 %v4953
    %5006 = vmatprep.subr.mxu0 0.0
    %5007 = vmatpush1.msra.mxu0 %v4952
    %5008 = vmatprep.subr.mxu0 0.0
    %5009 = vmatpush2.msra.mxu0 0.0
    %5010 = vmatprep.subr.mxu0 0.0
    %5011 = vmatpush2.msra.mxu0 0.0
    %5012 = vmatprep.subr.mxu0 0.0
    %5013 = vmatpush2.msra.mxu0 0.0
    %5014 = vmatprep.subr.mxu0 0.0
    %5015 = vmatpush2.msra.mxu0 0.0
    %5016 = vmatprep.subr.mxu0 0.0
    %5017 = vmatpush2.msra.mxu0 0.0
    %5018 = vmatprep.subr.mxu0 0.0
    %5019 = vmatpush2.msra.mxu0 0.0
    %5020 = vmatprep.subr.mxu0 0.0
    %5021 = vmatpush2.msra.mxu0 0.0
    %5022 = vmatprep.subr.mxu0 0.0
    %5023 = vmatpush2.msra.mxu0 0.0
    %5024 = vmatprep.subr.mxu0 0.0
    %5025 = vmatpush2.msra.mxu0 0.0
    %5026 = vmatprep.subr.mxu0 0.0
    %5027 = vmatpush2.msra.mxu0 0.0
    %5028 = vmatprep.subr.mxu0 0.0
    %5029 = vmatpush2.msra.mxu0 0.0
    %5030 = vmatprep.subr.mxu0 0.0
    %5031 = vmatpush2.msra.mxu0 0.0
    %5032 = vmatprep.subr.mxu0 0.0
    %5033 = vmatpush2.msra.mxu0 0.0
    %5034 = vmatprep.subr.mxu0 0.0
    %5035 = vmatpush2.msra.mxu0 0.0
    %5036 = vmatprep.subr.mxu0 0.0
    %5037 = vmatpush2.msra.mxu0 0.0
    %5038 = vmatprep.subr.mxu0 0.0
    %5039 = vmatpush2.msra.mxu0 0.0
    %5040 = vmatprep.mubr.f32.mxu0 0.0
    %5041 = vmatmul.mubr.f32.gmra.mxu0 %v4965
    %v5042 = vpop.f32.mrf.mxu0
    %v5043 = vadd.f32 %v4962, %v5042
    %v5044 = vpop.f32.mrf.mxu0
    %5045 = vmatprep.mubr.f32.mxu0 0.0
    %5046 = vmatmul.mubr.f32.gmra.mxu0 %v4968
    %v5047 = vpop.f32.mrf.mxu0
    %v5048 = vadd.f32 %v4962, %v5047
    %v5049 = vpop.f32.mrf.mxu0
    %5050 = vmatprep.mubr.f32.mxu0 0.0
    %5051 = vmatmul.mubr.f32.gmra.mxu0 %v4971
    %v5052 = vpop.f32.mrf.mxu0
    %v5053 = vadd.f32 %v4962, %v5052
    %v5054 = vpop.f32.mrf.mxu0
    %5055 = vmatprep.mubr.f32.mxu0 0.0
    %5056 = vmatmul.mubr.f32.gmra.mxu0 %v4974
    %v5057 = vpop.f32.mrf.mxu0
    %v5058 = vadd.f32 %v4962, %v5057
    %v5059 = vpop.f32.mrf.mxu0
    %5060 = vdwg.mxu0
    %v5061 = vmax.f32 %v5043, 0.0
    %v5062 = vmax.f32 %v5048, 0.0
    %v5063 = vmax.f32 %v5053, 0.0
    %v5064 = vmax.f32 %v5058, 0.0
    %s5065 = scalar_lea.vmem %s10, 64
    %v5066 = vld [vmem:[%s5065] sm:$0xff]
    %v5067 = vld [vmem:[%s5065 + $0x8] sm:$0xff]
    %v5068 = vld [vmem:[%s5065 + $0x10] sm:$0xff]
    %v5069 = vld [vmem:[%s5065 + $0x18] sm:$0xff]
    %v5070 = vld [vmem:[%s5065 + $0x20] sm:$0xff]
    %v5071 = vld [vmem:[%s5065 + $0x28] sm:$0xff]
    %v5072 = vld [vmem:[%s5065 + $0x30] sm:$0xff]
    %v5073 = vld [vmem:[%s5065 + $0x38] sm:$0xff]
    %s5074 = scalar_lea.vmem %s11, 1
    %v5075 = vld [vmem:[%s5074] sm:$0x1]
    %v5077 = vlaneseq
    %v5078 = vshrl.u32 %v5077, 7
    %v5079 = vsub.s32 0, %v5078
    %v5080 = vrot.slane %v5075, %v5079
    %v5083 = vsel %vm2544, %v5061, 0
    %v5086 = vsel %vm2544, %v5062, 0
    %v5089 = vsel %vm2544, %v5063, 0
    %v5092 = vsel %vm2544, %v5064, 0
    %5094 = vmatprep.subr.mxu0 0.0
    %5095 = vmatpush1.msra.mxu0 0.0
    %5096 = vmatprep.subr.mxu0 0.0
    %5097 = vmatpush1.msra.mxu0 0.0
    %5098 = vmatprep.subr.mxu0 0.0
    %5099 = vmatpush1.msra.mxu0 0.0
    %5100 = vmatprep.subr.mxu0 0.0
    %5101 = vmatpush1.msra.mxu0 0.0
    %5102 = vmatprep.subr.mxu0 0.0
    %5103 = vmatpush1.msra.mxu0 0.0
    %5104 = vmatprep.subr.mxu0 0.0
    %5105 = vmatpush1.msra.mxu0 0.0
    %5106 = vmatprep.subr.mxu0 0.0
    %5107 = vmatpush1.msra.mxu0 0.0
    %5108 = vmatprep.subr.mxu0 0.0
    %5109 = vmatpush1.msra.mxu0 0.0
    %5110 = vmatprep.subr.mxu0 0.0
    %5111 = vmatpush1.msra.mxu0 %v5073
    %5112 = vmatprep.subr.mxu0 0.0
    %5113 = vmatpush1.msra.mxu0 %v5072
    %5114 = vmatprep.subr.mxu0 0.0
    %5115 = vmatpush1.msra.mxu0 %v5071
    %5116 = vmatprep.subr.mxu0 0.0
    %5117 = vmatpush1.msra.mxu0 %v5070
    %5118 = vmatprep.subr.mxu0 0.0
    %5119 = vmatpush1.msra.mxu0 %v5069
    %5120 = vmatprep.subr.mxu0 0.0
    %5121 = vmatpush1.msra.mxu0 %v5068
    %5122 = vmatprep.subr.mxu0 0.0
    %5123 = vmatpush1.msra.mxu0 %v5067
    %5124 = vmatprep.subr.mxu0 0.0
    %5125 = vmatpush1.msra.mxu0 %v5066
    %5126 = vmatprep.subr.mxu0 0.0
    %5127 = vmatpush2.msra.mxu0 0.0
    %5128 = vmatprep.subr.mxu0 0.0
    %5129 = vmatpush2.msra.mxu0 0.0
    %5130 = vmatprep.subr.mxu0 0.0
    %5131 = vmatpush2.msra.mxu0 0.0
    %5132 = vmatprep.subr.mxu0 0.0
    %5133 = vmatpush2.msra.mxu0 0.0
    %5134 = vmatprep.subr.mxu0 0.0
    %5135 = vmatpush2.msra.mxu0 0.0
    %5136 = vmatprep.subr.mxu0 0.0
    %5137 = vmatpush2.msra.mxu0 0.0
    %5138 = vmatprep.subr.mxu0 0.0
    %5139 = vmatpush2.msra.mxu0 0.0
    %5140 = vmatprep.subr.mxu0 0.0
    %5141 = vmatpush2.msra.mxu0 0.0
    %5142 = vmatprep.subr.mxu0 0.0
    %5143 = vmatpush2.msra.mxu0 0.0
    %5144 = vmatprep.subr.mxu0 0.0
    %5145 = vmatpush2.msra.mxu0 0.0
    %5146 = vmatprep.subr.mxu0 0.0
    %5147 = vmatpush2.msra.mxu0 0.0
    %5148 = vmatprep.subr.mxu0 0.0
    %5149 = vmatpush2.msra.mxu0 0.0
    %5150 = vmatprep.subr.mxu0 0.0
    %5151 = vmatpush2.msra.mxu0 0.0
    %5152 = vmatprep.subr.mxu0 0.0
    %5153 = vmatpush2.msra.mxu0 0.0
    %5154 = vmatprep.subr.mxu0 0.0
    %5155 = vmatpush2.msra.mxu0 0.0
    %5156 = vmatprep.subr.mxu0 0.0
    %5157 = vmatpush2.msra.mxu0 0.0
    %5158 = vmatprep.mubr.f32.mxu0 0.0
    %5159 = vmatmul.mubr.f32.gmra.mxu0 %v5083
    %v5160 = vpop.f32.mrf.mxu0
    %v5161 = vadd.f32 %v5080, %v5160
    %v5162 = vpop.f32.mrf.mxu0
    %5163 = vmatprep.mubr.f32.mxu0 0.0
    %5164 = vmatmul.mubr.f32.gmra.mxu0 %v5086
    %v5165 = vpop.f32.mrf.mxu0
    %v5166 = vadd.f32 %v5080, %v5165
    %v5167 = vpop.f32.mrf.mxu0
    %5168 = vmatprep.mubr.f32.mxu0 0.0
    %5169 = vmatmul.mubr.f32.gmra.mxu0 %v5089
    %v5170 = vpop.f32.mrf.mxu0
    %v5171 = vadd.f32 %v5080, %v5170
    %v5172 = vpop.f32.mrf.mxu0
    %5173 = vmatprep.mubr.f32.mxu0 0.0
    %5174 = vmatmul.mubr.f32.gmra.mxu0 %v5092
    %v5175 = vpop.f32.mrf.mxu0
    %v5176 = vadd.f32 %v5080, %v5175
    %v5177 = vpop.f32.mrf.mxu0
    %5178 = vdwg.mxu0
    %v5179 = vadd.f32 %v4947, %v5161
    %v5180 = vadd.f32 %v4948, %v5166
    %v5181 = vadd.f32 %v4949, %v5171
    %v5182 = vadd.f32 %v4950, %v5176
    %s5183 = scalar_lea.vmem %s14, 1
    %v5184 = vld [vmem:[%s5183] sm:$0x1]
    %s5185 = scalar_lea.vmem %s15, 1
    %v5186 = vld [vmem:[%s5185] sm:$0x1]
    %v5187 = vsel %vm187, %v5179, 0.0
    %5188 = vadd.xlane.f32.xlu0 %v5187
    %v5189 = vpop.xlane.xlu0 %5188
    %v5190 = vsel %vm187, %v5180, 0.0
    %5191 = vadd.xlane.f32.xlu0 %v5190
    %v5192 = vpop.xlane.xlu0 %5191
    %v5193 = vsel %vm187, %v5181, 0.0
    %5194 = vadd.xlane.f32.xlu0 %v5193
    %v5195 = vpop.xlane.xlu0 %5194
    %v5196 = vsel %vm187, %v5182, 0.0
    %5197 = vadd.xlane.f32.xlu0 %v5196
    %v5198 = vpop.xlane.xlu0 %5197
    %v5199 = vmul.f32 %v5189, %v2356
    %v5200 = vmul.f32 %v5192, %v2356
    %v5201 = vmul.f32 %v5195, %v2356
    %v5202 = vmul.f32 %v5198, %v2356
    %v5203 = vsub.f32 %v5179, %v5199
    %v5204 = vsub.f32 %v5180, %v5200
    %v5205 = vsub.f32 %v5181, %v5201
    %v5206 = vsub.f32 %v5182, %v5202
    %v5207 = vmul.f32 %v5203, %v5203
    %v5208 = vmul.f32 %v5204, %v5204
    %v5209 = vmul.f32 %v5205, %v5205
    %v5210 = vmul.f32 %v5206, %v5206
    %v5211 = vsel %vm187, %v5207, 0.0
    %5212 = vadd.xlane.f32.xlu0 %v5211
    %v5213 = vpop.xlane.xlu0 %5212
    %v5214 = vsel %vm187, %v5208, 0.0
    %5215 = vadd.xlane.f32.xlu0 %v5214
    %v5216 = vpop.xlane.xlu0 %5215
    %v5217 = vsel %vm187, %v5209, 0.0
    %5218 = vadd.xlane.f32.xlu0 %v5217
    %v5219 = vpop.xlane.xlu0 %5218
    %v5220 = vsel %vm187, %v5210, 0.0
    %5221 = vadd.xlane.f32.xlu0 %v5220
    %v5222 = vpop.xlane.xlu0 %5221
    %v5223 = vmul.f32 %v5213, %v2356
    %v5224 = vmul.f32 %v5216, %v2356
    %v5225 = vmul.f32 %v5219, %v2356
    %v5226 = vmul.f32 %v5222, %v2356
    %v5227 = vadd.f32 %v5223, 1e-05
    %v5228 = vadd.f32 %v5224, 1e-05
    %v5229 = vadd.f32 %v5225, 1e-05
    %v5230 = vadd.f32 %v5226, 1e-05
    %v5231 = vrsqrt.pop %v5227
    %v5232 = vrsqrt.pop %v5228
    %v5233 = vrsqrt.pop %v5229
    %v5234 = vrsqrt.pop %v5230
    %v5235 = vmul.f32 %v5203, %v5231
    %v5236 = vmul.f32 %v5204, %v5232
    %v5237 = vmul.f32 %v5205, %v5233
    %v5238 = vmul.f32 %v5206, %v5234
    %v5240 = vlaneseq
    %v5241 = vshrl.u32 %v5240, 7
    %v5242 = vsub.s32 0, %v5241
    %v5243 = vrot.slane %v5184, %v5242
    %v5245 = vmul.f32 %v5235, %v5243
    %v5246 = vmul.f32 %v5236, %v5243
    %v5247 = vmul.f32 %v5237, %v5243
    %v5248 = vmul.f32 %v5238, %v5243
    %v5250 = vlaneseq
    %v5251 = vshrl.u32 %v5250, 7
    %v5252 = vsub.s32 0, %v5251
    %v5253 = vrot.slane %v5186, %v5252
    %v5255 = vadd.f32 %v5245, %v5253
    %v5256 = vadd.f32 %v5246, %v5253
    %v5257 = vadd.f32 %v5247, %v5253
    %v5258 = vadd.f32 %v5248, %v5253
    %v5259 = vld [vmem:[%s16] sm:$0xff]
    %v5260 = vld [vmem:[%s16 + $0x8] sm:$0xff]
    %v5261 = vld [vmem:[%s16 + $0x10] sm:$0xff]
    %v5262 = vld [vmem:[%s16 + $0x18] sm:$0xff]
    %v5263 = vld [vmem:[%s17] sm:$0x1]
    %v5265 = vlaneseq
    %v5266 = vshrl.u32 %v5265, 7
    %v5267 = vsub.s32 0, %v5266
    %v5268 = vrot.slane %v5263, %v5267
    %v5271 = vsel %vm187, %v5255, 0
    %v5274 = vsel %vm187, %v5256, 0
    %v5277 = vsel %vm187, %v5257, 0
    %v5280 = vsel %vm187, %v5258, 0
    %5282 = vmatprep.subr.mxu0 0.0
    %5283 = vmatpush1.msra.mxu0 0.0
    %5284 = vmatprep.subr.mxu0 0.0
    %5285 = vmatpush1.msra.mxu0 0.0
    %5286 = vmatprep.subr.mxu0 0.0
    %5287 = vmatpush1.msra.mxu0 0.0
    %5288 = vmatprep.subr.mxu0 0.0
    %5289 = vmatpush1.msra.mxu0 0.0
    %5290 = vmatprep.subr.mxu0 0.0
    %5291 = vmatpush1.msra.mxu0 0.0
    %5292 = vmatprep.subr.mxu0 0.0
    %5293 = vmatpush1.msra.mxu0 0.0
    %5294 = vmatprep.subr.mxu0 0.0
    %5295 = vmatpush1.msra.mxu0 0.0
    %5296 = vmatprep.subr.mxu0 0.0
    %5297 = vmatpush1.msra.mxu0 0.0
    %5298 = vmatprep.subr.mxu0 0.0
    %5299 = vmatpush1.msra.mxu0 0.0
    %5300 = vmatprep.subr.mxu0 0.0
    %5301 = vmatpush1.msra.mxu0 0.0
    %5302 = vmatprep.subr.mxu0 0.0
    %5303 = vmatpush1.msra.mxu0 0.0
    %5304 = vmatprep.subr.mxu0 0.0
    %5305 = vmatpush1.msra.mxu0 0.0
    %5306 = vmatprep.subr.mxu0 0.0
    %5307 = vmatpush1.msra.mxu0 %v5262
    %5308 = vmatprep.subr.mxu0 0.0
    %5309 = vmatpush1.msra.mxu0 %v5261
    %5310 = vmatprep.subr.mxu0 0.0
    %5311 = vmatpush1.msra.mxu0 %v5260
    %5312 = vmatprep.subr.mxu0 0.0
    %5313 = vmatpush1.msra.mxu0 %v5259
    %5314 = vmatprep.subr.mxu0 0.0
    %5315 = vmatpush2.msra.mxu0 0.0
    %5316 = vmatprep.subr.mxu0 0.0
    %5317 = vmatpush2.msra.mxu0 0.0
    %5318 = vmatprep.subr.mxu0 0.0
    %5319 = vmatpush2.msra.mxu0 0.0
    %5320 = vmatprep.subr.mxu0 0.0
    %5321 = vmatpush2.msra.mxu0 0.0
    %5322 = vmatprep.subr.mxu0 0.0
    %5323 = vmatpush2.msra.mxu0 0.0
    %5324 = vmatprep.subr.mxu0 0.0
    %5325 = vmatpush2.msra.mxu0 0.0
    %5326 = vmatprep.subr.mxu0 0.0
    %5327 = vmatpush2.msra.mxu0 0.0
    %5328 = vmatprep.subr.mxu0 0.0
    %5329 = vmatpush2.msra.mxu0 0.0
    %5330 = vmatprep.subr.mxu0 0.0
    %5331 = vmatpush2.msra.mxu0 0.0
    %5332 = vmatprep.subr.mxu0 0.0
    %5333 = vmatpush2.msra.mxu0 0.0
    %5334 = vmatprep.subr.mxu0 0.0
    %5335 = vmatpush2.msra.mxu0 0.0
    %5336 = vmatprep.subr.mxu0 0.0
    %5337 = vmatpush2.msra.mxu0 0.0
    %5338 = vmatprep.subr.mxu0 0.0
    %5339 = vmatpush2.msra.mxu0 0.0
    %5340 = vmatprep.subr.mxu0 0.0
    %5341 = vmatpush2.msra.mxu0 0.0
    %5342 = vmatprep.subr.mxu0 0.0
    %5343 = vmatpush2.msra.mxu0 0.0
    %5344 = vmatprep.subr.mxu0 0.0
    %5345 = vmatpush2.msra.mxu0 0.0
    %5346 = vmatprep.mubr.f32.mxu0 0.0
    %5347 = vmatmul.mubr.f32.gmra.mxu0 %v5271
    %v5348 = vpop.f32.mrf.mxu0
    %v5349 = vadd.f32 %v5268, %v5348
    %v5350 = vpop.f32.mrf.mxu0
    %5351 = vmatprep.mubr.f32.mxu0 0.0
    %5352 = vmatmul.mubr.f32.gmra.mxu0 %v5274
    %v5353 = vpop.f32.mrf.mxu0
    %v5354 = vadd.f32 %v5268, %v5353
    %v5355 = vpop.f32.mrf.mxu0
    %5356 = vmatprep.mubr.f32.mxu0 0.0
    %5357 = vmatmul.mubr.f32.gmra.mxu0 %v5277
    %v5358 = vpop.f32.mrf.mxu0
    %v5359 = vadd.f32 %v5268, %v5358
    %v5360 = vpop.f32.mrf.mxu0
    %5361 = vmatprep.mubr.f32.mxu0 0.0
    %5362 = vmatmul.mubr.f32.gmra.mxu0 %v5280
    %v5363 = vpop.f32.mrf.mxu0
    %v5364 = vadd.f32 %v5268, %v5363
    %v5365 = vpop.f32.mrf.mxu0
    %5366 = vdwg.mxu0
    %vm5367 = vcmask 162816
    %5368 = vst.msk [vmem:[#allocation2] sm:$0xff] %vm5367, %v5349
    %5369 = vst.msk [vmem:[#allocation2 + $0x8] sm:$0xff] %vm5367, %v5354
    %5370 = vst.msk [vmem:[#allocation2 + $0x10] sm:$0xff] %vm5367, %v5359
    %5371 = vst.msk [vmem:[#allocation2 + $0x18] sm:$0xff] %vm5367, %v5364
    // Predicated region
    $region74: #{transformer_regressor_forward.1} parent=1 // pred_check
      _
    $region75: #{transformer_regressor_forward.1} parent=1 // pred_check_branch
      %5373 = sbr.rel (0) target = $region77
    $region76: #{transformer_regressor_forward.1} parent=1 // pred_region
      %s5375 = ssub.s32 512, 512
      %5376 = vsyncadd [#allocation3], %s5375
      %s5377 = sshll.u32 [#allocation2], 4
      %s5378 = int_to_ptr.vmem [resolvable:$true] %s5377
      %5383 = dma.vmem_to_hbm [thread:$0]  %s5378, 512, %s18, [#allocation3], 128, 128, 8
    $region77: #{transformer_regressor_forward.1} parent=1 // pred_fallthru
      _
    // Predicated region
    $region78: #{transformer_regressor_forward.1} parent=1 // pred_check
      _
    $region79: #{transformer_regressor_forward.1} parent=1 // pred_check_branch
      %5385 = sbr.rel (0) target = $region81
    $region80: #{transformer_regressor_forward.1} parent=1 // pred_region
      %5386 = dma.done [#allocation3], 512
    $region81: #{transformer_regressor_forward.1} parent=1 // pred_fallthru
      _
    %5387 = vsyncpa [#allocation3], 1

</llo_original>
